<compile_context>
chip_gen: v5e
topology: v5e:2x2
jax: 0.10.0
libtpu: 0.0.40
codegen_flags: <defaults>
</compile_context>

<pallas_src>
import jax
import jax.numpy as jnp
from jax.experimental import pallas as pl
from jax.experimental.pallas import tpu as pltpu

SEQ_LEN = 128     # fixed by the module's registered causal mask
NUM_HEADS = 6
NEG_INF = -1e30   # finite additive mask value (avoids -inf - -inf -> NaN)


# ---------------------------------------------------------------------------
# Fused kernel: one batch row -> full multi-head attention + output projection
# ---------------------------------------------------------------------------
def mha_fused_kernel(x_ref, wqkv_ref, bqkv_ref, wo_ref, bo_ref, out_ref,
                     mask_s, q_s, k_s, v_s, acc_s):
    # x_ref:    (1, S, E)   current batch row
    # wqkv_ref: (3, E, E)   packed per-head projections (Wq pre-scaled)
    # bqkv_ref: (3, 1, E)
    # wo_ref:   (E, E)      output projection (applied as x @ W)
    # bo_ref:   (1, E)
    # out_ref:  (1, S, E)
    # scratch:  mask_s (S,S) f32; q_s/k_s/v_s/acc_s (S,E) f32
    S = x_ref.shape[1]
    E = x_ref.shape[2]
    H = NUM_HEADS
    D = E // H

    x = x_ref[0]                                           # (S, E)

    # Additive causal mask built in-kernel (cheap iota/compare on the VPU) and
    # staged in VMEM scratch so it doesn't pin 16 vregs across the head loop.
    row = jax.lax.broadcasted_iota(jnp.int32, (S, S), 0)
    col = jax.lax.broadcasted_iota(jnp.int32, (S, S), 1)
    mask_s[...] = jnp.where(row >= col, 0.0, NEG_INF).astype(jnp.float32)

    # Packed QKV projections for all heads at once (wide MXU pushes), staged
    # to VMEM scratch so the head loop reads 8-lane slices via vld instead of
    # holding ~48 vregs of q/k/v live (spill mitigation).
    q_s[...] = jnp.dot(x, wqkv_ref[0],
                       preferred_element_type=jnp.float32) + bqkv_ref[0]
    k_s[...] = jnp.dot(x, wqkv_ref[1],
                       preferred_element_type=jnp.float32) + bqkv_ref[1]
    v_s[...] = jnp.dot(x, wqkv_ref[2],
                       preferred_element_type=jnp.float32) + bqkv_ref[2]

    acc_s[...] = jnp.zeros_like(acc_s)

    # Statically unrolled head loop; accumulate the output projection per head
    # (no concatenation of lane-padded head outputs).
    for h in range(H):
        qh = q_s[:, h * D:(h + 1) * D]                     # (S, D)
        kh = k_s[:, h * D:(h + 1) * D]
        vh = v_s[:, h * D:(h + 1) * D]

        # q @ k^T as a dot_general contraction on axis 1 -> no explicit
        # transpose, no XLU relayout.  Scale already folded into Wq/bq.
        scores = jax.lax.dot_general(
            qh, kh, (((1,), (1,)), ((), ())),
            preferred_element_type=jnp.float32) + mask_s[...]

        m = jnp.max(scores, axis=-1, keepdims=True)
        p = jnp.exp(scores - m)                            # EUP
        l = jnp.sum(p, axis=-1, keepdims=True)

        oh = jnp.dot(p, vh, preferred_element_type=jnp.float32)   # (S, D)
        # Exact reciprocal on a tiny (S,1) tensor; normalize the (S,D) result
        # rather than the (S,S) probabilities.
        oh = oh * (1.0 / l)

        # Sublane slice of W_out (rows h*D:(h+1)*D, 8-row aligned) -> free.
        acc_s[...] += jnp.dot(oh, wo_ref[h * D:(h + 1) * D, :],
                              preferred_element_type=jnp.float32)

    out_ref[0] = (acc_s[...] + bo_ref[...]).astype(out_ref.dtype)


# ---------------------------------------------------------------------------
# Wrapper: packs per-head params once, then one fused pallas_call over batch
# ---------------------------------------------------------------------------
def multi_head_attention(x, w_qkv, b_qkv, w_out, b_out):
    """x: (B, S, E); w_qkv: (H, E, 3D); b_qkv: (H, 1, 3D);
    w_out: (E, E) (applied as x @ W); b_out: (1, E)."""
    B, S, E = x.shape
    H = w_qkv.shape[0]
    D = E // H
    scale = jnp.asarray(D ** -0.5, dtype=w_qkv.dtype)

    # Pack per-head Q/K/V weights into lane-dense (E, H*D) matrices; fold the
    # 1/sqrt(D) score scaling into the Q projection. Done once, outside kernel.
    def pack_w(sl):
        return jnp.transpose(w_qkv[:, :, sl], (1, 0, 2)).reshape(E, H * D)

    def pack_b(sl):
        return b_qkv[:, 0, sl].reshape(1, H * D)

    wq = pack_w(slice(0, D)) * scale
    wk = pack_w(slice(D, 2 * D))
    wv = pack_w(slice(2 * D, 3 * D))
    bq = pack_b(slice(0, D)) * scale
    bk = pack_b(slice(D, 2 * D))
    bv = pack_b(slice(2 * D, 3 * D))

    # Stack along a leading axis (NOT the lane axis) so each (E,E) slice keeps
    # its lane layout; indexed as wqkv_ref[0/1/2] inside the kernel.
    wqkv = jnp.stack([wq, wk, wv], axis=0)                 # (3, E, E)
    bqkv = jnp.stack([bq, bk, bv], axis=0)                 # (3, 1, E)

    full = lambda *dims: pl.BlockSpec(dims, lambda b: (0,) * len(dims))

    return pl.pallas_call(
        mha_fused_kernel,
        out_shape=jax.ShapeDtypeStruct((B, S, E), x.dtype),
        grid_spec=pltpu.PrefetchScalarGridSpec(
            num_scalar_prefetch=0,
            grid=(B,),
            in_specs=[
                pl.BlockSpec((1, S, E), lambda b: (b, 0, 0)),   # x
                full(3, E, E),                                  # Wq/Wk/Wv packed
                full(3, 1, E),                                  # bq/bk/bv packed
                full(E, E),                                     # W_out
                full(1, E),                                     # b_out
            ],
            out_specs=pl.BlockSpec((1, S, E), lambda b: (b, 0, 0)),
            scratch_shapes=[
                pltpu.VMEM((S, S), jnp.float32),   # additive causal mask
                pltpu.VMEM((S, E), jnp.float32),   # q (all heads)
                pltpu.VMEM((S, E), jnp.float32),   # k (all heads)
                pltpu.VMEM((S, E), jnp.float32),   # v (all heads)
                pltpu.VMEM((S, E), jnp.float32),   # out-projection accumulator
            ],
        ),
        compiler_params=pltpu.CompilerParams(
            dimension_semantics=("parallel",)),
    )(x, wqkv, bqkv, w_out, b_out)


# ---------------------------------------------------------------------------
# Pure-JAX reference (mirrors the PyTorch forward in eval mode)
# ---------------------------------------------------------------------------
def reference(x, w_qkv, b_qkv, w_out, b_out):
    B, S, E = x.shape
    H = w_qkv.shape[0]
    D = E // H
    mask = jnp.tril(jnp.ones((S, S), dtype=bool))
    head_outs = []
    for h in range(H):
        qkv = x @ w_qkv[h] + b_qkv[h, 0]
        q, k, v = qkv[..., :D], qkv[..., D:2 * D], qkv[..., 2 * D:]
        scores = jnp.einsum("bqd,bkd->bqk", q, k) * (D ** -0.5)
        scores = jnp.where(mask, scores, -jnp.inf)
        attn = jax.nn.softmax(scores, axis=-1)
        head_outs.append(jnp.einsum("bqk,bkd->bqd", attn, v))
    concat = jnp.concatenate(head_outs, axis=-1)
    return concat @ w_out + b_out[0]


if __name__ == "__main__":
    B = 2
    S = SEQ_LEN           # 128, fixed by the module's mask
    H = NUM_HEADS         # 6
    E = 48                # emb_dim, divisible by num_heads
    D = E // H            # 8

    key = jax.random.PRNGKey(0)
    kx, kw1, kb1, kw2, kb2 = jax.random.split(key, 5)

    x = jax.random.normal(kx, (B, S, E), dtype=jnp.float32)
    # deterministic synthetic parameters (scaled like Linear default init)
    w_qkv = jax.random.uniform(kw1, (H, E, 3 * D), jnp.float32,
                               -1.0 / E ** 0.5, 1.0 / E ** 0.5)
    b_qkv = jax.random.uniform(kb1, (H, 1, 3 * D), jnp.float32,
                               -1.0 / E ** 0.5, 1.0 / E ** 0.5)
    w_out = jax.random.uniform(kw2, (E, E), jnp.float32,
                               -1.0 / E ** 0.5, 1.0 / E ** 0.5)
    b_out = jax.random.uniform(kb2, (1, E), jnp.float32,
                               -1.0 / E ** 0.5, 1.0 / E ** 0.5)

    out = multi_head_attention(x, w_qkv, b_qkv, w_out, b_out)
    out = jax.block_until_ready(out)

    ref = reference(x, w_qkv, b_qkv, w_out, b_out)
    assert out.shape == (B, S, E)
    # f32 throughout + exact reciprocal -> tight tolerance again.
    assert jnp.allclose(out, ref, atol=1e-4, rtol=1e-4), \
        f"max err {jnp.max(jnp.abs(out - ref))}"

    print("KERNEL_OK")
</pallas_src>

<mosaic_0001>
module attributes {stable_mosaic.version = 11 : i64} {
  func.func @mha_fused_kernel(%arg0: i32, %arg1: memref<1x128x48xf32, #tpu.memory_space<vmem>>, %arg2: memref<3x48x48xf32, #tpu.memory_space<vmem>>, %arg3: memref<3x1x48xf32, #tpu.memory_space<vmem>>, %arg4: memref<48x48xf32, #tpu.memory_space<vmem>>, %arg5: memref<1x48xf32, #tpu.memory_space<vmem>>, %arg6: memref<1x128x48xf32, #tpu.memory_space<vmem>>, %arg7: memref<128x128xf32, #tpu.memory_space<vmem>>, %arg8: memref<128x48xf32, #tpu.memory_space<vmem>>, %arg9: memref<128x48xf32, #tpu.memory_space<vmem>>, %arg10: memref<128x48xf32, #tpu.memory_space<vmem>>, %arg11: memref<128x48xf32, #tpu.memory_space<vmem>>) attributes {dimension_semantics = [#tpu.dimension_semantics<parallel>], iteration_bounds = array<i64: 2>, scalar_prefetch = 0 : i64, scratch_operands = 5 : i64, tpu.core_type = #tpu.core_type<tc>, window_params = [{transform_indices = @transform_0, window_bounds = array<i64: 1, 128, 48>}, {pipeline_mode = #tpu.pipeline_mode<synchronous>, transform_indices = @transform_1, window_bounds = array<i64: 3, 48, 48>}, {pipeline_mode = #tpu.pipeline_mode<synchronous>, transform_indices = @transform_2, window_bounds = array<i64: 3, 1, 48>}, {pipeline_mode = #tpu.pipeline_mode<synchronous>, transform_indices = @transform_3, window_bounds = array<i64: 48, 48>}, {pipeline_mode = #tpu.pipeline_mode<synchronous>, transform_indices = @transform_4, window_bounds = array<i64: 1, 48>}, {transform_indices = @transform_5, window_bounds = array<i64: 1, 128, 48>}]} {
    %c0 = arith.constant 0 : index
    %c0_0 = arith.constant 0 : index
    %c0_1 = arith.constant 0 : index
    %0 = vector.load %arg1[%c0, %c0_0, %c0_1] : memref<1x128x48xf32, #tpu.memory_space<vmem>>, vector<1x128x48xf32>
    %1 = vector.shape_cast %0 : vector<1x128x48xf32> to vector<128x48xf32>
    %2 = tpu.iota {dimensions = array<i32: 0>} : vector<128x128xi32>
    %3 = tpu.iota {dimensions = array<i32: 1>} : vector<128x128xi32>
    %4 = arith.cmpi sge, %2, %3 : vector<128x128xi32>
    %cst = arith.constant 0.000000e+00 : f32
    %cst_2 = arith.constant -1.000000e+30 : f32
    %5 = vector.broadcast %cst : f32 to vector<128x128xf32>
    %6 = vector.broadcast %cst_2 : f32 to vector<128x128xf32>
    %7 = arith.select %4, %5, %6 : vector<128x128xi1>, vector<128x128xf32>
    %c0_3 = arith.constant 0 : index
    %c0_4 = arith.constant 0 : index
    %8 = vector.load %arg7[%c0_3, %c0_4] : memref<128x128xf32, #tpu.memory_space<vmem>>, vector<128x128xf32>
    tpu.vector_store %arg7[%c0_3, %c0_4], %7 {strides = array<i32>} : memref<128x128xf32, #tpu.memory_space<vmem>>, vector<128x128xf32>,
    %c0_5 = arith.constant 0 : index
    %c0_6 = arith.constant 0 : index
    %c0_7 = arith.constant 0 : index
    %9 = vector.load %arg2[%c0_5, %c0_6, %c0_7] : memref<3x48x48xf32, #tpu.memory_space<vmem>>, vector<1x48x48xf32>
    %10 = vector.shape_cast %9 : vector<1x48x48xf32> to vector<48x48xf32>
    %cst_8 = arith.constant dense<0.000000e+00> : vector<128x48xf32>
    %11 = tpu.matmul %1, %10, %cst_8 {dimension_numbers = #tpu.dot_dimension_numbers<[1], [0], [0], [1], [0, 0, 1, 1], [], []>} : vector<128x48xf32>, vector<48x48xf32>, vector<128x48xf32> -> vector<128x48xf32>
    %c0_9 = arith.constant 0 : index
    %c0_10 = arith.constant 0 : index
    %c0_11 = arith.constant 0 : index
    %12 = vector.load %arg3[%c0_9, %c0_10, %c0_11] : memref<3x1x48xf32, #tpu.memory_space<vmem>>, vector<1x1x48xf32>
    %13 = vector.shape_cast %12 : vector<1x1x48xf32> to vector<1x48xf32>
    %14 = vector.broadcast %13 : vector<1x48xf32> to vector<128x48xf32>
    %15 = arith.addf %11, %14 : vector<128x48xf32>
    %c0_12 = arith.constant 0 : index
    %c0_13 = arith.constant 0 : index
    %16 = vector.load %arg8[%c0_12, %c0_13] : memref<128x48xf32, #tpu.memory_space<vmem>>, vector<128x48xf32>
    tpu.vector_store %arg8[%c0_12, %c0_13], %15 {strides = array<i32>} : memref<128x48xf32, #tpu.memory_space<vmem>>, vector<128x48xf32>,
    %c1 = arith.constant 1 : index
    %c0_14 = arith.constant 0 : index
    %c0_15 = arith.constant 0 : index
    %17 = vector.load %arg2[%c1, %c0_14, %c0_15] : memref<3x48x48xf32, #tpu.memory_space<vmem>>, vector<1x48x48xf32>
    %18 = vector.shape_cast %17 : vector<1x48x48xf32> to vector<48x48xf32>
    %cst_16 = arith.constant dense<0.000000e+00> : vector<128x48xf32>
    %19 = tpu.matmul %1, %18, %cst_16 {dimension_numbers = #tpu.dot_dimension_numbers<[1], [0], [0], [1], [0, 0, 1, 1], [], []>} : vector<128x48xf32>, vector<48x48xf32>, vector<128x48xf32> -> vector<128x48xf32>
    %c1_17 = arith.constant 1 : index
    %c0_18 = arith.constant 0 : index
    %c0_19 = arith.constant 0 : index
    %20 = vector.load %arg3[%c1_17, %c0_18, %c0_19] : memref<3x1x48xf32, #tpu.memory_space<vmem>>, vector<1x1x48xf32>
    %21 = vector.shape_cast %20 : vector<1x1x48xf32> to vector<1x48xf32>
    %22 = vector.broadcast %21 : vector<1x48xf32> to vector<128x48xf32>
    %23 = arith.addf %19, %22 : vector<128x48xf32>
    %c0_20 = arith.constant 0 : index
    %c0_21 = arith.constant 0 : index
    %24 = vector.load %arg9[%c0_20, %c0_21] : memref<128x48xf32, #tpu.memory_space<vmem>>, vector<128x48xf32>
    tpu.vector_store %arg9[%c0_20, %c0_21], %23 {strides = array<i32>} : memref<128x48xf32, #tpu.memory_space<vmem>>, vector<128x48xf32>,
    %c2 = arith.constant 2 : index
    %c0_22 = arith.constant 0 : index
    %c0_23 = arith.constant 0 : index
    %25 = vector.load %arg2[%c2, %c0_22, %c0_23] : memref<3x48x48xf32, #tpu.memory_space<vmem>>, vector<1x48x48xf32>
    %26 = vector.shape_cast %25 : vector<1x48x48xf32> to vector<48x48xf32>
    %cst_24 = arith.constant dense<0.000000e+00> : vector<128x48xf32>
    %27 = tpu.matmul %1, %26, %cst_24 {dimension_numbers = #tpu.dot_dimension_numbers<[1], [0], [0], [1], [0, 0, 1, 1], [], []>} : vector<128x48xf32>, vector<48x48xf32>, vector<128x48xf32> -> vector<128x48xf32>
    %c2_25 = arith.constant 2 : index
    %c0_26 = arith.constant 0 : index
    %c0_27 = arith.constant 0 : index
    %28 = vector.load %arg3[%c2_25, %c0_26, %c0_27] : memref<3x1x48xf32, #tpu.memory_space<vmem>>, vector<1x1x48xf32>
    %29 = vector.shape_cast %28 : vector<1x1x48xf32> to vector<1x48xf32>
    %30 = vector.broadcast %29 : vector<1x48xf32> to vector<128x48xf32>
    %31 = arith.addf %27, %30 : vector<128x48xf32>
    %c0_28 = arith.constant 0 : index
    %c0_29 = arith.constant 0 : index
    %32 = vector.load %arg10[%c0_28, %c0_29] : memref<128x48xf32, #tpu.memory_space<vmem>>, vector<128x48xf32>
    tpu.vector_store %arg10[%c0_28, %c0_29], %31 {strides = array<i32>} : memref<128x48xf32, #tpu.memory_space<vmem>>, vector<128x48xf32>,
    %cst_30 = arith.constant 0.000000e+00 : f32
    %33 = vector.broadcast %cst_30 : f32 to vector<128x48xf32>
    %c0_31 = arith.constant 0 : index
    %c0_32 = arith.constant 0 : index
    %34 = vector.load %arg11[%c0_31, %c0_32] : memref<128x48xf32, #tpu.memory_space<vmem>>, vector<128x48xf32>
    tpu.vector_store %arg11[%c0_31, %c0_32], %33 {strides = array<i32>} : memref<128x48xf32, #tpu.memory_space<vmem>>, vector<128x48xf32>,
    %c0_33 = arith.constant 0 : index
    %c0_34 = arith.constant 0 : index
    %35 = vector.load %arg8[%c0_33, %c0_34] : memref<128x48xf32, #tpu.memory_space<vmem>>, vector<128x8xf32>
    %c0_35 = arith.constant 0 : index
    %c0_36 = arith.constant 0 : index
    %36 = vector.load %arg9[%c0_35, %c0_36] : memref<128x48xf32, #tpu.memory_space<vmem>>, vector<128x8xf32>
    %c0_37 = arith.constant 0 : index
    %c0_38 = arith.constant 0 : index
    %37 = vector.load %arg10[%c0_37, %c0_38] : memref<128x48xf32, #tpu.memory_space<vmem>>, vector<128x8xf32>
    %cst_39 = arith.constant dense<0.000000e+00> : vector<128x128xf32>
    %38 = tpu.matmul %35, %36, %cst_39 {dimension_numbers = #tpu.dot_dimension_numbers<[1], [1], [0], [0], [0, 0, 1, 0], [], []>} : vector<128x8xf32>, vector<128x8xf32>, vector<128x128xf32> -> vector<128x128xf32>
    %c0_40 = arith.constant 0 : index
    %c0_41 = arith.constant 0 : index
    %39 = vector.load %arg7[%c0_40, %c0_41] : memref<128x128xf32, #tpu.memory_space<vmem>>, vector<128x128xf32>
    %40 = arith.addf %38, %39 : vector<128x128xf32>
    %cst_42 = arith.constant dense<0xFF800000> : vector<128xf32>
    %41 = vector.multi_reduction <maximumf>, %40, %cst_42 [1] : vector<128x128xf32> to vector<128xf32>
    %42 = vector.shape_cast %41 : vector<128xf32> to vector<128x1xf32>
    %43 = vector.broadcast %42 : vector<128x1xf32> to vector<128x128xf32>
    %44 = arith.subf %40, %43 : vector<128x128xf32>
    %45 = math.exp %44 : vector<128x128xf32>
    %cst_43 = arith.constant dense<0.000000e+00> : vector<128xf32>
    %46 = vector.multi_reduction <add>, %45, %cst_43 [1] : vector<128x128xf32> to vector<128xf32>
    %47 = vector.shape_cast %46 : vector<128xf32> to vector<128x1xf32>
    %cst_44 = arith.constant dense<0.000000e+00> : vector<128x8xf32>
    %48 = tpu.matmul %45, %37, %cst_44 {dimension_numbers = #tpu.dot_dimension_numbers<[1], [0], [0], [1], [0, 0, 1, 1], [], []>} : vector<128x128xf32>, vector<128x8xf32>, vector<128x8xf32> -> vector<128x8xf32>
    %cst_45 = arith.constant 1.000000e+00 : f32
    %49 = vector.broadcast %cst_45 : f32 to vector<128x1xf32>
    %50 = arith.divf %49, %47 : vector<128x1xf32>
    %51 = vector.broadcast %50 : vector<128x1xf32> to vector<128x8xf32>
    %52 = arith.mulf %48, %51 : vector<128x8xf32>
    %c0_46 = arith.constant 0 : index
    %c0_47 = arith.constant 0 : index
    %53 = vector.load %arg11[%c0_46, %c0_47] : memref<128x48xf32, #tpu.memory_space<vmem>>, vector<128x48xf32>
    %c0_48 = arith.constant 0 : index
    %c0_49 = arith.constant 0 : index
    %54 = vector.load %arg4[%c0_48, %c0_49] : memref<48x48xf32, #tpu.memory_space<vmem>>, vector<8x48xf32>
    %cst_50 = arith.constant dense<0.000000e+00> : vector<128x48xf32>
    %55 = tpu.matmul %52, %54, %cst_50 {dimension_numbers = #tpu.dot_dimension_numbers<[1], [0], [0], [1], [0, 0, 1, 1], [], []>} : vector<128x8xf32>, vector<8x48xf32>, vector<128x48xf32> -> vector<128x48xf32>
    %56 = arith.addf %53, %55 : vector<128x48xf32>
    %c0_51 = arith.constant 0 : index
    %c0_52 = arith.constant 0 : index
    %57 = vector.load %arg11[%c0_51, %c0_52] : memref<128x48xf32, #tpu.memory_space<vmem>>, vector<128x48xf32>
    tpu.vector_store %arg11[%c0_51, %c0_52], %56 {strides = array<i32>} : memref<128x48xf32, #tpu.memory_space<vmem>>, vector<128x48xf32>,
    %c0_53 = arith.constant 0 : index
    %c8 = arith.constant 8 : index
    %58 = vector.load %arg8[%c0_53, %c8] : memref<128x48xf32, #tpu.memory_space<vmem>>, vector<128x8xf32>
    %c0_54 = arith.constant 0 : index
    %c8_55 = arith.constant 8 : index
    %59 = vector.load %arg9[%c0_54, %c8_55] : memref<128x48xf32, #tpu.memory_space<vmem>>, vector<128x8xf32>
    %c0_56 = arith.constant 0 : index
    %c8_57 = arith.constant 8 : index
    %60 = vector.load %arg10[%c0_56, %c8_57] : memref<128x48xf32, #tpu.memory_space<vmem>>, vector<128x8xf32>
    %cst_58 = arith.constant dense<0.000000e+00> : vector<128x128xf32>
    %61 = tpu.matmul %58, %59, %cst_58 {dimension_numbers = #tpu.dot_dimension_numbers<[1], [1], [0], [0], [0, 0, 1, 0], [], []>} : vector<128x8xf32>, vector<128x8xf32>, vector<128x128xf32> -> vector<128x128xf32>
    %c0_59 = arith.constant 0 : index
    %c0_60 = arith.constant 0 : index
    %62 = vector.load %arg7[%c0_59, %c0_60] : memref<128x128xf32, #tpu.memory_space<vmem>>, vector<128x128xf32>
    %63 = arith.addf %61, %62 : vector<128x128xf32>
    %cst_61 = arith.constant dense<0xFF800000> : vector<128xf32>
    %64 = vector.multi_reduction <maximumf>, %63, %cst_61 [1] : vector<128x128xf32> to vector<128xf32>
    %65 = vector.shape_cast %64 : vector<128xf32> to vector<128x1xf32>
    %66 = vector.broadcast %65 : vector<128x1xf32> to vector<128x128xf32>
    %67 = arith.subf %63, %66 : vector<128x128xf32>
    %68 = math.exp %67 : vector<128x128xf32>
    %cst_62 = arith.constant dense<0.000000e+00> : vector<128xf32>
    %69 = vector.multi_reduction <add>, %68, %cst_62 [1] : vector<128x128xf32> to vector<128xf32>
    %70 = vector.shape_cast %69 : vector<128xf32> to vector<128x1xf32>
    %cst_63 = arith.constant dense<0.000000e+00> : vector<128x8xf32>
    %71 = tpu.matmul %68, %60, %cst_63 {dimension_numbers = #tpu.dot_dimension_numbers<[1], [0], [0], [1], [0, 0, 1, 1], [], []>} : vector<128x128xf32>, vector<128x8xf32>, vector<128x8xf32> -> vector<128x8xf32>
    %cst_64 = arith.constant 1.000000e+00 : f32
    %72 = vector.broadcast %cst_64 : f32 to vector<128x1xf32>
    %73 = arith.divf %72, %70 : vector<128x1xf32>
    %74 = vector.broadcast %73 : vector<128x1xf32> to vector<128x8xf32>
    %75 = arith.mulf %71, %74 : vector<128x8xf32>
    %c0_65 = arith.constant 0 : index
    %c0_66 = arith.constant 0 : index
    %76 = vector.load %arg11[%c0_65, %c0_66] : memref<128x48xf32, #tpu.memory_space<vmem>>, vector<128x48xf32>
    %c8_67 = arith.constant 8 : index
    %c0_68 = arith.constant 0 : index
    %77 = vector.load %arg4[%c8_67, %c0_68] : memref<48x48xf32, #tpu.memory_space<vmem>>, vector<8x48xf32>
    %cst_69 = arith.constant dense<0.000000e+00> : vector<128x48xf32>
    %78 = tpu.matmul %75, %77, %cst_69 {dimension_numbers = #tpu.dot_dimension_numbers<[1], [0], [0], [1], [0, 0, 1, 1], [], []>} : vector<128x8xf32>, vector<8x48xf32>, vector<128x48xf32> -> vector<128x48xf32>
    %79 = arith.addf %76, %78 : vector<128x48xf32>
    %c0_70 = arith.constant 0 : index
    %c0_71 = arith.constant 0 : index
    %80 = vector.load %arg11[%c0_70, %c0_71] : memref<128x48xf32, #tpu.memory_space<vmem>>, vector<128x48xf32>
    tpu.vector_store %arg11[%c0_70, %c0_71], %79 {strides = array<i32>} : memref<128x48xf32, #tpu.memory_space<vmem>>, vector<128x48xf32>,
    %c0_72 = arith.constant 0 : index
    %c16 = arith.constant 16 : index
    %81 = vector.load %arg8[%c0_72, %c16] : memref<128x48xf32, #tpu.memory_space<vmem>>, vector<128x8xf32>
    %c0_73 = arith.constant 0 : index
    %c16_74 = arith.constant 16 : index
    %82 = vector.load %arg9[%c0_73, %c16_74] : memref<128x48xf32, #tpu.memory_space<vmem>>, vector<128x8xf32>
    %c0_75 = arith.constant 0 : index
    %c16_76 = arith.constant 16 : index
    %83 = vector.load %arg10[%c0_75, %c16_76] : memref<128x48xf32, #tpu.memory_space<vmem>>, vector<128x8xf32>
    %cst_77 = arith.constant dense<0.000000e+00> : vector<128x128xf32>
    %84 = tpu.matmul %81, %82, %cst_77 {dimension_numbers = #tpu.dot_dimension_numbers<[1], [1], [0], [0], [0, 0, 1, 0], [], []>} : vector<128x8xf32>, vector<128x8xf32>, vector<128x128xf32> -> vector<128x128xf32>
    %c0_78 = arith.constant 0 : index
    %c0_79 = arith.constant 0 : index
    %85 = vector.load %arg7[%c0_78, %c0_79] : memref<128x128xf32, #tpu.memory_space<vmem>>, vector<128x128xf32>
    %86 = arith.addf %84, %85 : vector<128x128xf32>
    %cst_80 = arith.constant dense<0xFF800000> : vector<128xf32>
    %87 = vector.multi_reduction <maximumf>, %86, %cst_80 [1] : vector<128x128xf32> to vector<128xf32>
    %88 = vector.shape_cast %87 : vector<128xf32> to vector<128x1xf32>
    %89 = vector.broadcast %88 : vector<128x1xf32> to vector<128x128xf32>
    %90 = arith.subf %86, %89 : vector<128x128xf32>
    %91 = math.exp %90 : vector<128x128xf32>
    %cst_81 = arith.constant dense<0.000000e+00> : vector<128xf32>
    %92 = vector.multi_reduction <add>, %91, %cst_81 [1] : vector<128x128xf32> to vector<128xf32>
    %93 = vector.shape_cast %92 : vector<128xf32> to vector<128x1xf32>
    %cst_82 = arith.constant dense<0.000000e+00> : vector<128x8xf32>
    %94 = tpu.matmul %91, %83, %cst_82 {dimension_numbers = #tpu.dot_dimension_numbers<[1], [0], [0], [1], [0, 0, 1, 1], [], []>} : vector<128x128xf32>, vector<128x8xf32>, vector<128x8xf32> -> vector<128x8xf32>
    %cst_83 = arith.constant 1.000000e+00 : f32
    %95 = vector.broadcast %cst_83 : f32 to vector<128x1xf32>
    %96 = arith.divf %95, %93 : vector<128x1xf32>
    %97 = vector.broadcast %96 : vector<128x1xf32> to vector<128x8xf32>
    %98 = arith.mulf %94, %97 : vector<128x8xf32>
    %c0_84 = arith.constant 0 : index
    %c0_85 = arith.constant 0 : index
    %99 = vector.load %arg11[%c0_84, %c0_85] : memref<128x48xf32, #tpu.memory_space<vmem>>, vector<128x48xf32>
    %c16_86 = arith.constant 16 : index
    %c0_87 = arith.constant 0 : index
    %100 = vector.load %arg4[%c16_86, %c0_87] : memref<48x48xf32, #tpu.memory_space<vmem>>, vector<8x48xf32>
    %cst_88 = arith.constant dense<0.000000e+00> : vector<128x48xf32>
    %101 = tpu.matmul %98, %100, %cst_88 {dimension_numbers = #tpu.dot_dimension_numbers<[1], [0], [0], [1], [0, 0, 1, 1], [], []>} : vector<128x8xf32>, vector<8x48xf32>, vector<128x48xf32> -> vector<128x48xf32>
    %102 = arith.addf %99, %101 : vector<128x48xf32>
    %c0_89 = arith.constant 0 : index
    %c0_90 = arith.constant 0 : index
    %103 = vector.load %arg11[%c0_89, %c0_90] : memref<128x48xf32, #tpu.memory_space<vmem>>, vector<128x48xf32>
    tpu.vector_store %arg11[%c0_89, %c0_90], %102 {strides = array<i32>} : memref<128x48xf32, #tpu.memory_space<vmem>>, vector<128x48xf32>,
    %c0_91 = arith.constant 0 : index
    %c24 = arith.constant 24 : index
    %104 = vector.load %arg8[%c0_91, %c24] : memref<128x48xf32, #tpu.memory_space<vmem>>, vector<128x8xf32>
    %c0_92 = arith.constant 0 : index
    %c24_93 = arith.constant 24 : index
    %105 = vector.load %arg9[%c0_92, %c24_93] : memref<128x48xf32, #tpu.memory_space<vmem>>, vector<128x8xf32>
    %c0_94 = arith.constant 0 : index
    %c24_95 = arith.constant 24 : index
    %106 = vector.load %arg10[%c0_94, %c24_95] : memref<128x48xf32, #tpu.memory_space<vmem>>, vector<128x8xf32>
    %cst_96 = arith.constant dense<0.000000e+00> : vector<128x128xf32>
    %107 = tpu.matmul %104, %105, %cst_96 {dimension_numbers = #tpu.dot_dimension_numbers<[1], [1], [0], [0], [0, 0, 1, 0], [], []>} : vector<128x8xf32>, vector<128x8xf32>, vector<128x128xf32> -> vector<128x128xf32>
    %c0_97 = arith.constant 0 : index
    %c0_98 = arith.constant 0 : index
    %108 = vector.load %arg7[%c0_97, %c0_98] : memref<128x128xf32, #tpu.memory_space<vmem>>, vector<128x128xf32>
    %109 = arith.addf %107, %108 : vector<128x128xf32>
    %cst_99 = arith.constant dense<0xFF800000> : vector<128xf32>
    %110 = vector.multi_reduction <maximumf>, %109, %cst_99 [1] : vector<128x128xf32> to vector<128xf32>
    %111 = vector.shape_cast %110 : vector<128xf32> to vector<128x1xf32>
    %112 = vector.broadcast %111 : vector<128x1xf32> to vector<128x128xf32>
    %113 = arith.subf %109, %112 : vector<128x128xf32>
    %114 = math.exp %113 : vector<128x128xf32>
    %cst_100 = arith.constant dense<0.000000e+00> : vector<128xf32>
    %115 = vector.multi_reduction <add>, %114, %cst_100 [1] : vector<128x128xf32> to vector<128xf32>
    %116 = vector.shape_cast %115 : vector<128xf32> to vector<128x1xf32>
    %cst_101 = arith.constant dense<0.000000e+00> : vector<128x8xf32>
    %117 = tpu.matmul %114, %106, %cst_101 {dimension_numbers = #tpu.dot_dimension_numbers<[1], [0], [0], [1], [0, 0, 1, 1], [], []>} : vector<128x128xf32>, vector<128x8xf32>, vector<128x8xf32> -> vector<128x8xf32>
    %cst_102 = arith.constant 1.000000e+00 : f32
    %118 = vector.broadcast %cst_102 : f32 to vector<128x1xf32>
    %119 = arith.divf %118, %116 : vector<128x1xf32>
    %120 = vector.broadcast %119 : vector<128x1xf32> to vector<128x8xf32>
    %121 = arith.mulf %117, %120 : vector<128x8xf32>
    %c0_103 = arith.constant 0 : index
    %c0_104 = arith.constant 0 : index
    %122 = vector.load %arg11[%c0_103, %c0_104] : memref<128x48xf32, #tpu.memory_space<vmem>>, vector<128x48xf32>
    %c24_105 = arith.constant 24 : index
    %c0_106 = arith.constant 0 : index
    %123 = vector.load %arg4[%c24_105, %c0_106] : memref<48x48xf32, #tpu.memory_space<vmem>>, vector<8x48xf32>
    %cst_107 = arith.constant dense<0.000000e+00> : vector<128x48xf32>
    %124 = tpu.matmul %121, %123, %cst_107 {dimension_numbers = #tpu.dot_dimension_numbers<[1], [0], [0], [1], [0, 0, 1, 1], [], []>} : vector<128x8xf32>, vector<8x48xf32>, vector<128x48xf32> -> vector<128x48xf32>
    %125 = arith.addf %122, %124 : vector<128x48xf32>
    %c0_108 = arith.constant 0 : index
    %c0_109 = arith.constant 0 : index
    %126 = vector.load %arg11[%c0_108, %c0_109] : memref<128x48xf32, #tpu.memory_space<vmem>>, vector<128x48xf32>
    tpu.vector_store %arg11[%c0_108, %c0_109], %125 {strides = array<i32>} : memref<128x48xf32, #tpu.memory_space<vmem>>, vector<128x48xf32>,
    %c0_110 = arith.constant 0 : index
    %c32 = arith.constant 32 : index
    %127 = vector.load %arg8[%c0_110, %c32] : memref<128x48xf32, #tpu.memory_space<vmem>>, vector<128x8xf32>
    %c0_111 = arith.constant 0 : index
    %c32_112 = arith.constant 32 : index
    %128 = vector.load %arg9[%c0_111, %c32_112] : memref<128x48xf32, #tpu.memory_space<vmem>>, vector<128x8xf32>
    %c0_113 = arith.constant 0 : index
    %c32_114 = arith.constant 32 : index
    %129 = vector.load %arg10[%c0_113, %c32_114] : memref<128x48xf32, #tpu.memory_space<vmem>>, vector<128x8xf32>
    %cst_115 = arith.constant dense<0.000000e+00> : vector<128x128xf32>
    %130 = tpu.matmul %127, %128, %cst_115 {dimension_numbers = #tpu.dot_dimension_numbers<[1], [1], [0], [0], [0, 0, 1, 0], [], []>} : vector<128x8xf32>, vector<128x8xf32>, vector<128x128xf32> -> vector<128x128xf32>
    %c0_116 = arith.constant 0 : index
    %c0_117 = arith.constant 0 : index
    %131 = vector.load %arg7[%c0_116, %c0_117] : memref<128x128xf32, #tpu.memory_space<vmem>>, vector<128x128xf32>
    %132 = arith.addf %130, %131 : vector<128x128xf32>
    %cst_118 = arith.constant dense<0xFF800000> : vector<128xf32>
    %133 = vector.multi_reduction <maximumf>, %132, %cst_118 [1] : vector<128x128xf32> to vector<128xf32>
    %134 = vector.shape_cast %133 : vector<128xf32> to vector<128x1xf32>
    %135 = vector.broadcast %134 : vector<128x1xf32> to vector<128x128xf32>
    %136 = arith.subf %132, %135 : vector<128x128xf32>
    %137 = math.exp %136 : vector<128x128xf32>
    %cst_119 = arith.constant dense<0.000000e+00> : vector<128xf32>
    %138 = vector.multi_reduction <add>, %137, %cst_119 [1] : vector<128x128xf32> to vector<128xf32>
    %139 = vector.shape_cast %138 : vector<128xf32> to vector<128x1xf32>
    %cst_120 = arith.constant dense<0.000000e+00> : vector<128x8xf32>
    %140 = tpu.matmul %137, %129, %cst_120 {dimension_numbers = #tpu.dot_dimension_numbers<[1], [0], [0], [1], [0, 0, 1, 1], [], []>} : vector<128x128xf32>, vector<128x8xf32>, vector<128x8xf32> -> vector<128x8xf32>
    %cst_121 = arith.constant 1.000000e+00 : f32
    %141 = vector.broadcast %cst_121 : f32 to vector<128x1xf32>
    %142 = arith.divf %141, %139 : vector<128x1xf32>
    %143 = vector.broadcast %142 : vector<128x1xf32> to vector<128x8xf32>
    %144 = arith.mulf %140, %143 : vector<128x8xf32>
    %c0_122 = arith.constant 0 : index
    %c0_123 = arith.constant 0 : index
    %145 = vector.load %arg11[%c0_122, %c0_123] : memref<128x48xf32, #tpu.memory_space<vmem>>, vector<128x48xf32>
    %c32_124 = arith.constant 32 : index
    %c0_125 = arith.constant 0 : index
    %146 = vector.load %arg4[%c32_124, %c0_125] : memref<48x48xf32, #tpu.memory_space<vmem>>, vector<8x48xf32>
    %cst_126 = arith.constant dense<0.000000e+00> : vector<128x48xf32>
    %147 = tpu.matmul %144, %146, %cst_126 {dimension_numbers = #tpu.dot_dimension_numbers<[1], [0], [0], [1], [0, 0, 1, 1], [], []>} : vector<128x8xf32>, vector<8x48xf32>, vector<128x48xf32> -> vector<128x48xf32>
    %148 = arith.addf %145, %147 : vector<128x48xf32>
    %c0_127 = arith.constant 0 : index
    %c0_128 = arith.constant 0 : index
    %149 = vector.load %arg11[%c0_127, %c0_128] : memref<128x48xf32, #tpu.memory_space<vmem>>, vector<128x48xf32>
    tpu.vector_store %arg11[%c0_127, %c0_128], %148 {strides = array<i32>} : memref<128x48xf32, #tpu.memory_space<vmem>>, vector<128x48xf32>,
    %c0_129 = arith.constant 0 : index
    %c40 = arith.constant 40 : index
    %150 = vector.load %arg8[%c0_129, %c40] : memref<128x48xf32, #tpu.memory_space<vmem>>, vector<128x8xf32>
    %c0_130 = arith.constant 0 : index
    %c40_131 = arith.constant 40 : index
    %151 = vector.load %arg9[%c0_130, %c40_131] : memref<128x48xf32, #tpu.memory_space<vmem>>, vector<128x8xf32>
    %c0_132 = arith.constant 0 : index
    %c40_133 = arith.constant 40 : index
    %152 = vector.load %arg10[%c0_132, %c40_133] : memref<128x48xf32, #tpu.memory_space<vmem>>, vector<128x8xf32>
    %cst_134 = arith.constant dense<0.000000e+00> : vector<128x128xf32>
    %153 = tpu.matmul %150, %151, %cst_134 {dimension_numbers = #tpu.dot_dimension_numbers<[1], [1], [0], [0], [0, 0, 1, 0], [], []>} : vector<128x8xf32>, vector<128x8xf32>, vector<128x128xf32> -> vector<128x128xf32>
    %c0_135 = arith.constant 0 : index
    %c0_136 = arith.constant 0 : index
    %154 = vector.load %arg7[%c0_135, %c0_136] : memref<128x128xf32, #tpu.memory_space<vmem>>, vector<128x128xf32>
    %155 = arith.addf %153, %154 : vector<128x128xf32>
    %cst_137 = arith.constant dense<0xFF800000> : vector<128xf32>
    %156 = vector.multi_reduction <maximumf>, %155, %cst_137 [1] : vector<128x128xf32> to vector<128xf32>
    %157 = vector.shape_cast %156 : vector<128xf32> to vector<128x1xf32>
    %158 = vector.broadcast %157 : vector<128x1xf32> to vector<128x128xf32>
    %159 = arith.subf %155, %158 : vector<128x128xf32>
    %160 = math.exp %159 : vector<128x128xf32>
    %cst_138 = arith.constant dense<0.000000e+00> : vector<128xf32>
    %161 = vector.multi_reduction <add>, %160, %cst_138 [1] : vector<128x128xf32> to vector<128xf32>
    %162 = vector.shape_cast %161 : vector<128xf32> to vector<128x1xf32>
    %cst_139 = arith.constant dense<0.000000e+00> : vector<128x8xf32>
    %163 = tpu.matmul %160, %152, %cst_139 {dimension_numbers = #tpu.dot_dimension_numbers<[1], [0], [0], [1], [0, 0, 1, 1], [], []>} : vector<128x128xf32>, vector<128x8xf32>, vector<128x8xf32> -> vector<128x8xf32>
    %cst_140 = arith.constant 1.000000e+00 : f32
    %164 = vector.broadcast %cst_140 : f32 to vector<128x1xf32>
    %165 = arith.divf %164, %162 : vector<128x1xf32>
    %166 = vector.broadcast %165 : vector<128x1xf32> to vector<128x8xf32>
    %167 = arith.mulf %163, %166 : vector<128x8xf32>
    %c0_141 = arith.constant 0 : index
    %c0_142 = arith.constant 0 : index
    %168 = vector.load %arg11[%c0_141, %c0_142] : memref<128x48xf32, #tpu.memory_space<vmem>>, vector<128x48xf32>
    %c40_143 = arith.constant 40 : index
    %c0_144 = arith.constant 0 : index
    %169 = vector.load %arg4[%c40_143, %c0_144] : memref<48x48xf32, #tpu.memory_space<vmem>>, vector<8x48xf32>
    %cst_145 = arith.constant dense<0.000000e+00> : vector<128x48xf32>
    %170 = tpu.matmul %167, %169, %cst_145 {dimension_numbers = #tpu.dot_dimension_numbers<[1], [0], [0], [1], [0, 0, 1, 1], [], []>} : vector<128x8xf32>, vector<8x48xf32>, vector<128x48xf32> -> vector<128x48xf32>
    %171 = arith.addf %168, %170 : vector<128x48xf32>
    %c0_146 = arith.constant 0 : index
    %c0_147 = arith.constant 0 : index
    %172 = vector.load %arg11[%c0_146, %c0_147] : memref<128x48xf32, #tpu.memory_space<vmem>>, vector<128x48xf32>
    tpu.vector_store %arg11[%c0_146, %c0_147], %171 {strides = array<i32>} : memref<128x48xf32, #tpu.memory_space<vmem>>, vector<128x48xf32>,
    %c0_148 = arith.constant 0 : index
    %c0_149 = arith.constant 0 : index
    %173 = vector.load %arg11[%c0_148, %c0_149] : memref<128x48xf32, #tpu.memory_space<vmem>>, vector<128x48xf32>
    %c0_150 = arith.constant 0 : index
    %c0_151 = arith.constant 0 : index
    %174 = vector.load %arg5[%c0_150, %c0_151] : memref<1x48xf32, #tpu.memory_space<vmem>>, vector<1x48xf32>
    %175 = vector.broadcast %174 : vector<1x48xf32> to vector<128x48xf32>
    %176 = arith.addf %173, %175 : vector<128x48xf32>
    %c0_152 = arith.constant 0 : index
    %c0_153 = arith.constant 0 : index
    %c0_154 = arith.constant 0 : index
    %177 = vector.load %arg6[%c0_152, %c0_153, %c0_154] : memref<1x128x48xf32, #tpu.memory_space<vmem>>, vector<1x128x48xf32>
    %178 = vector.shape_cast %177 : vector<1x128x48xf32> to vector<128x48xf32>
    %179 = vector.shape_cast %176 : vector<128x48xf32> to vector<1x128x48xf32>
    tpu.vector_store %arg6[%c0_152, %c0_153, %c0_154], %179 {strides = array<i32>} : memref<1x128x48xf32, #tpu.memory_space<vmem>>, vector<1x128x48xf32>,
    return
  }
  func.func @transform_0(%arg0: i32) -> (i32, i32, i32) {
    %c0_i32 = arith.constant 0 : i32
    %c0_i32_0 = arith.constant 0 : i32
    %c0_i32_1 = arith.constant 0 : i32
    return %arg0, %c0_i32, %c0_i32_0 : i32, i32, i32
  }
  func.func @transform_1(%arg0: i32) -> (i32, i32, i32) {
    %c0_i32 = arith.constant 0 : i32
    %c0_i32_0 = arith.constant 0 : i32
    %c0_i32_1 = arith.constant 0 : i32
    %c0_i32_2 = arith.constant 0 : i32
    return %c0_i32, %c0_i32_0, %c0_i32_1 : i32, i32, i32
  }
  func.func @transform_2(%arg0: i32) -> (i32, i32, i32) {
    %c0_i32 = arith.constant 0 : i32
    %c0_i32_0 = arith.constant 0 : i32
    %c0_i32_1 = arith.constant 0 : i32
    %c0_i32_2 = arith.constant 0 : i32
    return %c0_i32, %c0_i32_0, %c0_i32_1 : i32, i32, i32
  }
  func.func @transform_3(%arg0: i32) -> (i32, i32) {
    %c0_i32 = arith.constant 0 : i32
    %c0_i32_0 = arith.constant 0 : i32
    %c0_i32_1 = arith.constant 0 : i32
    return %c0_i32, %c0_i32_0 : i32, i32
  }
  func.func @transform_4(%arg0: i32) -> (i32, i32) {
    %c0_i32 = arith.constant 0 : i32
    %c0_i32_0 = arith.constant 0 : i32
    %c0_i32_1 = arith.constant 0 : i32
    return %c0_i32, %c0_i32_0 : i32, i32
  }
  func.func @transform_5(%arg0: i32) -> (i32, i32, i32) {
    %c0_i32 = arith.constant 0 : i32
    %c0_i32_0 = arith.constant 0 : i32
    %c0_i32_1 = arith.constant 0 : i32
    return %arg0, %c0_i32, %c0_i32_0 : i32, i32, i32
  }
}

</mosaic_0001>

<llo_original>
// kernel: tpu_custom_call.1
$region0: #{tpu_custom_call.1}
  #allocation0 [shape = 'u32[]', space=smem, size = 0x4, offset = 0x4, fixed_abs, tag = 'smem constant byte address 0x4 - core index']
  #allocation1 [shape = 'u32[72,128]{1,0:T(1,128)}', space=vmem, size = 0x9000, scoped, tag = 'internal scratch']
  #allocation2 [shape = 'f32[128,128]{1,0:T(8,128)}', space=vmem, size = 0x10000, scoped, tag = 'scratch operand']
  #allocation3 [shape = 'f32[128,48]{1,0:T(8,128)}', space=vmem, size = 0x10000, scoped, tag = 'scratch operand']
  #allocation4 [shape = 'f32[128,48]{1,0:T(8,128)}', space=vmem, size = 0x10000, scoped, tag = 'scratch operand']
  #allocation5 [shape = 'f32[128,48]{1,0:T(8,128)}', space=vmem, size = 0x10000, scoped, tag = 'scratch operand']
  #allocation6 [shape = 'f32[128,48]{1,0:T(8,128)}', space=vmem, size = 0x10000, scoped, tag = 'scratch operand']
  %s0 = inlined_call_operand.vmem [shape: f32[2,128,48], index: 0, kind: input, shape index: {}]
  %s1 = inlined_call_operand.vmem [shape: f32[3,48,48], index: 1, kind: input, shape index: {}]
  %s2 = inlined_call_operand.vmem [shape: f32[3,1,48], index: 2, kind: input, shape index: {}]
  %s3 = inlined_call_operand.vmem [shape: f32[48,48], index: 3, kind: input, shape index: {}]
  %s4 = inlined_call_operand.vmem [shape: f32[1,48], index: 4, kind: input, shape index: {}]
  %s5 = inlined_call_operand.vmem [shape: f32[2,128,48], index: 5, kind: output, shape index: {}]
  %s6 = sld [smem:[#allocation0]]
  $region53: #{tpu_custom_call.1} parent=0
    _
  %s8 = ssub.s32 1, %s6
  %s9 = scalar_select 0, %s8, %s6
  loop: start=0, step=1, limit=4
  $region2: #{tpu_custom_call.1} parent=0 // loop_pre_header
    _
  $region3: #{tpu_custom_call.1} parent=0 // loop_header
    %s11 = sphi 0, %s15
    %p12 = scmp.ge.s32.totalorder %s11, 4
    %s21 = sphi 0, %s23
    %s24 = sphi 0, %s21
    %s25 = sphi 0, %s24
    %s41 = sphi 0, %s25
    %s45 = sphi 0, %s45
    %s47 = sphi 0, %s45
    %s48 = sphi 0, %s47
    %s62 = sphi 0, %s48
    %s66 = sphi 0, %s66
    %s68 = sphi 0, %s66
    %s69 = sphi 0, %s68
    %s83 = sphi 0, %s69
    %s87 = sphi 0, %s87
    %s89 = sphi 0, %s87
    %s90 = sphi 0, %s89
    %s104 = sphi 0, %s90
    %s108 = sphi 0, %s108
    %s110 = sphi 0, %s108
    %s111 = sphi 0, %s110
    %s125 = sphi 0, %s111
    %s131 = sphi 0, %s133
    %s134 = sphi 0, %s131
    %s135 = sphi 0, %s134
    %s151 = sphi 0, %s135
  $region4: #{tpu_custom_call.1} parent=0 // loop_header_branch
    %14 = sbr.rel (%p12) target = $region8
  $region5: #{tpu_custom_call.1} parent=0 // loop_body
    %s16 = ssub.s32 %s11, 1
    %s17 = ssub.s32 %s11, 2
    %s18 = sadd.s32 %s11, 1
    %s19 = ssub.s32 %s11, %s18
    %p20 = scmp.eq.s32.totalorder %s19, 0
    %s22 = sadd.s32 %s21, 1
    %s23 = scalar_select %p20, %s21, %s22
    %p26 = pneg %p20
    %p27 = scmp.eq.s32.totalorder %s11, 1
    %p28 = por %p26, %p27
    %p29 = scmp.ne.s32.totalorder %s21, %s24
    %p30 = scmp.eq.s32.totalorder %s11, 0
    %p31 = por %p29, %p30
    %p32 = scmp.ne.s32.totalorder %s21, %s24
    %p33 = scmp.eq.s32.totalorder %s16, 1
    %p34 = por %p32, %p33
    %p35 = scmp.ne.s32.totalorder %s24, %s25
    %p36 = scmp.eq.s32.totalorder %s16, 0
    %p37 = por %p35, %p36
    %p38 = scmp.ne.s32.totalorder %s24, %s25
    %p39 = scmp.eq.s32.totalorder %s17, 1
    %p40 = por %p38, %p39
    %p42 = scmp.ne.s32.totalorder %s25, %s41
    %p43 = scmp.eq.s32.totalorder %s17, 0
    %p44 = por %p42, %p43
    %s46 = sadd.s32 %s45, 1
    %p49 = scmp.eq.s32.totalorder %s11, 1
    %p50 = scmp.ne.s32.totalorder %s45, %s47
    %p51 = scmp.eq.s32.totalorder %s11, 0
    %p52 = por %p50, %p51
    %p53 = scmp.ne.s32.totalorder %s45, %s47
    %p54 = scmp.eq.s32.totalorder %s16, 1
    %p55 = por %p53, %p54
    %p56 = scmp.ne.s32.totalorder %s47, %s48
    %p57 = scmp.eq.s32.totalorder %s16, 0
    %p58 = por %p56, %p57
    %p59 = scmp.ne.s32.totalorder %s47, %s48
    %p60 = scmp.eq.s32.totalorder %s17, 1
    %p61 = por %p59, %p60
    %p63 = scmp.ne.s32.totalorder %s48, %s62
    %p64 = scmp.eq.s32.totalorder %s17, 0
    %p65 = por %p63, %p64
    %s67 = sadd.s32 %s66, 1
    %p70 = scmp.eq.s32.totalorder %s11, 1
    %p71 = scmp.ne.s32.totalorder %s66, %s68
    %p72 = scmp.eq.s32.totalorder %s11, 0
    %p73 = por %p71, %p72
    %p74 = scmp.ne.s32.totalorder %s66, %s68
    %p75 = scmp.eq.s32.totalorder %s16, 1
    %p76 = por %p74, %p75
    %p77 = scmp.ne.s32.totalorder %s68, %s69
    %p78 = scmp.eq.s32.totalorder %s16, 0
    %p79 = por %p77, %p78
    %p80 = scmp.ne.s32.totalorder %s68, %s69
    %p81 = scmp.eq.s32.totalorder %s17, 1
    %p82 = por %p80, %p81
    %p84 = scmp.ne.s32.totalorder %s69, %s83
    %p85 = scmp.eq.s32.totalorder %s17, 0
    %p86 = por %p84, %p85
    %s88 = sadd.s32 %s87, 1
    %p91 = scmp.eq.s32.totalorder %s11, 1
    %p92 = scmp.ne.s32.totalorder %s87, %s89
    %p93 = scmp.eq.s32.totalorder %s11, 0
    %p94 = por %p92, %p93
    %p95 = scmp.ne.s32.totalorder %s87, %s89
    %p96 = scmp.eq.s32.totalorder %s16, 1
    %p97 = por %p95, %p96
    %p98 = scmp.ne.s32.totalorder %s89, %s90
    %p99 = scmp.eq.s32.totalorder %s16, 0
    %p100 = por %p98, %p99
    %p101 = scmp.ne.s32.totalorder %s89, %s90
    %p102 = scmp.eq.s32.totalorder %s17, 1
    %p103 = por %p101, %p102
    %p105 = scmp.ne.s32.totalorder %s90, %s104
    %p106 = scmp.eq.s32.totalorder %s17, 0
    %p107 = por %p105, %p106
    %s109 = sadd.s32 %s108, 1
    %p112 = scmp.eq.s32.totalorder %s11, 1
    %p113 = scmp.ne.s32.totalorder %s108, %s110
    %p114 = scmp.eq.s32.totalorder %s11, 0
    %p115 = por %p113, %p114
    %p116 = scmp.ne.s32.totalorder %s108, %s110
    %p117 = scmp.eq.s32.totalorder %s16, 1
    %p118 = por %p116, %p117
    %p119 = scmp.ne.s32.totalorder %s110, %s111
    %p120 = scmp.eq.s32.totalorder %s16, 0
    %p121 = por %p119, %p120
    %p122 = scmp.ne.s32.totalorder %s110, %s111
    %p123 = scmp.eq.s32.totalorder %s17, 1
    %p124 = por %p122, %p123
    %p126 = scmp.ne.s32.totalorder %s111, %s125
    %p127 = scmp.eq.s32.totalorder %s17, 0
    %p128 = por %p126, %p127
    %s129 = ssub.s32 %s11, %s18
    %p130 = scmp.eq.s32.totalorder %s129, 0
    %s132 = sadd.s32 %s131, 1
    %s133 = scalar_select %p130, %s131, %s132
    %p136 = pneg %p130
    %p137 = scmp.eq.s32.totalorder %s11, 1
    %p138 = por %p136, %p137
    %p139 = scmp.ne.s32.totalorder %s131, %s134
    %p140 = scmp.eq.s32.totalorder %s11, 0
    %p141 = por %p139, %p140
    %p142 = scmp.ne.s32.totalorder %s131, %s134
    %p143 = scmp.eq.s32.totalorder %s16, 1
    %p144 = por %p142, %p143
    %p145 = scmp.ne.s32.totalorder %s134, %s135
    %p146 = scmp.eq.s32.totalorder %s16, 0
    %p147 = por %p145, %p146
    %p148 = scmp.ne.s32.totalorder %s134, %s135
    %p149 = scmp.eq.s32.totalorder %s17, 1
    %p150 = por %p148, %p149
    %p152 = scmp.ne.s32.totalorder %s135, %s151
    %p153 = scmp.eq.s32.totalorder %s17, 0
    %p154 = por %p152, %p153
    %p155 = scmp.le.s32.totalorder 1, %s11
    %p156 = scmp.lt.s32.totalorder %s11, 3
    %p157 = pnand %p155, %p156
    %p158 = pneg %p157
    // Predicated region
    $region9: #{tpu_custom_call.1} parent=5 // pred_check
      _
    $region10: #{tpu_custom_call.1} parent=5 // pred_check_branch
      %160 = sbr.rel (%p157) target = $region12
    $region11: #{tpu_custom_call.1} parent=5 // pred_region
      %s161 = ssub.s32 %s11, 1
      // Predicated region
      $region13: #{tpu_custom_call.1} parent=11 // pred_check
        %p162 = pneg %p58
      $region14: #{tpu_custom_call.1} parent=11 // pred_check_branch
        %164 = sbr.rel (%p162) target = $region16
      $region15: #{tpu_custom_call.1} parent=11 // pred_region
        _
      $region16: #{tpu_custom_call.1} parent=11 // pred_fallthru
        _
      // Predicated region
      $region17: #{tpu_custom_call.1} parent=11 // pred_check
        %p165 = pneg %p79
      $region18: #{tpu_custom_call.1} parent=11 // pred_check_branch
        %167 = sbr.rel (%p165) target = $region20
      $region19: #{tpu_custom_call.1} parent=11 // pred_region
        _
      $region20: #{tpu_custom_call.1} parent=11 // pred_fallthru
        _
      // Predicated region
      $region21: #{tpu_custom_call.1} parent=11 // pred_check
        %p168 = pneg %p100
      $region22: #{tpu_custom_call.1} parent=11 // pred_check_branch
        %170 = sbr.rel (%p168) target = $region24
      $region23: #{tpu_custom_call.1} parent=11 // pred_region
        _
      $region24: #{tpu_custom_call.1} parent=11 // pred_fallthru
        _
      // Predicated region
      $region25: #{tpu_custom_call.1} parent=11 // pred_check
        %p171 = pneg %p121
      $region26: #{tpu_custom_call.1} parent=11 // pred_check_branch
        %173 = sbr.rel (%p171) target = $region28
      $region27: #{tpu_custom_call.1} parent=11 // pred_region
        _
      $region28: #{tpu_custom_call.1} parent=11 // pred_fallthru
        _
    $region12: #{tpu_custom_call.1} parent=5 // pred_fallthru
      _
    %p174 = scmp.lt.s32.totalorder %s11, 2
    // Predicated region
    $region29: #{tpu_custom_call.1} parent=5 // pred_check
      %p175 = pneg %p174
    $region30: #{tpu_custom_call.1} parent=5 // pred_check_branch
      %177 = sbr.rel (%p175) target = $region32
    $region31: #{tpu_custom_call.1} parent=5 // pred_region
      // Predicated region
      $region33: #{tpu_custom_call.1} parent=31 // pred_check
        %p178 = pneg %p31
      $region34: #{tpu_custom_call.1} parent=31 // pred_check_branch
        %180 = sbr.rel (%p178) target = $region36
      $region35: #{tpu_custom_call.1} parent=31 // pred_region
        %p181 = scmp.lt.s32.totalorder %s11, 1
        %s182 = scalar_select %p181, %s11, 1
        %s183 = smul.addr %s182, 16
        %s184 = smul.addr %s183, 8
        %s185 = scalar_lea.vmem %s0, %s184
      $region36: #{tpu_custom_call.1} parent=31 // pred_fallthru
        _
    $region32: #{tpu_custom_call.1} parent=5 // pred_fallthru
      _
    %p186 = scmp.le.s32.totalorder 1, %s11
    %p187 = scmp.lt.s32.totalorder %s11, 3
    %p188 = pnand %p186, %p187
    %p189 = pneg %p188
    // Predicated region
    $region37: #{tpu_custom_call.1} parent=5 // pred_check
      _
    $region38: #{tpu_custom_call.1} parent=5 // pred_check_branch
      %191 = sbr.rel (%p188) target = $region40
    $region39: #{tpu_custom_call.1} parent=5 // pred_region
      %s192 = ssub.s32 %s11, 1
      %p193 = scmp.lt.s32.totalorder %s16, 1
      %s194 = scalar_select %p193, %s16, 1
      %s195 = smul.addr %s194, 16
      %s196 = smul.addr %s195, 8
      %s197 = scalar_lea.vmem %s0, %s196
      %p198 = pneg %p37
      %p199 = pneg %p34
      %p200 = pneg %p58
      %p201 = pneg %p55
      %p202 = pneg %p79
      %p203 = pneg %p76
      %p204 = pneg %p100
      %p205 = pneg %p97
      %p206 = pneg %p121
      %p207 = pneg %p118
      %p208 = pneg %p147
      %p209 = pneg %p144
      %p210 = scmp.lt.s32.totalorder %s16, 1
      %s211 = scalar_select %p210, %s16, 1
      %s212 = smul.addr %s211, 16
      %s213 = smul.addr %s212, 8
      %s214 = scalar_lea.vmem %s5, %s213
      %p215 = scmp.lt.s32.totalorder %s16, 1
      %s216 = scalar_select %p215, %s16, 1
      %s217 = smul.addr %s216, 16
      %s218 = smul.addr %s217, 8
      %s219 = scalar_lea.vmem %s0, %s218
      %p220 = scmp.lt.s32.totalorder %s16, 1
      %s221 = scalar_select %p220, %s16, 1
      %s222 = smul.addr %s221, 16
      %s223 = smul.addr %s222, 8
      %s224 = scalar_lea.vmem %s5, %s223
      %v225 = vld [vmem:[%s219] sm:$0xff]
      %v226 = vld [vmem:[%s219 + $0x8] sm:$0xff]
      %v227 = vld [vmem:[%s219 + $0x10] sm:$0xff]
      %v228 = vld [vmem:[%s219 + $0x18] sm:$0xff]
      %v229 = vld [vmem:[%s219 + $0x20] sm:$0xff]
      %v230 = vld [vmem:[%s219 + $0x28] sm:$0xff]
      %v231 = vld [vmem:[%s219 + $0x30] sm:$0xff]
      %v232 = vld [vmem:[%s219 + $0x38] sm:$0xff]
      %v233 = vld [vmem:[%s219 + $0x40] sm:$0xff]
      %v234 = vld [vmem:[%s219 + $0x48] sm:$0xff]
      %v235 = vld [vmem:[%s219 + $0x50] sm:$0xff]
      %v236 = vld [vmem:[%s219 + $0x58] sm:$0xff]
      %v237 = vld [vmem:[%s219 + $0x60] sm:$0xff]
      %v238 = vld [vmem:[%s219 + $0x68] sm:$0xff]
      %v239 = vld [vmem:[%s219 + $0x70] sm:$0xff]
      %v240 = vld [vmem:[%s219 + $0x78] sm:$0xff]
      %v241 = vlaneseq
      %v242 = vshrl.u32 %v241, 7
      %v243 = vadd.s32 %v242, 8
      %v244 = vadd.s32 %v242, 16
      %v245 = vadd.s32 %v242, 24
      %v246 = vadd.s32 %v242, 32
      %v247 = vadd.s32 %v242, 40
      %v248 = vadd.s32 %v242, 48
      %v249 = vadd.s32 %v242, 56
      %v250 = vadd.s32 %v242, 64
      %v251 = vadd.s32 %v242, 72
      %v252 = vadd.s32 %v242, 80
      %v253 = vadd.s32 %v242, 88
      %v254 = vadd.s32 %v242, 96
      %v255 = vadd.s32 %v242, 104
      %v256 = vadd.s32 %v242, 112
      %v257 = vadd.s32 %v242, 120
      %v258 = vlaneseq
      %v259 = vand.u32 %v258, 127
      %vm260 = vcmp.ge.s32.totalorder %v242, %v259
      %vm261 = vcmp.ge.s32.totalorder %v243, %v259
      %vm262 = vcmp.ge.s32.totalorder %v244, %v259
      %vm263 = vcmp.ge.s32.totalorder %v245, %v259
      %vm264 = vcmp.ge.s32.totalorder %v246, %v259
      %vm265 = vcmp.ge.s32.totalorder %v247, %v259
      %vm266 = vcmp.ge.s32.totalorder %v248, %v259
      %vm267 = vcmp.ge.s32.totalorder %v249, %v259
      %vm268 = vcmp.ge.s32.totalorder %v250, %v259
      %vm269 = vcmp.ge.s32.totalorder %v251, %v259
      %vm270 = vcmp.ge.s32.totalorder %v252, %v259
      %vm271 = vcmp.ge.s32.totalorder %v253, %v259
      %vm272 = vcmp.ge.s32.totalorder %v254, %v259
      %vm273 = vcmp.ge.s32.totalorder %v255, %v259
      %vm274 = vcmp.ge.s32.totalorder %v256, %v259
      %vm275 = vcmp.ge.s32.totalorder %v257, %v259
      %v276 = vsel %vm260, 0.0, -1e+30
      %v277 = vsel %vm261, 0.0, -1e+30
      %v278 = vsel %vm262, 0.0, -1e+30
      %v279 = vsel %vm263, 0.0, -1e+30
      %v280 = vsel %vm264, 0.0, -1e+30
      %v281 = vsel %vm265, 0.0, -1e+30
      %v282 = vsel %vm266, 0.0, -1e+30
      %v283 = vsel %vm267, 0.0, -1e+30
      %v284 = vsel %vm268, 0.0, -1e+30
      %v285 = vsel %vm269, 0.0, -1e+30
      %v286 = vsel %vm270, 0.0, -1e+30
      %v287 = vsel %vm271, 0.0, -1e+30
      %v288 = vsel %vm272, 0.0, -1e+30
      %v289 = vsel %vm273, 0.0, -1e+30
      %v290 = vsel %vm274, 0.0, -1e+30
      %v291 = vsel %vm275, 0.0, -1e+30
      %292 = vst [vmem:[#allocation2] sm:$0xff] %v276
      %293 = vst [vmem:[#allocation2 + $0x8] sm:$0xff] %v277
      %294 = vst [vmem:[#allocation2 + $0x10] sm:$0xff] %v278
      %295 = vst [vmem:[#allocation2 + $0x18] sm:$0xff] %v279
      %296 = vst [vmem:[#allocation2 + $0x20] sm:$0xff] %v280
      %297 = vst [vmem:[#allocation2 + $0x28] sm:$0xff] %v281
      %298 = vst [vmem:[#allocation2 + $0x30] sm:$0xff] %v282
      %299 = vst [vmem:[#allocation2 + $0x38] sm:$0xff] %v283
      %300 = vst [vmem:[#allocation2 + $0x40] sm:$0xff] %v284
      %301 = vst [vmem:[#allocation2 + $0x48] sm:$0xff] %v285
      %302 = vst [vmem:[#allocation2 + $0x50] sm:$0xff] %v286
      %303 = vst [vmem:[#allocation2 + $0x58] sm:$0xff] %v287
      %304 = vst [vmem:[#allocation2 + $0x60] sm:$0xff] %v288
      %305 = vst [vmem:[#allocation2 + $0x68] sm:$0xff] %v289
      %306 = vst [vmem:[#allocation2 + $0x70] sm:$0xff] %v290
      %307 = vst [vmem:[#allocation2 + $0x78] sm:$0xff] %v291
      %v308 = vld [vmem:[%s1] sm:$0xff]
      %v309 = vld [vmem:[%s1 + $0x8] sm:$0xff]
      %v310 = vld [vmem:[%s1 + $0x10] sm:$0xff]
      %v311 = vld [vmem:[%s1 + $0x18] sm:$0xff]
      %v312 = vld [vmem:[%s1 + $0x20] sm:$0xff]
      %v313 = vld [vmem:[%s1 + $0x28] sm:$0xff]
      %v314 = vld [vmem:[%s2] sm:$0x1]
      %v316 = vperm.slane %v314, 0
      %vm318 = vcmask 392192
      %v320 = vsel %vm318, %v225, 0
      %v323 = vsel %vm318, %v226, 0
      %v326 = vsel %vm318, %v227, 0
      %v329 = vsel %vm318, %v228, 0
      %v332 = vsel %vm318, %v229, 0
      %v335 = vsel %vm318, %v230, 0
      %v338 = vsel %vm318, %v231, 0
      %v341 = vsel %vm318, %v232, 0
      %v344 = vsel %vm318, %v233, 0
      %v347 = vsel %vm318, %v234, 0
      %v350 = vsel %vm318, %v235, 0
      %v353 = vsel %vm318, %v236, 0
      %v356 = vsel %vm318, %v237, 0
      %v359 = vsel %vm318, %v238, 0
      %v362 = vsel %vm318, %v239, 0
      %v365 = vsel %vm318, %v240, 0
      %367 = vmatpush.msra.mxu0 0.0
      %368 = vmatpush.msra.mxu0 0.0
      %369 = vmatpush.msra.mxu0 0.0
      %370 = vmatpush.msra.mxu0 0.0
      %371 = vmatpush.msra.mxu0 0.0
      %372 = vmatpush.msra.mxu0 0.0
      %373 = vmatpush.msra.mxu0 0.0
      %374 = vmatpush.msra.mxu0 0.0
      %375 = vmatpush.msra.mxu0 0.0
      %376 = vmatpush.msra.mxu0 0.0
      %377 = vmatpush.msra.mxu0 %v313
      %378 = vmatpush.msra.mxu0 %v312
      %379 = vmatpush.msra.mxu0 %v311
      %380 = vmatpush.msra.mxu0 %v310
      %381 = vmatpush.msra.mxu0 %v309
      %382 = vmatpush.msra.mxu0 %v308
      %383 = vmatmul.f32.gmra.mxu0 %v320
      %v384 = vpop.f32.mrf.mxu0
      %v385 = vadd.f32 %v316, %v384
      %386 = vmatmul.f32.gmra.mxu0 %v323
      %v387 = vpop.f32.mrf.mxu0
      %v388 = vadd.f32 %v316, %v387
      %389 = vmatmul.f32.gmra.mxu0 %v326
      %v390 = vpop.f32.mrf.mxu0
      %v391 = vadd.f32 %v316, %v390
      %392 = vmatmul.f32.gmra.mxu0 %v329
      %v393 = vpop.f32.mrf.mxu0
      %v394 = vadd.f32 %v316, %v393
      %395 = vmatmul.f32.gmra.mxu0 %v332
      %v396 = vpop.f32.mrf.mxu0
      %v397 = vadd.f32 %v316, %v396
      %398 = vmatmul.f32.gmra.mxu0 %v335
      %v399 = vpop.f32.mrf.mxu0
      %v400 = vadd.f32 %v316, %v399
      %401 = vmatmul.f32.gmra.mxu0 %v338
      %v402 = vpop.f32.mrf.mxu0
      %v403 = vadd.f32 %v316, %v402
      %404 = vmatmul.f32.gmra.mxu0 %v341
      %v405 = vpop.f32.mrf.mxu0
      %v406 = vadd.f32 %v316, %v405
      %407 = vmatmul.f32.gmra.mxu0 %v344
      %v408 = vpop.f32.mrf.mxu0
      %v409 = vadd.f32 %v316, %v408
      %410 = vmatmul.f32.gmra.mxu0 %v347
      %v411 = vpop.f32.mrf.mxu0
      %v412 = vadd.f32 %v316, %v411
      %413 = vmatmul.f32.gmra.mxu0 %v350
      %v414 = vpop.f32.mrf.mxu0
      %v415 = vadd.f32 %v316, %v414
      %416 = vmatmul.f32.gmra.mxu0 %v353
      %v417 = vpop.f32.mrf.mxu0
      %v418 = vadd.f32 %v316, %v417
      %419 = vmatmul.f32.gmra.mxu0 %v356
      %v420 = vpop.f32.mrf.mxu0
      %v421 = vadd.f32 %v316, %v420
      %422 = vmatmul.f32.gmra.mxu0 %v359
      %v423 = vpop.f32.mrf.mxu0
      %v424 = vadd.f32 %v316, %v423
      %425 = vmatmul.f32.gmra.mxu0 %v362
      %v426 = vpop.f32.mrf.mxu0
      %v427 = vadd.f32 %v316, %v426
      %428 = vmatmul.f32.gmra.mxu0 %v365
      %v429 = vpop.f32.mrf.mxu0
      %v430 = vadd.f32 %v316, %v429
      %431 = vdwg.mxu0
      %432 = vst.msk [vmem:[#allocation3] sm:$0xff] %vm318, %v385
      %433 = vst.msk [vmem:[#allocation3 + $0x8] sm:$0xff] %vm318, %v388
      %434 = vst.msk [vmem:[#allocation3 + $0x10] sm:$0xff] %vm318, %v391
      %435 = vst.msk [vmem:[#allocation3 + $0x18] sm:$0xff] %vm318, %v394
      %436 = vst.msk [vmem:[#allocation3 + $0x20] sm:$0xff] %vm318, %v397
      %437 = vst.msk [vmem:[#allocation3 + $0x28] sm:$0xff] %vm318, %v400
      %438 = vst.msk [vmem:[#allocation3 + $0x30] sm:$0xff] %vm318, %v403
      %439 = vst.msk [vmem:[#allocation3 + $0x38] sm:$0xff] %vm318, %v406
      %440 = vst.msk [vmem:[#allocation3 + $0x40] sm:$0xff] %vm318, %v409
      %441 = vst.msk [vmem:[#allocation3 + $0x48] sm:$0xff] %vm318, %v412
      %442 = vst.msk [vmem:[#allocation3 + $0x50] sm:$0xff] %vm318, %v415
      %443 = vst.msk [vmem:[#allocation3 + $0x58] sm:$0xff] %vm318, %v418
      %444 = vst.msk [vmem:[#allocation3 + $0x60] sm:$0xff] %vm318, %v421
      %445 = vst.msk [vmem:[#allocation3 + $0x68] sm:$0xff] %vm318, %v424
      %446 = vst.msk [vmem:[#allocation3 + $0x70] sm:$0xff] %vm318, %v427
      %447 = vst.msk [vmem:[#allocation3 + $0x78] sm:$0xff] %vm318, %v430
      %s448 = scalar_lea.vmem %s1, 48
      %v449 = vld [vmem:[%s448] sm:$0xff]
      %v450 = vld [vmem:[%s448 + $0x8] sm:$0xff]
      %v451 = vld [vmem:[%s448 + $0x10] sm:$0xff]
      %v452 = vld [vmem:[%s448 + $0x18] sm:$0xff]
      %v453 = vld [vmem:[%s448 + $0x20] sm:$0xff]
      %v454 = vld [vmem:[%s448 + $0x28] sm:$0xff]
      %s455 = scalar_lea.vmem %s2, 1
      %v456 = vld [vmem:[%s455] sm:$0x1]
      %v458 = vperm.slane %v456, 0
      %460 = vmatpush.msra.mxu0 0.0
      %461 = vmatpush.msra.mxu0 0.0
      %462 = vmatpush.msra.mxu0 0.0
      %463 = vmatpush.msra.mxu0 0.0
      %464 = vmatpush.msra.mxu0 0.0
      %465 = vmatpush.msra.mxu0 0.0
      %466 = vmatpush.msra.mxu0 0.0
      %467 = vmatpush.msra.mxu0 0.0
      %468 = vmatpush.msra.mxu0 0.0
      %469 = vmatpush.msra.mxu0 0.0
      %470 = vmatpush.msra.mxu0 %v454
      %471 = vmatpush.msra.mxu0 %v453
      %472 = vmatpush.msra.mxu0 %v452
      %473 = vmatpush.msra.mxu0 %v451
      %474 = vmatpush.msra.mxu0 %v450
      %475 = vmatpush.msra.mxu0 %v449
      %476 = vmatmul.f32.gmra.mxu0 %v320
      %v477 = vpop.f32.mrf.mxu0
      %v478 = vadd.f32 %v458, %v477
      %479 = vmatmul.f32.gmra.mxu0 %v323
      %v480 = vpop.f32.mrf.mxu0
      %v481 = vadd.f32 %v458, %v480
      %482 = vmatmul.f32.gmra.mxu0 %v326
      %v483 = vpop.f32.mrf.mxu0
      %v484 = vadd.f32 %v458, %v483
      %485 = vmatmul.f32.gmra.mxu0 %v329
      %v486 = vpop.f32.mrf.mxu0
      %v487 = vadd.f32 %v458, %v486
      %488 = vmatmul.f32.gmra.mxu0 %v332
      %v489 = vpop.f32.mrf.mxu0
      %v490 = vadd.f32 %v458, %v489
      %491 = vmatmul.f32.gmra.mxu0 %v335
      %v492 = vpop.f32.mrf.mxu0
      %v493 = vadd.f32 %v458, %v492
      %494 = vmatmul.f32.gmra.mxu0 %v338
      %v495 = vpop.f32.mrf.mxu0
      %v496 = vadd.f32 %v458, %v495
      %497 = vmatmul.f32.gmra.mxu0 %v341
      %v498 = vpop.f32.mrf.mxu0
      %v499 = vadd.f32 %v458, %v498
      %500 = vmatmul.f32.gmra.mxu0 %v344
      %v501 = vpop.f32.mrf.mxu0
      %v502 = vadd.f32 %v458, %v501
      %503 = vmatmul.f32.gmra.mxu0 %v347
      %v504 = vpop.f32.mrf.mxu0
      %v505 = vadd.f32 %v458, %v504
      %506 = vmatmul.f32.gmra.mxu0 %v350
      %v507 = vpop.f32.mrf.mxu0
      %v508 = vadd.f32 %v458, %v507
      %509 = vmatmul.f32.gmra.mxu0 %v353
      %v510 = vpop.f32.mrf.mxu0
      %v511 = vadd.f32 %v458, %v510
      %512 = vmatmul.f32.gmra.mxu0 %v356
      %v513 = vpop.f32.mrf.mxu0
      %v514 = vadd.f32 %v458, %v513
      %515 = vmatmul.f32.gmra.mxu0 %v359
      %v516 = vpop.f32.mrf.mxu0
      %v517 = vadd.f32 %v458, %v516
      %518 = vmatmul.f32.gmra.mxu0 %v362
      %v519 = vpop.f32.mrf.mxu0
      %v520 = vadd.f32 %v458, %v519
      %521 = vmatmul.f32.gmra.mxu0 %v365
      %v522 = vpop.f32.mrf.mxu0
      %v523 = vadd.f32 %v458, %v522
      %524 = vdwg.mxu0
      %525 = vst.msk [vmem:[#allocation4] sm:$0xff] %vm318, %v478
      %526 = vst.msk [vmem:[#allocation4 + $0x8] sm:$0xff] %vm318, %v481
      %527 = vst.msk [vmem:[#allocation4 + $0x10] sm:$0xff] %vm318, %v484
      %528 = vst.msk [vmem:[#allocation4 + $0x18] sm:$0xff] %vm318, %v487
      %529 = vst.msk [vmem:[#allocation4 + $0x20] sm:$0xff] %vm318, %v490
      %530 = vst.msk [vmem:[#allocation4 + $0x28] sm:$0xff] %vm318, %v493
      %531 = vst.msk [vmem:[#allocation4 + $0x30] sm:$0xff] %vm318, %v496
      %532 = vst.msk [vmem:[#allocation4 + $0x38] sm:$0xff] %vm318, %v499
      %533 = vst.msk [vmem:[#allocation4 + $0x40] sm:$0xff] %vm318, %v502
      %534 = vst.msk [vmem:[#allocation4 + $0x48] sm:$0xff] %vm318, %v505
      %535 = vst.msk [vmem:[#allocation4 + $0x50] sm:$0xff] %vm318, %v508
      %536 = vst.msk [vmem:[#allocation4 + $0x58] sm:$0xff] %vm318, %v511
      %537 = vst.msk [vmem:[#allocation4 + $0x60] sm:$0xff] %vm318, %v514
      %538 = vst.msk [vmem:[#allocation4 + $0x68] sm:$0xff] %vm318, %v517
      %539 = vst.msk [vmem:[#allocation4 + $0x70] sm:$0xff] %vm318, %v520
      %540 = vst.msk [vmem:[#allocation4 + $0x78] sm:$0xff] %vm318, %v523
      %s541 = scalar_lea.vmem %s1, 96
      %v542 = vld [vmem:[%s541] sm:$0xff]
      %v543 = vld [vmem:[%s541 + $0x8] sm:$0xff]
      %v544 = vld [vmem:[%s541 + $0x10] sm:$0xff]
      %v545 = vld [vmem:[%s541 + $0x18] sm:$0xff]
      %v546 = vld [vmem:[%s541 + $0x20] sm:$0xff]
      %v547 = vld [vmem:[%s541 + $0x28] sm:$0xff]
      %s548 = scalar_lea.vmem %s2, 2
      %v549 = vld [vmem:[%s548] sm:$0x1]
      %v551 = vperm.slane %v549, 0
      %553 = vmatpush.msra.mxu0 0.0
      %554 = vmatpush.msra.mxu0 0.0
      %555 = vmatpush.msra.mxu0 0.0
      %556 = vmatpush.msra.mxu0 0.0
      %557 = vmatpush.msra.mxu0 0.0
      %558 = vmatpush.msra.mxu0 0.0
      %559 = vmatpush.msra.mxu0 0.0
      %560 = vmatpush.msra.mxu0 0.0
      %561 = vmatpush.msra.mxu0 0.0
      %562 = vmatpush.msra.mxu0 0.0
      %563 = vmatpush.msra.mxu0 %v547
      %564 = vmatpush.msra.mxu0 %v546
      %565 = vmatpush.msra.mxu0 %v545
      %566 = vmatpush.msra.mxu0 %v544
      %567 = vmatpush.msra.mxu0 %v543
      %568 = vmatpush.msra.mxu0 %v542
      %569 = vmatmul.f32.gmra.mxu0 %v320
      %v570 = vpop.f32.mrf.mxu0
      %v571 = vadd.f32 %v551, %v570
      %572 = vmatmul.f32.gmra.mxu0 %v323
      %v573 = vpop.f32.mrf.mxu0
      %v574 = vadd.f32 %v551, %v573
      %575 = vmatmul.f32.gmra.mxu0 %v326
      %v576 = vpop.f32.mrf.mxu0
      %v577 = vadd.f32 %v551, %v576
      %578 = vmatmul.f32.gmra.mxu0 %v329
      %v579 = vpop.f32.mrf.mxu0
      %v580 = vadd.f32 %v551, %v579
      %581 = vmatmul.f32.gmra.mxu0 %v332
      %v582 = vpop.f32.mrf.mxu0
      %v583 = vadd.f32 %v551, %v582
      %584 = vmatmul.f32.gmra.mxu0 %v335
      %v585 = vpop.f32.mrf.mxu0
      %v586 = vadd.f32 %v551, %v585
      %587 = vmatmul.f32.gmra.mxu0 %v338
      %v588 = vpop.f32.mrf.mxu0
      %v589 = vadd.f32 %v551, %v588
      %590 = vmatmul.f32.gmra.mxu0 %v341
      %v591 = vpop.f32.mrf.mxu0
      %v592 = vadd.f32 %v551, %v591
      %593 = vmatmul.f32.gmra.mxu0 %v344
      %v594 = vpop.f32.mrf.mxu0
      %v595 = vadd.f32 %v551, %v594
      %596 = vmatmul.f32.gmra.mxu0 %v347
      %v597 = vpop.f32.mrf.mxu0
      %v598 = vadd.f32 %v551, %v597
      %599 = vmatmul.f32.gmra.mxu0 %v350
      %v600 = vpop.f32.mrf.mxu0
      %v601 = vadd.f32 %v551, %v600
      %602 = vmatmul.f32.gmra.mxu0 %v353
      %v603 = vpop.f32.mrf.mxu0
      %v604 = vadd.f32 %v551, %v603
      %605 = vmatmul.f32.gmra.mxu0 %v356
      %v606 = vpop.f32.mrf.mxu0
      %v607 = vadd.f32 %v551, %v606
      %608 = vmatmul.f32.gmra.mxu0 %v359
      %v609 = vpop.f32.mrf.mxu0
      %v610 = vadd.f32 %v551, %v609
      %611 = vmatmul.f32.gmra.mxu0 %v362
      %v612 = vpop.f32.mrf.mxu0
      %v613 = vadd.f32 %v551, %v612
      %614 = vmatmul.f32.gmra.mxu0 %v365
      %v615 = vpop.f32.mrf.mxu0
      %v616 = vadd.f32 %v551, %v615
      %617 = vdwg.mxu0
      %618 = vst.msk [vmem:[#allocation5] sm:$0xff] %vm318, %v571
      %619 = vst.msk [vmem:[#allocation5 + $0x8] sm:$0xff] %vm318, %v574
      %620 = vst.msk [vmem:[#allocation5 + $0x10] sm:$0xff] %vm318, %v577
      %621 = vst.msk [vmem:[#allocation5 + $0x18] sm:$0xff] %vm318, %v580
      %622 = vst.msk [vmem:[#allocation5 + $0x20] sm:$0xff] %vm318, %v583
      %623 = vst.msk [vmem:[#allocation5 + $0x28] sm:$0xff] %vm318, %v586
      %624 = vst.msk [vmem:[#allocation5 + $0x30] sm:$0xff] %vm318, %v589
      %625 = vst.msk [vmem:[#allocation5 + $0x38] sm:$0xff] %vm318, %v592
      %626 = vst.msk [vmem:[#allocation5 + $0x40] sm:$0xff] %vm318, %v595
      %627 = vst.msk [vmem:[#allocation5 + $0x48] sm:$0xff] %vm318, %v598
      %628 = vst.msk [vmem:[#allocation5 + $0x50] sm:$0xff] %vm318, %v601
      %629 = vst.msk [vmem:[#allocation5 + $0x58] sm:$0xff] %vm318, %v604
      %630 = vst.msk [vmem:[#allocation5 + $0x60] sm:$0xff] %vm318, %v607
      %631 = vst.msk [vmem:[#allocation5 + $0x68] sm:$0xff] %vm318, %v610
      %632 = vst.msk [vmem:[#allocation5 + $0x70] sm:$0xff] %vm318, %v613
      %633 = vst.msk [vmem:[#allocation5 + $0x78] sm:$0xff] %vm318, %v616
      %634 = vst.msk [vmem:[#allocation6] sm:$0xff] %vm318, 0.0
      %635 = vst.msk [vmem:[#allocation6 + $0x8] sm:$0xff] %vm318, 0.0
      %636 = vst.msk [vmem:[#allocation6 + $0x10] sm:$0xff] %vm318, 0.0
      %637 = vst.msk [vmem:[#allocation6 + $0x18] sm:$0xff] %vm318, 0.0
      %638 = vst.msk [vmem:[#allocation6 + $0x20] sm:$0xff] %vm318, 0.0
      %639 = vst.msk [vmem:[#allocation6 + $0x28] sm:$0xff] %vm318, 0.0
      %640 = vst.msk [vmem:[#allocation6 + $0x30] sm:$0xff] %vm318, 0.0
      %641 = vst.msk [vmem:[#allocation6 + $0x38] sm:$0xff] %vm318, 0.0
      %642 = vst.msk [vmem:[#allocation6 + $0x40] sm:$0xff] %vm318, 0.0
      %643 = vst.msk [vmem:[#allocation6 + $0x48] sm:$0xff] %vm318, 0.0
      %644 = vst.msk [vmem:[#allocation6 + $0x50] sm:$0xff] %vm318, 0.0
      %645 = vst.msk [vmem:[#allocation6 + $0x58] sm:$0xff] %vm318, 0.0
      %646 = vst.msk [vmem:[#allocation6 + $0x60] sm:$0xff] %vm318, 0.0
      %647 = vst.msk [vmem:[#allocation6 + $0x68] sm:$0xff] %vm318, 0.0
      %648 = vst.msk [vmem:[#allocation6 + $0x70] sm:$0xff] %vm318, 0.0
      %649 = vst.msk [vmem:[#allocation6 + $0x78] sm:$0xff] %vm318, 0.0
      %v650 = vld [vmem:[#allocation3] sm:$0xff]
      %v651 = vld [vmem:[#allocation3 + $0x8] sm:$0xff]
      %v652 = vld [vmem:[#allocation3 + $0x10] sm:$0xff]
      %v653 = vld [vmem:[#allocation3 + $0x18] sm:$0xff]
      %v654 = vld [vmem:[#allocation3 + $0x20] sm:$0xff]
      %v655 = vld [vmem:[#allocation3 + $0x28] sm:$0xff]
      %v656 = vld [vmem:[#allocation3 + $0x30] sm:$0xff]
      %v657 = vld [vmem:[#allocation3 + $0x38] sm:$0xff]
      %v658 = vld [vmem:[#allocation3 + $0x40] sm:$0xff]
      %v659 = vld [vmem:[#allocation3 + $0x48] sm:$0xff]
      %v660 = vld [vmem:[#allocation3 + $0x50] sm:$0xff]
      %v661 = vld [vmem:[#allocation3 + $0x58] sm:$0xff]
      %v662 = vld [vmem:[#allocation3 + $0x60] sm:$0xff]
      %v663 = vld [vmem:[#allocation3 + $0x68] sm:$0xff]
      %v664 = vld [vmem:[#allocation3 + $0x70] sm:$0xff]
      %v665 = vld [vmem:[#allocation3 + $0x78] sm:$0xff]
      %v666 = vld [vmem:[#allocation4] sm:$0xff]
      %v667 = vld [vmem:[#allocation4 + $0x8] sm:$0xff]
      %v668 = vld [vmem:[#allocation4 + $0x10] sm:$0xff]
      %v669 = vld [vmem:[#allocation4 + $0x18] sm:$0xff]
      %v670 = vld [vmem:[#allocation4 + $0x20] sm:$0xff]
      %v671 = vld [vmem:[#allocation4 + $0x28] sm:$0xff]
      %v672 = vld [vmem:[#allocation4 + $0x30] sm:$0xff]
      %v673 = vld [vmem:[#allocation4 + $0x38] sm:$0xff]
      %v674 = vld [vmem:[#allocation4 + $0x40] sm:$0xff]
      %v675 = vld [vmem:[#allocation4 + $0x48] sm:$0xff]
      %v676 = vld [vmem:[#allocation4 + $0x50] sm:$0xff]
      %v677 = vld [vmem:[#allocation4 + $0x58] sm:$0xff]
      %v678 = vld [vmem:[#allocation4 + $0x60] sm:$0xff]
      %v679 = vld [vmem:[#allocation4 + $0x68] sm:$0xff]
      %v680 = vld [vmem:[#allocation4 + $0x70] sm:$0xff]
      %v681 = vld [vmem:[#allocation4 + $0x78] sm:$0xff]
      %v682 = vld [vmem:[#allocation5] sm:$0xff]
      %v683 = vld [vmem:[#allocation5 + $0x8] sm:$0xff]
      %v684 = vld [vmem:[#allocation5 + $0x10] sm:$0xff]
      %v685 = vld [vmem:[#allocation5 + $0x18] sm:$0xff]
      %v686 = vld [vmem:[#allocation5 + $0x20] sm:$0xff]
      %v687 = vld [vmem:[#allocation5 + $0x28] sm:$0xff]
      %v688 = vld [vmem:[#allocation5 + $0x30] sm:$0xff]
      %v689 = vld [vmem:[#allocation5 + $0x38] sm:$0xff]
      %v690 = vld [vmem:[#allocation5 + $0x40] sm:$0xff]
      %v691 = vld [vmem:[#allocation5 + $0x48] sm:$0xff]
      %v692 = vld [vmem:[#allocation5 + $0x50] sm:$0xff]
      %v693 = vld [vmem:[#allocation5 + $0x58] sm:$0xff]
      %v694 = vld [vmem:[#allocation5 + $0x60] sm:$0xff]
      %v695 = vld [vmem:[#allocation5 + $0x68] sm:$0xff]
      %v696 = vld [vmem:[#allocation5 + $0x70] sm:$0xff]
      %v697 = vld [vmem:[#allocation5 + $0x78] sm:$0xff]
      %v698 = vld [vmem:[#allocation2] sm:$0xff]
      %v699 = vld [vmem:[#allocation2 + $0x8] sm:$0xff]
      %v700 = vld [vmem:[#allocation2 + $0x10] sm:$0xff]
      %v701 = vld [vmem:[#allocation2 + $0x18] sm:$0xff]
      %v702 = vld [vmem:[#allocation2 + $0x20] sm:$0xff]
      %v703 = vld [vmem:[#allocation2 + $0x28] sm:$0xff]
      %v704 = vld [vmem:[#allocation2 + $0x30] sm:$0xff]
      %v705 = vld [vmem:[#allocation2 + $0x38] sm:$0xff]
      %v706 = vld [vmem:[#allocation2 + $0x40] sm:$0xff]
      %v707 = vld [vmem:[#allocation2 + $0x48] sm:$0xff]
      %v708 = vld [vmem:[#allocation2 + $0x50] sm:$0xff]
      %v709 = vld [vmem:[#allocation2 + $0x58] sm:$0xff]
      %v710 = vld [vmem:[#allocation2 + $0x60] sm:$0xff]
      %v711 = vld [vmem:[#allocation2 + $0x68] sm:$0xff]
      %v712 = vld [vmem:[#allocation2 + $0x70] sm:$0xff]
      %v713 = vld [vmem:[#allocation2 + $0x78] sm:$0xff]
      %vm714 = vcmask 64512
      %v716 = vsel %vm714, %v650, 0
      %v719 = vsel %vm714, %v651, 0
      %v722 = vsel %vm714, %v652, 0
      %v725 = vsel %vm714, %v653, 0
      %v728 = vsel %vm714, %v654, 0
      %v731 = vsel %vm714, %v655, 0
      %v734 = vsel %vm714, %v656, 0
      %v737 = vsel %vm714, %v657, 0
      %v740 = vsel %vm714, %v658, 0
      %v743 = vsel %vm714, %v659, 0
      %v746 = vsel %vm714, %v660, 0
      %v749 = vsel %vm714, %v661, 0
      %v752 = vsel %vm714, %v662, 0
      %v755 = vsel %vm714, %v663, 0
      %v758 = vsel %vm714, %v664, 0
      %v761 = vsel %vm714, %v665, 0
      %v764 = vsel %vm714, %v666, 0
      %v767 = vsel %vm714, %v667, 0
      %v770 = vsel %vm714, %v668, 0
      %v773 = vsel %vm714, %v669, 0
      %v776 = vsel %vm714, %v670, 0
      %v779 = vsel %vm714, %v671, 0
      %v782 = vsel %vm714, %v672, 0
      %v785 = vsel %vm714, %v673, 0
      %v788 = vsel %vm714, %v674, 0
      %v791 = vsel %vm714, %v675, 0
      %v794 = vsel %vm714, %v676, 0
      %v797 = vsel %vm714, %v677, 0
      %v800 = vsel %vm714, %v678, 0
      %v803 = vsel %vm714, %v679, 0
      %v806 = vsel %vm714, %v680, 0
      %v809 = vsel %vm714, %v681, 0
      %811 = vmatpush.xpose.msra.mxu0 %v809
      %812 = vmatpush.xpose.msra.mxu0 %v806
      %813 = vmatpush.xpose.msra.mxu0 %v803
      %814 = vmatpush.xpose.msra.mxu0 %v800
      %815 = vmatpush.xpose.msra.mxu0 %v797
      %816 = vmatpush.xpose.msra.mxu0 %v794
      %817 = vmatpush.xpose.msra.mxu0 %v791
      %818 = vmatpush.xpose.msra.mxu0 %v788
      %819 = vmatpush.xpose.msra.mxu0 %v785
      %820 = vmatpush.xpose.msra.mxu0 %v782
      %821 = vmatpush.xpose.msra.mxu0 %v779
      %822 = vmatpush.xpose.msra.mxu0 %v776
      %823 = vmatpush.xpose.msra.mxu0 %v773
      %824 = vmatpush.xpose.msra.mxu0 %v770
      %825 = vmatpush.xpose.msra.mxu0 %v767
      %826 = vmatpush.xpose.msra.mxu0 %v764
      %827 = vmatmul.f32.gmra.mxu0 %v716
      %v828 = vpop.f32.mrf.mxu0
      %v829 = vadd.f32 %v698, %v828
      %830 = vmatmul.f32.gmra.mxu0 %v719
      %v831 = vpop.f32.mrf.mxu0
      %v832 = vadd.f32 %v699, %v831
      %833 = vmatmul.f32.gmra.mxu0 %v722
      %v834 = vpop.f32.mrf.mxu0
      %v835 = vadd.f32 %v700, %v834
      %836 = vmatmul.f32.gmra.mxu0 %v725
      %v837 = vpop.f32.mrf.mxu0
      %v838 = vadd.f32 %v701, %v837
      %839 = vmatmul.f32.gmra.mxu0 %v728
      %v840 = vpop.f32.mrf.mxu0
      %v841 = vadd.f32 %v702, %v840
      %842 = vmatmul.f32.gmra.mxu0 %v731
      %v843 = vpop.f32.mrf.mxu0
      %v844 = vadd.f32 %v703, %v843
      %845 = vmatmul.f32.gmra.mxu0 %v734
      %v846 = vpop.f32.mrf.mxu0
      %v847 = vadd.f32 %v704, %v846
      %848 = vmatmul.f32.gmra.mxu0 %v737
      %v849 = vpop.f32.mrf.mxu0
      %v850 = vadd.f32 %v705, %v849
      %851 = vmatmul.f32.gmra.mxu0 %v740
      %v852 = vpop.f32.mrf.mxu0
      %v853 = vadd.f32 %v706, %v852
      %854 = vmatmul.f32.gmra.mxu0 %v743
      %v855 = vpop.f32.mrf.mxu0
      %v856 = vadd.f32 %v707, %v855
      %857 = vmatmul.f32.gmra.mxu0 %v746
      %v858 = vpop.f32.mrf.mxu0
      %v859 = vadd.f32 %v708, %v858
      %860 = vmatmul.f32.gmra.mxu0 %v749
      %v861 = vpop.f32.mrf.mxu0
      %v862 = vadd.f32 %v709, %v861
      %863 = vmatmul.f32.gmra.mxu0 %v752
      %v864 = vpop.f32.mrf.mxu0
      %v865 = vadd.f32 %v710, %v864
      %866 = vmatmul.f32.gmra.mxu0 %v755
      %v867 = vpop.f32.mrf.mxu0
      %v868 = vadd.f32 %v711, %v867
      %869 = vmatmul.f32.gmra.mxu0 %v758
      %v870 = vpop.f32.mrf.mxu0
      %v871 = vadd.f32 %v712, %v870
      %872 = vmatmul.f32.gmra.mxu0 %v761
      %v873 = vpop.f32.mrf.mxu0
      %v874 = vadd.f32 %v713, %v873
      %875 = vdwg.mxu0
      %876 = vmax.xlane.f32.xlu0 %v829
      %v877 = vpop.xlane.xlu0 %876
      %878 = vmax.xlane.f32.xlu0 %v832
      %v879 = vpop.xlane.xlu0 %878
      %880 = vmax.xlane.f32.xlu0 %v835
      %v881 = vpop.xlane.xlu0 %880
      %882 = vmax.xlane.f32.xlu0 %v838
      %v883 = vpop.xlane.xlu0 %882
      %884 = vmax.xlane.f32.xlu0 %v841
      %v885 = vpop.xlane.xlu0 %884
      %886 = vmax.xlane.f32.xlu0 %v844
      %v887 = vpop.xlane.xlu0 %886
      %888 = vmax.xlane.f32.xlu0 %v847
      %v889 = vpop.xlane.xlu0 %888
      %890 = vmax.xlane.f32.xlu0 %v850
      %v891 = vpop.xlane.xlu0 %890
      %892 = vmax.xlane.f32.xlu0 %v853
      %v893 = vpop.xlane.xlu0 %892
      %894 = vmax.xlane.f32.xlu0 %v856
      %v895 = vpop.xlane.xlu0 %894
      %896 = vmax.xlane.f32.xlu0 %v859
      %v897 = vpop.xlane.xlu0 %896
      %898 = vmax.xlane.f32.xlu0 %v862
      %v899 = vpop.xlane.xlu0 %898
      %900 = vmax.xlane.f32.xlu0 %v865
      %v901 = vpop.xlane.xlu0 %900
      %902 = vmax.xlane.f32.xlu0 %v868
      %v903 = vpop.xlane.xlu0 %902
      %904 = vmax.xlane.f32.xlu0 %v871
      %v905 = vpop.xlane.xlu0 %904
      %906 = vmax.xlane.f32.xlu0 %v874
      %v907 = vpop.xlane.xlu0 %906
      %v908 = vsub.f32 %v829, %v877
      %v909 = vsub.f32 %v832, %v879
      %v910 = vsub.f32 %v835, %v881
      %v911 = vsub.f32 %v838, %v883
      %v912 = vsub.f32 %v841, %v885
      %v913 = vsub.f32 %v844, %v887
      %v914 = vsub.f32 %v847, %v889
      %v915 = vsub.f32 %v850, %v891
      %v916 = vsub.f32 %v853, %v893
      %v917 = vsub.f32 %v856, %v895
      %v918 = vsub.f32 %v859, %v897
      %v919 = vsub.f32 %v862, %v899
      %v920 = vsub.f32 %v865, %v901
      %v921 = vsub.f32 %v868, %v903
      %v922 = vsub.f32 %v871, %v905
      %v923 = vsub.f32 %v874, %v907
      %v924 = vmul.f32 %v908, 1.442695
      %v925 = vpow.pop %v924
      %v926 = vmul.f32 %v909, 1.442695
      %v927 = vpow.pop %v926
      %v928 = vmul.f32 %v910, 1.442695
      %v929 = vpow.pop %v928
      %v930 = vmul.f32 %v911, 1.442695
      %v931 = vpow.pop %v930
      %v932 = vmul.f32 %v912, 1.442695
      %v933 = vpow.pop %v932
      %v934 = vmul.f32 %v913, 1.442695
      %v935 = vpow.pop %v934
      %v936 = vmul.f32 %v914, 1.442695
      %v937 = vpow.pop %v936
      %v938 = vmul.f32 %v915, 1.442695
      %v939 = vpow.pop %v938
      %v940 = vmul.f32 %v916, 1.442695
      %v941 = vpow.pop %v940
      %v942 = vmul.f32 %v917, 1.442695
      %v943 = vpow.pop %v942
      %v944 = vmul.f32 %v918, 1.442695
      %v945 = vpow.pop %v944
      %v946 = vmul.f32 %v919, 1.442695
      %v947 = vpow.pop %v946
      %v948 = vmul.f32 %v920, 1.442695
      %v949 = vpow.pop %v948
      %v950 = vmul.f32 %v921, 1.442695
      %v951 = vpow.pop %v950
      %v952 = vmul.f32 %v922, 1.442695
      %v953 = vpow.pop %v952
      %v954 = vmul.f32 %v923, 1.442695
      %v955 = vpow.pop %v954
      %956 = vadd.xlane.f32.xlu0 %v925
      %v957 = vpop.xlane.xlu0 %956
      %958 = vadd.xlane.f32.xlu0 %v927
      %v959 = vpop.xlane.xlu0 %958
      %960 = vadd.xlane.f32.xlu0 %v929
      %v961 = vpop.xlane.xlu0 %960
      %962 = vadd.xlane.f32.xlu0 %v931
      %v963 = vpop.xlane.xlu0 %962
      %964 = vadd.xlane.f32.xlu0 %v933
      %v965 = vpop.xlane.xlu0 %964
      %966 = vadd.xlane.f32.xlu0 %v935
      %v967 = vpop.xlane.xlu0 %966
      %968 = vadd.xlane.f32.xlu0 %v937
      %v969 = vpop.xlane.xlu0 %968
      %970 = vadd.xlane.f32.xlu0 %v939
      %v971 = vpop.xlane.xlu0 %970
      %972 = vadd.xlane.f32.xlu0 %v941
      %v973 = vpop.xlane.xlu0 %972
      %974 = vadd.xlane.f32.xlu0 %v943
      %v975 = vpop.xlane.xlu0 %974
      %976 = vadd.xlane.f32.xlu0 %v945
      %v977 = vpop.xlane.xlu0 %976
      %978 = vadd.xlane.f32.xlu0 %v947
      %v979 = vpop.xlane.xlu0 %978
      %980 = vadd.xlane.f32.xlu0 %v949
      %v981 = vpop.xlane.xlu0 %980
      %982 = vadd.xlane.f32.xlu0 %v951
      %v983 = vpop.xlane.xlu0 %982
      %984 = vadd.xlane.f32.xlu0 %v953
      %v985 = vpop.xlane.xlu0 %984
      %986 = vadd.xlane.f32.xlu0 %v955
      %v987 = vpop.xlane.xlu0 %986
      %988 = vmatpush.msra.mxu0 %v697
      %989 = vmatpush.msra.mxu0 %v696
      %990 = vmatpush.msra.mxu0 %v695
      %991 = vmatpush.msra.mxu0 %v694
      %992 = vmatpush.msra.mxu0 %v693
      %993 = vmatpush.msra.mxu0 %v692
      %994 = vmatpush.msra.mxu0 %v691
      %995 = vmatpush.msra.mxu0 %v690
      %996 = vmatpush.msra.mxu0 %v689
      %997 = vmatpush.msra.mxu0 %v688
      %998 = vmatpush.msra.mxu0 %v687
      %999 = vmatpush.msra.mxu0 %v686
      %1000 = vmatpush.msra.mxu0 %v685
      %1001 = vmatpush.msra.mxu0 %v684
      %1002 = vmatpush.msra.mxu0 %v683
      %1003 = vmatpush.msra.mxu0 %v682
      %1004 = vmatmul.f32.gmra.mxu0 %v925
      %v1005 = vpop.f32.mrf.mxu0
      %v1006 = vadd.f32 0.0, %v1005
      %1007 = vmatmul.f32.gmra.mxu0 %v927
      %v1008 = vpop.f32.mrf.mxu0
      %v1009 = vadd.f32 0.0, %v1008
      %1010 = vmatmul.f32.gmra.mxu0 %v929
      %v1011 = vpop.f32.mrf.mxu0
      %v1012 = vadd.f32 0.0, %v1011
      %1013 = vmatmul.f32.gmra.mxu0 %v931
      %v1014 = vpop.f32.mrf.mxu0
      %v1015 = vadd.f32 0.0, %v1014
      %1016 = vmatmul.f32.gmra.mxu0 %v933
      %v1017 = vpop.f32.mrf.mxu0
      %v1018 = vadd.f32 0.0, %v1017
      %1019 = vmatmul.f32.gmra.mxu0 %v935
      %v1020 = vpop.f32.mrf.mxu0
      %v1021 = vadd.f32 0.0, %v1020
      %1022 = vmatmul.f32.gmra.mxu0 %v937
      %v1023 = vpop.f32.mrf.mxu0
      %v1024 = vadd.f32 0.0, %v1023
      %1025 = vmatmul.f32.gmra.mxu0 %v939
      %v1026 = vpop.f32.mrf.mxu0
      %v1027 = vadd.f32 0.0, %v1026
      %1028 = vmatmul.f32.gmra.mxu0 %v941
      %v1029 = vpop.f32.mrf.mxu0
      %v1030 = vadd.f32 0.0, %v1029
      %1031 = vmatmul.f32.gmra.mxu0 %v943
      %v1032 = vpop.f32.mrf.mxu0
      %v1033 = vadd.f32 0.0, %v1032
      %1034 = vmatmul.f32.gmra.mxu0 %v945
      %v1035 = vpop.f32.mrf.mxu0
      %v1036 = vadd.f32 0.0, %v1035
      %1037 = vmatmul.f32.gmra.mxu0 %v947
      %v1038 = vpop.f32.mrf.mxu0
      %v1039 = vadd.f32 0.0, %v1038
      %1040 = vmatmul.f32.gmra.mxu0 %v949
      %v1041 = vpop.f32.mrf.mxu0
      %v1042 = vadd.f32 0.0, %v1041
      %1043 = vmatmul.f32.gmra.mxu0 %v951
      %v1044 = vpop.f32.mrf.mxu0
      %v1045 = vadd.f32 0.0, %v1044
      %1046 = vmatmul.f32.gmra.mxu0 %v953
      %v1047 = vpop.f32.mrf.mxu0
      %v1048 = vadd.f32 0.0, %v1047
      %1049 = vmatmul.f32.gmra.mxu0 %v955
      %v1050 = vpop.f32.mrf.mxu0
      %v1051 = vadd.f32 0.0, %v1050
      %1052 = vdwg.mxu0
      %v1053 = vrcp.pop %v957
      %v1054 = vmul.f32 %v957, %v1053
      %v1055 = vsub.f32 1.0, %v1054
      %v1056 = vmul.f32 %v1053, %v1055
      %v1057 = vadd.f32 %v1053, %v1056
      %vm1058 = vweird.f32 %v957
      %vm1059 = vweird.f32 %v1053
      %vm1060 = vmor %vm1058, %vm1059
      %v1061 = vsel %vm1060, %v1053, %v1057
      %v1062 = vand.u32 2147483647, %v957
      %vm1063 = vcmp.eq.f32.partialorder %v1062, 8.507059e+37
      %v1064 = vand.u32 %v957, 2147483648
      %v1065 = vor.u32 1.1754944e-38, %v1064
      %v1066 = vsel %vm1063, %v1065, %v1061
      %v1067 = vmul.f32 1.0, %v1066
      %v1068 = vrcp.pop %v959
      %v1069 = vmul.f32 %v959, %v1068
      %v1070 = vsub.f32 1.0, %v1069
      %v1071 = vmul.f32 %v1068, %v1070
      %v1072 = vadd.f32 %v1068, %v1071
      %vm1073 = vweird.f32 %v959
      %vm1074 = vweird.f32 %v1068
      %vm1075 = vmor %vm1073, %vm1074
      %v1076 = vsel %vm1075, %v1068, %v1072
      %v1077 = vand.u32 2147483647, %v959
      %vm1078 = vcmp.eq.f32.partialorder %v1077, 8.507059e+37
      %v1079 = vand.u32 %v959, 2147483648
      %v1080 = vor.u32 1.1754944e-38, %v1079
      %v1081 = vsel %vm1078, %v1080, %v1076
      %v1082 = vmul.f32 1.0, %v1081
      %v1083 = vrcp.pop %v961
      %v1084 = vmul.f32 %v961, %v1083
      %v1085 = vsub.f32 1.0, %v1084
      %v1086 = vmul.f32 %v1083, %v1085
      %v1087 = vadd.f32 %v1083, %v1086
      %vm1088 = vweird.f32 %v961
      %vm1089 = vweird.f32 %v1083
      %vm1090 = vmor %vm1088, %vm1089
      %v1091 = vsel %vm1090, %v1083, %v1087
      %v1092 = vand.u32 2147483647, %v961
      %vm1093 = vcmp.eq.f32.partialorder %v1092, 8.507059e+37
      %v1094 = vand.u32 %v961, 2147483648
      %v1095 = vor.u32 1.1754944e-38, %v1094
      %v1096 = vsel %vm1093, %v1095, %v1091
      %v1097 = vmul.f32 1.0, %v1096
      %v1098 = vrcp.pop %v963
      %v1099 = vmul.f32 %v963, %v1098
      %v1100 = vsub.f32 1.0, %v1099
      %v1101 = vmul.f32 %v1098, %v1100
      %v1102 = vadd.f32 %v1098, %v1101
      %vm1103 = vweird.f32 %v963
      %vm1104 = vweird.f32 %v1098
      %vm1105 = vmor %vm1103, %vm1104
      %v1106 = vsel %vm1105, %v1098, %v1102
      %v1107 = vand.u32 2147483647, %v963
      %vm1108 = vcmp.eq.f32.partialorder %v1107, 8.507059e+37
      %v1109 = vand.u32 %v963, 2147483648
      %v1110 = vor.u32 1.1754944e-38, %v1109
      %v1111 = vsel %vm1108, %v1110, %v1106
      %v1112 = vmul.f32 1.0, %v1111
      %v1113 = vrcp.pop %v965
      %v1114 = vmul.f32 %v965, %v1113
      %v1115 = vsub.f32 1.0, %v1114
      %v1116 = vmul.f32 %v1113, %v1115
      %v1117 = vadd.f32 %v1113, %v1116
      %vm1118 = vweird.f32 %v965
      %vm1119 = vweird.f32 %v1113
      %vm1120 = vmor %vm1118, %vm1119
      %v1121 = vsel %vm1120, %v1113, %v1117
      %v1122 = vand.u32 2147483647, %v965
      %vm1123 = vcmp.eq.f32.partialorder %v1122, 8.507059e+37
      %v1124 = vand.u32 %v965, 2147483648
      %v1125 = vor.u32 1.1754944e-38, %v1124
      %v1126 = vsel %vm1123, %v1125, %v1121
      %v1127 = vmul.f32 1.0, %v1126
      %v1128 = vrcp.pop %v967
      %v1129 = vmul.f32 %v967, %v1128
      %v1130 = vsub.f32 1.0, %v1129
      %v1131 = vmul.f32 %v1128, %v1130
      %v1132 = vadd.f32 %v1128, %v1131
      %vm1133 = vweird.f32 %v967
      %vm1134 = vweird.f32 %v1128
      %vm1135 = vmor %vm1133, %vm1134
      %v1136 = vsel %vm1135, %v1128, %v1132
      %v1137 = vand.u32 2147483647, %v967
      %vm1138 = vcmp.eq.f32.partialorder %v1137, 8.507059e+37
      %v1139 = vand.u32 %v967, 2147483648
      %v1140 = vor.u32 1.1754944e-38, %v1139
      %v1141 = vsel %vm1138, %v1140, %v1136
      %v1142 = vmul.f32 1.0, %v1141
      %v1143 = vrcp.pop %v969
      %v1144 = vmul.f32 %v969, %v1143
      %v1145 = vsub.f32 1.0, %v1144
      %v1146 = vmul.f32 %v1143, %v1145
      %v1147 = vadd.f32 %v1143, %v1146
      %vm1148 = vweird.f32 %v969
      %vm1149 = vweird.f32 %v1143
      %vm1150 = vmor %vm1148, %vm1149
      %v1151 = vsel %vm1150, %v1143, %v1147
      %v1152 = vand.u32 2147483647, %v969
      %vm1153 = vcmp.eq.f32.partialorder %v1152, 8.507059e+37
      %v1154 = vand.u32 %v969, 2147483648
      %v1155 = vor.u32 1.1754944e-38, %v1154
      %v1156 = vsel %vm1153, %v1155, %v1151
      %v1157 = vmul.f32 1.0, %v1156
      %v1158 = vrcp.pop %v971
      %v1159 = vmul.f32 %v971, %v1158
      %v1160 = vsub.f32 1.0, %v1159
      %v1161 = vmul.f32 %v1158, %v1160
      %v1162 = vadd.f32 %v1158, %v1161
      %vm1163 = vweird.f32 %v971
      %vm1164 = vweird.f32 %v1158
      %vm1165 = vmor %vm1163, %vm1164
      %v1166 = vsel %vm1165, %v1158, %v1162
      %v1167 = vand.u32 2147483647, %v971
      %vm1168 = vcmp.eq.f32.partialorder %v1167, 8.507059e+37
      %v1169 = vand.u32 %v971, 2147483648
      %v1170 = vor.u32 1.1754944e-38, %v1169
      %v1171 = vsel %vm1168, %v1170, %v1166
      %v1172 = vmul.f32 1.0, %v1171
      %v1173 = vrcp.pop %v973
      %v1174 = vmul.f32 %v973, %v1173
      %v1175 = vsub.f32 1.0, %v1174
      %v1176 = vmul.f32 %v1173, %v1175
      %v1177 = vadd.f32 %v1173, %v1176
      %vm1178 = vweird.f32 %v973
      %vm1179 = vweird.f32 %v1173
      %vm1180 = vmor %vm1178, %vm1179
      %v1181 = vsel %vm1180, %v1173, %v1177
      %v1182 = vand.u32 2147483647, %v973
      %vm1183 = vcmp.eq.f32.partialorder %v1182, 8.507059e+37
      %v1184 = vand.u32 %v973, 2147483648
      %v1185 = vor.u32 1.1754944e-38, %v1184
      %v1186 = vsel %vm1183, %v1185, %v1181
      %v1187 = vmul.f32 1.0, %v1186
      %v1188 = vrcp.pop %v975
      %v1189 = vmul.f32 %v975, %v1188
      %v1190 = vsub.f32 1.0, %v1189
      %v1191 = vmul.f32 %v1188, %v1190
      %v1192 = vadd.f32 %v1188, %v1191
      %vm1193 = vweird.f32 %v975
      %vm1194 = vweird.f32 %v1188
      %vm1195 = vmor %vm1193, %vm1194
      %v1196 = vsel %vm1195, %v1188, %v1192
      %v1197 = vand.u32 2147483647, %v975
      %vm1198 = vcmp.eq.f32.partialorder %v1197, 8.507059e+37
      %v1199 = vand.u32 %v975, 2147483648
      %v1200 = vor.u32 1.1754944e-38, %v1199
      %v1201 = vsel %vm1198, %v1200, %v1196
      %v1202 = vmul.f32 1.0, %v1201
      %v1203 = vrcp.pop %v977
      %v1204 = vmul.f32 %v977, %v1203
      %v1205 = vsub.f32 1.0, %v1204
      %v1206 = vmul.f32 %v1203, %v1205
      %v1207 = vadd.f32 %v1203, %v1206
      %vm1208 = vweird.f32 %v977
      %vm1209 = vweird.f32 %v1203
      %vm1210 = vmor %vm1208, %vm1209
      %v1211 = vsel %vm1210, %v1203, %v1207
      %v1212 = vand.u32 2147483647, %v977
      %vm1213 = vcmp.eq.f32.partialorder %v1212, 8.507059e+37
      %v1214 = vand.u32 %v977, 2147483648
      %v1215 = vor.u32 1.1754944e-38, %v1214
      %v1216 = vsel %vm1213, %v1215, %v1211
      %v1217 = vmul.f32 1.0, %v1216
      %v1218 = vrcp.pop %v979
      %v1219 = vmul.f32 %v979, %v1218
      %v1220 = vsub.f32 1.0, %v1219
      %v1221 = vmul.f32 %v1218, %v1220
      %v1222 = vadd.f32 %v1218, %v1221
      %vm1223 = vweird.f32 %v979
      %vm1224 = vweird.f32 %v1218
      %vm1225 = vmor %vm1223, %vm1224
      %v1226 = vsel %vm1225, %v1218, %v1222
      %v1227 = vand.u32 2147483647, %v979
      %vm1228 = vcmp.eq.f32.partialorder %v1227, 8.507059e+37
      %v1229 = vand.u32 %v979, 2147483648
      %v1230 = vor.u32 1.1754944e-38, %v1229
      %v1231 = vsel %vm1228, %v1230, %v1226
      %v1232 = vmul.f32 1.0, %v1231
      %v1233 = vrcp.pop %v981
      %v1234 = vmul.f32 %v981, %v1233
      %v1235 = vsub.f32 1.0, %v1234
      %v1236 = vmul.f32 %v1233, %v1235
      %v1237 = vadd.f32 %v1233, %v1236
      %vm1238 = vweird.f32 %v981
      %vm1239 = vweird.f32 %v1233
      %vm1240 = vmor %vm1238, %vm1239
      %v1241 = vsel %vm1240, %v1233, %v1237
      %v1242 = vand.u32 2147483647, %v981
      %vm1243 = vcmp.eq.f32.partialorder %v1242, 8.507059e+37
      %v1244 = vand.u32 %v981, 2147483648
      %v1245 = vor.u32 1.1754944e-38, %v1244
      %v1246 = vsel %vm1243, %v1245, %v1241
      %v1247 = vmul.f32 1.0, %v1246
      %v1248 = vrcp.pop %v983
      %v1249 = vmul.f32 %v983, %v1248
      %v1250 = vsub.f32 1.0, %v1249
      %v1251 = vmul.f32 %v1248, %v1250
      %v1252 = vadd.f32 %v1248, %v1251
      %vm1253 = vweird.f32 %v983
      %vm1254 = vweird.f32 %v1248
      %vm1255 = vmor %vm1253, %vm1254
      %v1256 = vsel %vm1255, %v1248, %v1252
      %v1257 = vand.u32 2147483647, %v983
      %vm1258 = vcmp.eq.f32.partialorder %v1257, 8.507059e+37
      %v1259 = vand.u32 %v983, 2147483648
      %v1260 = vor.u32 1.1754944e-38, %v1259
      %v1261 = vsel %vm1258, %v1260, %v1256
      %v1262 = vmul.f32 1.0, %v1261
      %v1263 = vrcp.pop %v985
      %v1264 = vmul.f32 %v985, %v1263
      %v1265 = vsub.f32 1.0, %v1264
      %v1266 = vmul.f32 %v1263, %v1265
      %v1267 = vadd.f32 %v1263, %v1266
      %vm1268 = vweird.f32 %v985
      %vm1269 = vweird.f32 %v1263
      %vm1270 = vmor %vm1268, %vm1269
      %v1271 = vsel %vm1270, %v1263, %v1267
      %v1272 = vand.u32 2147483647, %v985
      %vm1273 = vcmp.eq.f32.partialorder %v1272, 8.507059e+37
      %v1274 = vand.u32 %v985, 2147483648
      %v1275 = vor.u32 1.1754944e-38, %v1274
      %v1276 = vsel %vm1273, %v1275, %v1271
      %v1277 = vmul.f32 1.0, %v1276
      %v1278 = vrcp.pop %v987
      %v1279 = vmul.f32 %v987, %v1278
      %v1280 = vsub.f32 1.0, %v1279
      %v1281 = vmul.f32 %v1278, %v1280
      %v1282 = vadd.f32 %v1278, %v1281
      %vm1283 = vweird.f32 %v987
      %vm1284 = vweird.f32 %v1278
      %vm1285 = vmor %vm1283, %vm1284
      %v1286 = vsel %vm1285, %v1278, %v1282
      %v1287 = vand.u32 2147483647, %v987
      %vm1288 = vcmp.eq.f32.partialorder %v1287, 8.507059e+37
      %v1289 = vand.u32 %v987, 2147483648
      %v1290 = vor.u32 1.1754944e-38, %v1289
      %v1291 = vsel %vm1288, %v1290, %v1286
      %v1292 = vmul.f32 1.0, %v1291
      %v1293 = vmul.f32 %v1006, %v1067
      %v1294 = vmul.f32 %v1009, %v1082
      %v1295 = vmul.f32 %v1012, %v1097
      %v1296 = vmul.f32 %v1015, %v1112
      %v1297 = vmul.f32 %v1018, %v1127
      %v1298 = vmul.f32 %v1021, %v1142
      %v1299 = vmul.f32 %v1024, %v1157
      %v1300 = vmul.f32 %v1027, %v1172
      %v1301 = vmul.f32 %v1030, %v1187
      %v1302 = vmul.f32 %v1033, %v1202
      %v1303 = vmul.f32 %v1036, %v1217
      %v1304 = vmul.f32 %v1039, %v1232
      %v1305 = vmul.f32 %v1042, %v1247
      %v1306 = vmul.f32 %v1045, %v1262
      %v1307 = vmul.f32 %v1048, %v1277
      %v1308 = vmul.f32 %v1051, %v1292
      %v1309 = vld [vmem:[#allocation6] sm:$0xff]
      %v1310 = vld [vmem:[#allocation6 + $0x8] sm:$0xff]
      %v1311 = vld [vmem:[#allocation6 + $0x10] sm:$0xff]
      %v1312 = vld [vmem:[#allocation6 + $0x18] sm:$0xff]
      %v1313 = vld [vmem:[#allocation6 + $0x20] sm:$0xff]
      %v1314 = vld [vmem:[#allocation6 + $0x28] sm:$0xff]
      %v1315 = vld [vmem:[#allocation6 + $0x30] sm:$0xff]
      %v1316 = vld [vmem:[#allocation6 + $0x38] sm:$0xff]
      %v1317 = vld [vmem:[#allocation6 + $0x40] sm:$0xff]
      %v1318 = vld [vmem:[#allocation6 + $0x48] sm:$0xff]
      %v1319 = vld [vmem:[#allocation6 + $0x50] sm:$0xff]
      %v1320 = vld [vmem:[#allocation6 + $0x58] sm:$0xff]
      %v1321 = vld [vmem:[#allocation6 + $0x60] sm:$0xff]
      %v1322 = vld [vmem:[#allocation6 + $0x68] sm:$0xff]
      %v1323 = vld [vmem:[#allocation6 + $0x70] sm:$0xff]
      %v1324 = vld [vmem:[#allocation6 + $0x78] sm:$0xff]
      %v1325 = vld [vmem:[%s3] sm:$0xff]
      %v1327 = vsel %vm714, %v1293, 0
      %v1330 = vsel %vm714, %v1294, 0
      %v1333 = vsel %vm714, %v1295, 0
      %v1336 = vsel %vm714, %v1296, 0
      %v1339 = vsel %vm714, %v1297, 0
      %v1342 = vsel %vm714, %v1298, 0
      %v1345 = vsel %vm714, %v1299, 0
      %v1348 = vsel %vm714, %v1300, 0
      %v1351 = vsel %vm714, %v1301, 0
      %v1354 = vsel %vm714, %v1302, 0
      %v1357 = vsel %vm714, %v1303, 0
      %v1360 = vsel %vm714, %v1304, 0
      %v1363 = vsel %vm714, %v1305, 0
      %v1366 = vsel %vm714, %v1306, 0
      %v1369 = vsel %vm714, %v1307, 0
      %v1372 = vsel %vm714, %v1308, 0
      %1374 = vmatpush.msra.mxu0 0.0
      %1375 = vmatpush.msra.mxu0 0.0
      %1376 = vmatpush.msra.mxu0 0.0
      %1377 = vmatpush.msra.mxu0 0.0
      %1378 = vmatpush.msra.mxu0 0.0
      %1379 = vmatpush.msra.mxu0 0.0
      %1380 = vmatpush.msra.mxu0 0.0
      %1381 = vmatpush.msra.mxu0 0.0
      %1382 = vmatpush.msra.mxu0 0.0
      %1383 = vmatpush.msra.mxu0 0.0
      %1384 = vmatpush.msra.mxu0 0.0
      %1385 = vmatpush.msra.mxu0 0.0
      %1386 = vmatpush.msra.mxu0 0.0
      %1387 = vmatpush.msra.mxu0 0.0
      %1388 = vmatpush.msra.mxu0 0.0
      %1389 = vmatpush.msra.mxu0 %v1325
      %1390 = vmatmul.f32.gmra.mxu0 %v1327
      %v1391 = vpop.f32.mrf.mxu0
      %v1392 = vadd.f32 0.0, %v1391
      %1393 = vmatmul.f32.gmra.mxu0 %v1330
      %v1394 = vpop.f32.mrf.mxu0
      %v1395 = vadd.f32 0.0, %v1394
      %1396 = vmatmul.f32.gmra.mxu0 %v1333
      %v1397 = vpop.f32.mrf.mxu0
      %v1398 = vadd.f32 0.0, %v1397
      %1399 = vmatmul.f32.gmra.mxu0 %v1336
      %v1400 = vpop.f32.mrf.mxu0
      %v1401 = vadd.f32 0.0, %v1400
      %1402 = vmatmul.f32.gmra.mxu0 %v1339
      %v1403 = vpop.f32.mrf.mxu0
      %v1404 = vadd.f32 0.0, %v1403
      %1405 = vmatmul.f32.gmra.mxu0 %v1342
      %v1406 = vpop.f32.mrf.mxu0
      %v1407 = vadd.f32 0.0, %v1406
      %1408 = vmatmul.f32.gmra.mxu0 %v1345
      %v1409 = vpop.f32.mrf.mxu0
      %v1410 = vadd.f32 0.0, %v1409
      %1411 = vmatmul.f32.gmra.mxu0 %v1348
      %v1412 = vpop.f32.mrf.mxu0
      %v1413 = vadd.f32 0.0, %v1412
      %1414 = vmatmul.f32.gmra.mxu0 %v1351
      %v1415 = vpop.f32.mrf.mxu0
      %v1416 = vadd.f32 0.0, %v1415
      %1417 = vmatmul.f32.gmra.mxu0 %v1354
      %v1418 = vpop.f32.mrf.mxu0
      %v1419 = vadd.f32 0.0, %v1418
      %1420 = vmatmul.f32.gmra.mxu0 %v1357
      %v1421 = vpop.f32.mrf.mxu0
      %v1422 = vadd.f32 0.0, %v1421
      %1423 = vmatmul.f32.gmra.mxu0 %v1360
      %v1424 = vpop.f32.mrf.mxu0
      %v1425 = vadd.f32 0.0, %v1424
      %1426 = vmatmul.f32.gmra.mxu0 %v1363
      %v1427 = vpop.f32.mrf.mxu0
      %v1428 = vadd.f32 0.0, %v1427
      %1429 = vmatmul.f32.gmra.mxu0 %v1366
      %v1430 = vpop.f32.mrf.mxu0
      %v1431 = vadd.f32 0.0, %v1430
      %1432 = vmatmul.f32.gmra.mxu0 %v1369
      %v1433 = vpop.f32.mrf.mxu0
      %v1434 = vadd.f32 0.0, %v1433
      %1435 = vmatmul.f32.gmra.mxu0 %v1372
      %v1436 = vpop.f32.mrf.mxu0
      %v1437 = vadd.f32 0.0, %v1436
      %1438 = vdwg.mxu0
      %v1439 = vadd.f32 %v1309, %v1392
      %v1440 = vadd.f32 %v1310, %v1395
      %v1441 = vadd.f32 %v1311, %v1398
      %v1442 = vadd.f32 %v1312, %v1401
      %v1443 = vadd.f32 %v1313, %v1404
      %v1444 = vadd.f32 %v1314, %v1407
      %v1445 = vadd.f32 %v1315, %v1410
      %v1446 = vadd.f32 %v1316, %v1413
      %v1447 = vadd.f32 %v1317, %v1416
      %v1448 = vadd.f32 %v1318, %v1419
      %v1449 = vadd.f32 %v1319, %v1422
      %v1450 = vadd.f32 %v1320, %v1425
      %v1451 = vadd.f32 %v1321, %v1428
      %v1452 = vadd.f32 %v1322, %v1431
      %v1453 = vadd.f32 %v1323, %v1434
      %v1454 = vadd.f32 %v1324, %v1437
      %1455 = vst.msk [vmem:[#allocation6] sm:$0xff] %vm318, %v1439
      %1456 = vst.msk [vmem:[#allocation6 + $0x8] sm:$0xff] %vm318, %v1440
      %1457 = vst.msk [vmem:[#allocation6 + $0x10] sm:$0xff] %vm318, %v1441
      %1458 = vst.msk [vmem:[#allocation6 + $0x18] sm:$0xff] %vm318, %v1442
      %1459 = vst.msk [vmem:[#allocation6 + $0x20] sm:$0xff] %vm318, %v1443
      %1460 = vst.msk [vmem:[#allocation6 + $0x28] sm:$0xff] %vm318, %v1444
      %1461 = vst.msk [vmem:[#allocation6 + $0x30] sm:$0xff] %vm318, %v1445
      %1462 = vst.msk [vmem:[#allocation6 + $0x38] sm:$0xff] %vm318, %v1446
      %1463 = vst.msk [vmem:[#allocation6 + $0x40] sm:$0xff] %vm318, %v1447
      %1464 = vst.msk [vmem:[#allocation6 + $0x48] sm:$0xff] %vm318, %v1448
      %1465 = vst.msk [vmem:[#allocation6 + $0x50] sm:$0xff] %vm318, %v1449
      %1466 = vst.msk [vmem:[#allocation6 + $0x58] sm:$0xff] %vm318, %v1450
      %1467 = vst.msk [vmem:[#allocation6 + $0x60] sm:$0xff] %vm318, %v1451
      %1468 = vst.msk [vmem:[#allocation6 + $0x68] sm:$0xff] %vm318, %v1452
      %1469 = vst.msk [vmem:[#allocation6 + $0x70] sm:$0xff] %vm318, %v1453
      %1470 = vst.msk [vmem:[#allocation6 + $0x78] sm:$0xff] %vm318, %v1454
      %v1471 = vld [vmem:[#allocation3] sm:$0xff]
      %v1472 = vld [vmem:[#allocation3 + $0x8] sm:$0xff]
      %v1473 = vld [vmem:[#allocation3 + $0x10] sm:$0xff]
      %v1474 = vld [vmem:[#allocation3 + $0x18] sm:$0xff]
      %v1475 = vld [vmem:[#allocation3 + $0x20] sm:$0xff]
      %v1476 = vld [vmem:[#allocation3 + $0x28] sm:$0xff]
      %v1477 = vld [vmem:[#allocation3 + $0x30] sm:$0xff]
      %v1478 = vld [vmem:[#allocation3 + $0x38] sm:$0xff]
      %v1479 = vld [vmem:[#allocation3 + $0x40] sm:$0xff]
      %v1480 = vld [vmem:[#allocation3 + $0x48] sm:$0xff]
      %v1481 = vld [vmem:[#allocation3 + $0x50] sm:$0xff]
      %v1482 = vld [vmem:[#allocation3 + $0x58] sm:$0xff]
      %v1483 = vld [vmem:[#allocation3 + $0x60] sm:$0xff]
      %v1484 = vld [vmem:[#allocation3 + $0x68] sm:$0xff]
      %v1485 = vld [vmem:[#allocation3 + $0x70] sm:$0xff]
      %v1486 = vld [vmem:[#allocation3 + $0x78] sm:$0xff]
      %v1487 = vld [vmem:[#allocation4] sm:$0xff]
      %v1488 = vld [vmem:[#allocation4 + $0x8] sm:$0xff]
      %v1489 = vld [vmem:[#allocation4 + $0x10] sm:$0xff]
      %v1490 = vld [vmem:[#allocation4 + $0x18] sm:$0xff]
      %v1491 = vld [vmem:[#allocation4 + $0x20] sm:$0xff]
      %v1492 = vld [vmem:[#allocation4 + $0x28] sm:$0xff]
      %v1493 = vld [vmem:[#allocation4 + $0x30] sm:$0xff]
      %v1494 = vld [vmem:[#allocation4 + $0x38] sm:$0xff]
      %v1495 = vld [vmem:[#allocation4 + $0x40] sm:$0xff]
      %v1496 = vld [vmem:[#allocation4 + $0x48] sm:$0xff]
      %v1497 = vld [vmem:[#allocation4 + $0x50] sm:$0xff]
      %v1498 = vld [vmem:[#allocation4 + $0x58] sm:$0xff]
      %v1499 = vld [vmem:[#allocation4 + $0x60] sm:$0xff]
      %v1500 = vld [vmem:[#allocation4 + $0x68] sm:$0xff]
      %v1501 = vld [vmem:[#allocation4 + $0x70] sm:$0xff]
      %v1502 = vld [vmem:[#allocation4 + $0x78] sm:$0xff]
      %v1503 = vld [vmem:[#allocation5] sm:$0xff]
      %v1504 = vld [vmem:[#allocation5 + $0x8] sm:$0xff]
      %v1505 = vld [vmem:[#allocation5 + $0x10] sm:$0xff]
      %v1506 = vld [vmem:[#allocation5 + $0x18] sm:$0xff]
      %v1507 = vld [vmem:[#allocation5 + $0x20] sm:$0xff]
      %v1508 = vld [vmem:[#allocation5 + $0x28] sm:$0xff]
      %v1509 = vld [vmem:[#allocation5 + $0x30] sm:$0xff]
      %v1510 = vld [vmem:[#allocation5 + $0x38] sm:$0xff]
      %v1511 = vld [vmem:[#allocation5 + $0x40] sm:$0xff]
      %v1512 = vld [vmem:[#allocation5 + $0x48] sm:$0xff]
      %v1513 = vld [vmem:[#allocation5 + $0x50] sm:$0xff]
      %v1514 = vld [vmem:[#allocation5 + $0x58] sm:$0xff]
      %v1515 = vld [vmem:[#allocation5 + $0x60] sm:$0xff]
      %v1516 = vld [vmem:[#allocation5 + $0x68] sm:$0xff]
      %v1517 = vld [vmem:[#allocation5 + $0x70] sm:$0xff]
      %v1518 = vld [vmem:[#allocation5 + $0x78] sm:$0xff]
      %v1519 = vld [vmem:[#allocation2] sm:$0xff]
      %v1520 = vld [vmem:[#allocation2 + $0x8] sm:$0xff]
      %v1521 = vld [vmem:[#allocation2 + $0x10] sm:$0xff]
      %v1522 = vld [vmem:[#allocation2 + $0x18] sm:$0xff]
      %v1523 = vld [vmem:[#allocation2 + $0x20] sm:$0xff]
      %v1524 = vld [vmem:[#allocation2 + $0x28] sm:$0xff]
      %v1525 = vld [vmem:[#allocation2 + $0x30] sm:$0xff]
      %v1526 = vld [vmem:[#allocation2 + $0x38] sm:$0xff]
      %v1527 = vld [vmem:[#allocation2 + $0x40] sm:$0xff]
      %v1528 = vld [vmem:[#allocation2 + $0x48] sm:$0xff]
      %v1529 = vld [vmem:[#allocation2 + $0x50] sm:$0xff]
      %v1530 = vld [vmem:[#allocation2 + $0x58] sm:$0xff]
      %v1531 = vld [vmem:[#allocation2 + $0x60] sm:$0xff]
      %v1532 = vld [vmem:[#allocation2 + $0x68] sm:$0xff]
      %v1533 = vld [vmem:[#allocation2 + $0x70] sm:$0xff]
      %v1534 = vld [vmem:[#allocation2 + $0x78] sm:$0xff]
      %1551 = vrot.lane.b32.xlu0 %v1471, 120
      %v1552 = vpop.permute.xlu0 %1551
      %1553 = vrot.lane.b32.xlu0 %v1472, 120
      %v1554 = vpop.permute.xlu0 %1553
      %1555 = vrot.lane.b32.xlu0 %v1473, 120
      %v1556 = vpop.permute.xlu0 %1555
      %1557 = vrot.lane.b32.xlu0 %v1474, 120
      %v1558 = vpop.permute.xlu0 %1557
      %1559 = vrot.lane.b32.xlu0 %v1475, 120
      %v1560 = vpop.permute.xlu0 %1559
      %1561 = vrot.lane.b32.xlu0 %v1476, 120
      %v1562 = vpop.permute.xlu0 %1561
      %1563 = vrot.lane.b32.xlu0 %v1477, 120
      %v1564 = vpop.permute.xlu0 %1563
      %1565 = vrot.lane.b32.xlu0 %v1478, 120
      %v1566 = vpop.permute.xlu0 %1565
      %1567 = vrot.lane.b32.xlu0 %v1479, 120
      %v1568 = vpop.permute.xlu0 %1567
      %1569 = vrot.lane.b32.xlu0 %v1480, 120
      %v1570 = vpop.permute.xlu0 %1569
      %1571 = vrot.lane.b32.xlu0 %v1481, 120
      %v1572 = vpop.permute.xlu0 %1571
      %1573 = vrot.lane.b32.xlu0 %v1482, 120
      %v1574 = vpop.permute.xlu0 %1573
      %1575 = vrot.lane.b32.xlu0 %v1483, 120
      %v1576 = vpop.permute.xlu0 %1575
      %1577 = vrot.lane.b32.xlu0 %v1484, 120
      %v1578 = vpop.permute.xlu0 %1577
      %1579 = vrot.lane.b32.xlu0 %v1485, 120
      %v1580 = vpop.permute.xlu0 %1579
      %1581 = vrot.lane.b32.xlu0 %v1486, 120
      %v1582 = vpop.permute.xlu0 %1581
      %1599 = vrot.lane.b32.xlu0 %v1487, 120
      %v1600 = vpop.permute.xlu0 %1599
      %1601 = vrot.lane.b32.xlu0 %v1488, 120
      %v1602 = vpop.permute.xlu0 %1601
      %1603 = vrot.lane.b32.xlu0 %v1489, 120
      %v1604 = vpop.permute.xlu0 %1603
      %1605 = vrot.lane.b32.xlu0 %v1490, 120
      %v1606 = vpop.permute.xlu0 %1605
      %1607 = vrot.lane.b32.xlu0 %v1491, 120
      %v1608 = vpop.permute.xlu0 %1607
      %1609 = vrot.lane.b32.xlu0 %v1492, 120
      %v1610 = vpop.permute.xlu0 %1609
      %1611 = vrot.lane.b32.xlu0 %v1493, 120
      %v1612 = vpop.permute.xlu0 %1611
      %1613 = vrot.lane.b32.xlu0 %v1494, 120
      %v1614 = vpop.permute.xlu0 %1613
      %1615 = vrot.lane.b32.xlu0 %v1495, 120
      %v1616 = vpop.permute.xlu0 %1615
      %1617 = vrot.lane.b32.xlu0 %v1496, 120
      %v1618 = vpop.permute.xlu0 %1617
      %1619 = vrot.lane.b32.xlu0 %v1497, 120
      %v1620 = vpop.permute.xlu0 %1619
      %1621 = vrot.lane.b32.xlu0 %v1498, 120
      %v1622 = vpop.permute.xlu0 %1621
      %1623 = vrot.lane.b32.xlu0 %v1499, 120
      %v1624 = vpop.permute.xlu0 %1623
      %1625 = vrot.lane.b32.xlu0 %v1500, 120
      %v1626 = vpop.permute.xlu0 %1625
      %1627 = vrot.lane.b32.xlu0 %v1501, 120
      %v1628 = vpop.permute.xlu0 %1627
      %1629 = vrot.lane.b32.xlu0 %v1502, 120
      %v1630 = vpop.permute.xlu0 %1629
      %v1631 = vsel %vm714, %v1552, 0
      %v1633 = vsel %vm714, %v1554, 0
      %v1635 = vsel %vm714, %v1556, 0
      %v1637 = vsel %vm714, %v1558, 0
      %v1639 = vsel %vm714, %v1560, 0
      %v1641 = vsel %vm714, %v1562, 0
      %v1643 = vsel %vm714, %v1564, 0
      %v1645 = vsel %vm714, %v1566, 0
      %v1647 = vsel %vm714, %v1568, 0
      %v1649 = vsel %vm714, %v1570, 0
      %v1651 = vsel %vm714, %v1572, 0
      %v1653 = vsel %vm714, %v1574, 0
      %v1655 = vsel %vm714, %v1576, 0
      %v1657 = vsel %vm714, %v1578, 0
      %v1659 = vsel %vm714, %v1580, 0
      %v1661 = vsel %vm714, %v1582, 0
      %v1663 = vsel %vm714, %v1600, 0
      %v1665 = vsel %vm714, %v1602, 0
      %v1667 = vsel %vm714, %v1604, 0
      %v1669 = vsel %vm714, %v1606, 0
      %v1671 = vsel %vm714, %v1608, 0
      %v1673 = vsel %vm714, %v1610, 0
      %v1675 = vsel %vm714, %v1612, 0
      %v1677 = vsel %vm714, %v1614, 0
      %v1679 = vsel %vm714, %v1616, 0
      %v1681 = vsel %vm714, %v1618, 0
      %v1683 = vsel %vm714, %v1620, 0
      %v1685 = vsel %vm714, %v1622, 0
      %v1687 = vsel %vm714, %v1624, 0
      %v1689 = vsel %vm714, %v1626, 0
      %v1691 = vsel %vm714, %v1628, 0
      %v1693 = vsel %vm714, %v1630, 0
      %1695 = vmatpush.xpose.msra.mxu0 %v1693
      %1696 = vmatpush.xpose.msra.mxu0 %v1691
      %1697 = vmatpush.xpose.msra.mxu0 %v1689
      %1698 = vmatpush.xpose.msra.mxu0 %v1687
      %1699 = vmatpush.xpose.msra.mxu0 %v1685
      %1700 = vmatpush.xpose.msra.mxu0 %v1683
      %1701 = vmatpush.xpose.msra.mxu0 %v1681
      %1702 = vmatpush.xpose.msra.mxu0 %v1679
      %1703 = vmatpush.xpose.msra.mxu0 %v1677
      %1704 = vmatpush.xpose.msra.mxu0 %v1675
      %1705 = vmatpush.xpose.msra.mxu0 %v1673
      %1706 = vmatpush.xpose.msra.mxu0 %v1671
      %1707 = vmatpush.xpose.msra.mxu0 %v1669
      %1708 = vmatpush.xpose.msra.mxu0 %v1667
      %1709 = vmatpush.xpose.msra.mxu0 %v1665
      %1710 = vmatpush.xpose.msra.mxu0 %v1663
      %1711 = vmatmul.f32.gmra.mxu0 %v1631
      %v1712 = vpop.f32.mrf.mxu0
      %v1713 = vadd.f32 %v1519, %v1712
      %1714 = vmatmul.f32.gmra.mxu0 %v1633
      %v1715 = vpop.f32.mrf.mxu0
      %v1716 = vadd.f32 %v1520, %v1715
      %1717 = vmatmul.f32.gmra.mxu0 %v1635
      %v1718 = vpop.f32.mrf.mxu0
      %v1719 = vadd.f32 %v1521, %v1718
      %1720 = vmatmul.f32.gmra.mxu0 %v1637
      %v1721 = vpop.f32.mrf.mxu0
      %v1722 = vadd.f32 %v1522, %v1721
      %1723 = vmatmul.f32.gmra.mxu0 %v1639
      %v1724 = vpop.f32.mrf.mxu0
      %v1725 = vadd.f32 %v1523, %v1724
      %1726 = vmatmul.f32.gmra.mxu0 %v1641
      %v1727 = vpop.f32.mrf.mxu0
      %v1728 = vadd.f32 %v1524, %v1727
      %1729 = vmatmul.f32.gmra.mxu0 %v1643
      %v1730 = vpop.f32.mrf.mxu0
      %v1731 = vadd.f32 %v1525, %v1730
      %1732 = vmatmul.f32.gmra.mxu0 %v1645
      %v1733 = vpop.f32.mrf.mxu0
      %v1734 = vadd.f32 %v1526, %v1733
      %1735 = vmatmul.f32.gmra.mxu0 %v1647
      %v1736 = vpop.f32.mrf.mxu0
      %v1737 = vadd.f32 %v1527, %v1736
      %1738 = vmatmul.f32.gmra.mxu0 %v1649
      %v1739 = vpop.f32.mrf.mxu0
      %v1740 = vadd.f32 %v1528, %v1739
      %1741 = vmatmul.f32.gmra.mxu0 %v1651
      %v1742 = vpop.f32.mrf.mxu0
      %v1743 = vadd.f32 %v1529, %v1742
      %1744 = vmatmul.f32.gmra.mxu0 %v1653
      %v1745 = vpop.f32.mrf.mxu0
      %v1746 = vadd.f32 %v1530, %v1745
      %1747 = vmatmul.f32.gmra.mxu0 %v1655
      %v1748 = vpop.f32.mrf.mxu0
      %v1749 = vadd.f32 %v1531, %v1748
      %1750 = vmatmul.f32.gmra.mxu0 %v1657
      %v1751 = vpop.f32.mrf.mxu0
      %v1752 = vadd.f32 %v1532, %v1751
      %1753 = vmatmul.f32.gmra.mxu0 %v1659
      %v1754 = vpop.f32.mrf.mxu0
      %v1755 = vadd.f32 %v1533, %v1754
      %1756 = vmatmul.f32.gmra.mxu0 %v1661
      %v1757 = vpop.f32.mrf.mxu0
      %v1758 = vadd.f32 %v1534, %v1757
      %1759 = vdwg.mxu0
      %1760 = vmax.xlane.f32.xlu0 %v1713
      %v1761 = vpop.xlane.xlu0 %1760
      %1762 = vmax.xlane.f32.xlu0 %v1716
      %v1763 = vpop.xlane.xlu0 %1762
      %1764 = vmax.xlane.f32.xlu0 %v1719
      %v1765 = vpop.xlane.xlu0 %1764
      %1766 = vmax.xlane.f32.xlu0 %v1722
      %v1767 = vpop.xlane.xlu0 %1766
      %1768 = vmax.xlane.f32.xlu0 %v1725
      %v1769 = vpop.xlane.xlu0 %1768
      %1770 = vmax.xlane.f32.xlu0 %v1728
      %v1771 = vpop.xlane.xlu0 %1770
      %1772 = vmax.xlane.f32.xlu0 %v1731
      %v1773 = vpop.xlane.xlu0 %1772
      %1774 = vmax.xlane.f32.xlu0 %v1734
      %v1775 = vpop.xlane.xlu0 %1774
      %1776 = vmax.xlane.f32.xlu0 %v1737
      %v1777 = vpop.xlane.xlu0 %1776
      %1778 = vmax.xlane.f32.xlu0 %v1740
      %v1779 = vpop.xlane.xlu0 %1778
      %1780 = vmax.xlane.f32.xlu0 %v1743
      %v1781 = vpop.xlane.xlu0 %1780
      %1782 = vmax.xlane.f32.xlu0 %v1746
      %v1783 = vpop.xlane.xlu0 %1782
      %1784 = vmax.xlane.f32.xlu0 %v1749
      %v1785 = vpop.xlane.xlu0 %1784
      %1786 = vmax.xlane.f32.xlu0 %v1752
      %v1787 = vpop.xlane.xlu0 %1786
      %1788 = vmax.xlane.f32.xlu0 %v1755
      %v1789 = vpop.xlane.xlu0 %1788
      %1790 = vmax.xlane.f32.xlu0 %v1758
      %v1791 = vpop.xlane.xlu0 %1790
      %v1792 = vsub.f32 %v1713, %v1761
      %v1793 = vsub.f32 %v1716, %v1763
      %v1794 = vsub.f32 %v1719, %v1765
      %v1795 = vsub.f32 %v1722, %v1767
      %v1796 = vsub.f32 %v1725, %v1769
      %v1797 = vsub.f32 %v1728, %v1771
      %v1798 = vsub.f32 %v1731, %v1773
      %v1799 = vsub.f32 %v1734, %v1775
      %v1800 = vsub.f32 %v1737, %v1777
      %v1801 = vsub.f32 %v1740, %v1779
      %v1802 = vsub.f32 %v1743, %v1781
      %v1803 = vsub.f32 %v1746, %v1783
      %v1804 = vsub.f32 %v1749, %v1785
      %v1805 = vsub.f32 %v1752, %v1787
      %v1806 = vsub.f32 %v1755, %v1789
      %v1807 = vsub.f32 %v1758, %v1791
      %v1808 = vmul.f32 %v1792, 1.442695
      %v1809 = vpow.pop %v1808
      %v1810 = vmul.f32 %v1793, 1.442695
      %v1811 = vpow.pop %v1810
      %v1812 = vmul.f32 %v1794, 1.442695
      %v1813 = vpow.pop %v1812
      %v1814 = vmul.f32 %v1795, 1.442695
      %v1815 = vpow.pop %v1814
      %v1816 = vmul.f32 %v1796, 1.442695
      %v1817 = vpow.pop %v1816
      %v1818 = vmul.f32 %v1797, 1.442695
      %v1819 = vpow.pop %v1818
      %v1820 = vmul.f32 %v1798, 1.442695
      %v1821 = vpow.pop %v1820
      %v1822 = vmul.f32 %v1799, 1.442695
      %v1823 = vpow.pop %v1822
      %v1824 = vmul.f32 %v1800, 1.442695
      %v1825 = vpow.pop %v1824
      %v1826 = vmul.f32 %v1801, 1.442695
      %v1827 = vpow.pop %v1826
      %v1828 = vmul.f32 %v1802, 1.442695
      %v1829 = vpow.pop %v1828
      %v1830 = vmul.f32 %v1803, 1.442695
      %v1831 = vpow.pop %v1830
      %v1832 = vmul.f32 %v1804, 1.442695
      %v1833 = vpow.pop %v1832
      %v1834 = vmul.f32 %v1805, 1.442695
      %v1835 = vpow.pop %v1834
      %v1836 = vmul.f32 %v1806, 1.442695
      %v1837 = vpow.pop %v1836
      %v1838 = vmul.f32 %v1807, 1.442695
      %v1839 = vpow.pop %v1838
      %1840 = vadd.xlane.f32.xlu0 %v1809
      %v1841 = vpop.xlane.xlu0 %1840
      %1842 = vadd.xlane.f32.xlu0 %v1811
      %v1843 = vpop.xlane.xlu0 %1842
      %1844 = vadd.xlane.f32.xlu0 %v1813
      %v1845 = vpop.xlane.xlu0 %1844
      %1846 = vadd.xlane.f32.xlu0 %v1815
      %v1847 = vpop.xlane.xlu0 %1846
      %1848 = vadd.xlane.f32.xlu0 %v1817
      %v1849 = vpop.xlane.xlu0 %1848
      %1850 = vadd.xlane.f32.xlu0 %v1819
      %v1851 = vpop.xlane.xlu0 %1850
      %1852 = vadd.xlane.f32.xlu0 %v1821
      %v1853 = vpop.xlane.xlu0 %1852
      %1854 = vadd.xlane.f32.xlu0 %v1823
      %v1855 = vpop.xlane.xlu0 %1854
      %1856 = vadd.xlane.f32.xlu0 %v1825
      %v1857 = vpop.xlane.xlu0 %1856
      %1858 = vadd.xlane.f32.xlu0 %v1827
      %v1859 = vpop.xlane.xlu0 %1858
      %1860 = vadd.xlane.f32.xlu0 %v1829
      %v1861 = vpop.xlane.xlu0 %1860
      %1862 = vadd.xlane.f32.xlu0 %v1831
      %v1863 = vpop.xlane.xlu0 %1862
      %1864 = vadd.xlane.f32.xlu0 %v1833
      %v1865 = vpop.xlane.xlu0 %1864
      %1866 = vadd.xlane.f32.xlu0 %v1835
      %v1867 = vpop.xlane.xlu0 %1866
      %1868 = vadd.xlane.f32.xlu0 %v1837
      %v1869 = vpop.xlane.xlu0 %1868
      %1870 = vadd.xlane.f32.xlu0 %v1839
      %v1871 = vpop.xlane.xlu0 %1870
      %1888 = vrot.lane.b32.xlu0 %v1503, 120
      %v1889 = vpop.permute.xlu0 %1888
      %1890 = vrot.lane.b32.xlu0 %v1504, 120
      %v1891 = vpop.permute.xlu0 %1890
      %1892 = vrot.lane.b32.xlu0 %v1505, 120
      %v1893 = vpop.permute.xlu0 %1892
      %1894 = vrot.lane.b32.xlu0 %v1506, 120
      %v1895 = vpop.permute.xlu0 %1894
      %1896 = vrot.lane.b32.xlu0 %v1507, 120
      %v1897 = vpop.permute.xlu0 %1896
      %1898 = vrot.lane.b32.xlu0 %v1508, 120
      %v1899 = vpop.permute.xlu0 %1898
      %1900 = vrot.lane.b32.xlu0 %v1509, 120
      %v1901 = vpop.permute.xlu0 %1900
      %1902 = vrot.lane.b32.xlu0 %v1510, 120
      %v1903 = vpop.permute.xlu0 %1902
      %1904 = vrot.lane.b32.xlu0 %v1511, 120
      %v1905 = vpop.permute.xlu0 %1904
      %1906 = vrot.lane.b32.xlu0 %v1512, 120
      %v1907 = vpop.permute.xlu0 %1906
      %1908 = vrot.lane.b32.xlu0 %v1513, 120
      %v1909 = vpop.permute.xlu0 %1908
      %1910 = vrot.lane.b32.xlu0 %v1514, 120
      %v1911 = vpop.permute.xlu0 %1910
      %1912 = vrot.lane.b32.xlu0 %v1515, 120
      %v1913 = vpop.permute.xlu0 %1912
      %1914 = vrot.lane.b32.xlu0 %v1516, 120
      %v1915 = vpop.permute.xlu0 %1914
      %1916 = vrot.lane.b32.xlu0 %v1517, 120
      %v1917 = vpop.permute.xlu0 %1916
      %1918 = vrot.lane.b32.xlu0 %v1518, 120
      %v1919 = vpop.permute.xlu0 %1918
      %1936 = vmatpush.msra.mxu0 %v1919
      %1937 = vmatpush.msra.mxu0 %v1917
      %1938 = vmatpush.msra.mxu0 %v1915
      %1939 = vmatpush.msra.mxu0 %v1913
      %1940 = vmatpush.msra.mxu0 %v1911
      %1941 = vmatpush.msra.mxu0 %v1909
      %1942 = vmatpush.msra.mxu0 %v1907
      %1943 = vmatpush.msra.mxu0 %v1905
      %1944 = vmatpush.msra.mxu0 %v1903
      %1945 = vmatpush.msra.mxu0 %v1901
      %1946 = vmatpush.msra.mxu0 %v1899
      %1947 = vmatpush.msra.mxu0 %v1897
      %1948 = vmatpush.msra.mxu0 %v1895
      %1949 = vmatpush.msra.mxu0 %v1893
      %1950 = vmatpush.msra.mxu0 %v1891
      %1951 = vmatpush.msra.mxu0 %v1889
      %1952 = vmatmul.f32.gmra.mxu0 %v1809
      %v1953 = vpop.f32.mrf.mxu0
      %v1954 = vadd.f32 0.0, %v1953
      %1955 = vmatmul.f32.gmra.mxu0 %v1811
      %v1956 = vpop.f32.mrf.mxu0
      %v1957 = vadd.f32 0.0, %v1956
      %1958 = vmatmul.f32.gmra.mxu0 %v1813
      %v1959 = vpop.f32.mrf.mxu0
      %v1960 = vadd.f32 0.0, %v1959
      %1961 = vmatmul.f32.gmra.mxu0 %v1815
      %v1962 = vpop.f32.mrf.mxu0
      %v1963 = vadd.f32 0.0, %v1962
      %1964 = vmatmul.f32.gmra.mxu0 %v1817
      %v1965 = vpop.f32.mrf.mxu0
      %v1966 = vadd.f32 0.0, %v1965
      %1967 = vmatmul.f32.gmra.mxu0 %v1819
      %v1968 = vpop.f32.mrf.mxu0
      %v1969 = vadd.f32 0.0, %v1968
      %1970 = vmatmul.f32.gmra.mxu0 %v1821
      %v1971 = vpop.f32.mrf.mxu0
      %v1972 = vadd.f32 0.0, %v1971
      %1973 = vmatmul.f32.gmra.mxu0 %v1823
      %v1974 = vpop.f32.mrf.mxu0
      %v1975 = vadd.f32 0.0, %v1974
      %1976 = vmatmul.f32.gmra.mxu0 %v1825
      %v1977 = vpop.f32.mrf.mxu0
      %v1978 = vadd.f32 0.0, %v1977
      %1979 = vmatmul.f32.gmra.mxu0 %v1827
      %v1980 = vpop.f32.mrf.mxu0
      %v1981 = vadd.f32 0.0, %v1980
      %1982 = vmatmul.f32.gmra.mxu0 %v1829
      %v1983 = vpop.f32.mrf.mxu0
      %v1984 = vadd.f32 0.0, %v1983
      %1985 = vmatmul.f32.gmra.mxu0 %v1831
      %v1986 = vpop.f32.mrf.mxu0
      %v1987 = vadd.f32 0.0, %v1986
      %1988 = vmatmul.f32.gmra.mxu0 %v1833
      %v1989 = vpop.f32.mrf.mxu0
      %v1990 = vadd.f32 0.0, %v1989
      %1991 = vmatmul.f32.gmra.mxu0 %v1835
      %v1992 = vpop.f32.mrf.mxu0
      %v1993 = vadd.f32 0.0, %v1992
      %1994 = vmatmul.f32.gmra.mxu0 %v1837
      %v1995 = vpop.f32.mrf.mxu0
      %v1996 = vadd.f32 0.0, %v1995
      %1997 = vmatmul.f32.gmra.mxu0 %v1839
      %v1998 = vpop.f32.mrf.mxu0
      %v1999 = vadd.f32 0.0, %v1998
      %2000 = vdwg.mxu0
      %v2001 = vrcp.pop %v1841
      %v2002 = vmul.f32 %v1841, %v2001
      %v2003 = vsub.f32 1.0, %v2002
      %v2004 = vmul.f32 %v2001, %v2003
      %v2005 = vadd.f32 %v2001, %v2004
      %vm2006 = vweird.f32 %v1841
      %vm2007 = vweird.f32 %v2001
      %vm2008 = vmor %vm2006, %vm2007
      %v2009 = vsel %vm2008, %v2001, %v2005
      %v2010 = vand.u32 2147483647, %v1841
      %vm2011 = vcmp.eq.f32.partialorder %v2010, 8.507059e+37
      %v2012 = vand.u32 %v1841, 2147483648
      %v2013 = vor.u32 1.1754944e-38, %v2012
      %v2014 = vsel %vm2011, %v2013, %v2009
      %v2015 = vmul.f32 1.0, %v2014
      %v2016 = vrcp.pop %v1843
      %v2017 = vmul.f32 %v1843, %v2016
      %v2018 = vsub.f32 1.0, %v2017
      %v2019 = vmul.f32 %v2016, %v2018
      %v2020 = vadd.f32 %v2016, %v2019
      %vm2021 = vweird.f32 %v1843
      %vm2022 = vweird.f32 %v2016
      %vm2023 = vmor %vm2021, %vm2022
      %v2024 = vsel %vm2023, %v2016, %v2020
      %v2025 = vand.u32 2147483647, %v1843
      %vm2026 = vcmp.eq.f32.partialorder %v2025, 8.507059e+37
      %v2027 = vand.u32 %v1843, 2147483648
      %v2028 = vor.u32 1.1754944e-38, %v2027
      %v2029 = vsel %vm2026, %v2028, %v2024
      %v2030 = vmul.f32 1.0, %v2029
      %v2031 = vrcp.pop %v1845
      %v2032 = vmul.f32 %v1845, %v2031
      %v2033 = vsub.f32 1.0, %v2032
      %v2034 = vmul.f32 %v2031, %v2033
      %v2035 = vadd.f32 %v2031, %v2034
      %vm2036 = vweird.f32 %v1845
      %vm2037 = vweird.f32 %v2031
      %vm2038 = vmor %vm2036, %vm2037
      %v2039 = vsel %vm2038, %v2031, %v2035
      %v2040 = vand.u32 2147483647, %v1845
      %vm2041 = vcmp.eq.f32.partialorder %v2040, 8.507059e+37
      %v2042 = vand.u32 %v1845, 2147483648
      %v2043 = vor.u32 1.1754944e-38, %v2042
      %v2044 = vsel %vm2041, %v2043, %v2039
      %v2045 = vmul.f32 1.0, %v2044
      %v2046 = vrcp.pop %v1847
      %v2047 = vmul.f32 %v1847, %v2046
      %v2048 = vsub.f32 1.0, %v2047
      %v2049 = vmul.f32 %v2046, %v2048
      %v2050 = vadd.f32 %v2046, %v2049
      %vm2051 = vweird.f32 %v1847
      %vm2052 = vweird.f32 %v2046
      %vm2053 = vmor %vm2051, %vm2052
      %v2054 = vsel %vm2053, %v2046, %v2050
      %v2055 = vand.u32 2147483647, %v1847
      %vm2056 = vcmp.eq.f32.partialorder %v2055, 8.507059e+37
      %v2057 = vand.u32 %v1847, 2147483648
      %v2058 = vor.u32 1.1754944e-38, %v2057
      %v2059 = vsel %vm2056, %v2058, %v2054
      %v2060 = vmul.f32 1.0, %v2059
      %v2061 = vrcp.pop %v1849
      %v2062 = vmul.f32 %v1849, %v2061
      %v2063 = vsub.f32 1.0, %v2062
      %v2064 = vmul.f32 %v2061, %v2063
      %v2065 = vadd.f32 %v2061, %v2064
      %vm2066 = vweird.f32 %v1849
      %vm2067 = vweird.f32 %v2061
      %vm2068 = vmor %vm2066, %vm2067
      %v2069 = vsel %vm2068, %v2061, %v2065
      %v2070 = vand.u32 2147483647, %v1849
      %vm2071 = vcmp.eq.f32.partialorder %v2070, 8.507059e+37
      %v2072 = vand.u32 %v1849, 2147483648
      %v2073 = vor.u32 1.1754944e-38, %v2072
      %v2074 = vsel %vm2071, %v2073, %v2069
      %v2075 = vmul.f32 1.0, %v2074
      %v2076 = vrcp.pop %v1851
      %v2077 = vmul.f32 %v1851, %v2076
      %v2078 = vsub.f32 1.0, %v2077
      %v2079 = vmul.f32 %v2076, %v2078
      %v2080 = vadd.f32 %v2076, %v2079
      %vm2081 = vweird.f32 %v1851
      %vm2082 = vweird.f32 %v2076
      %vm2083 = vmor %vm2081, %vm2082
      %v2084 = vsel %vm2083, %v2076, %v2080
      %v2085 = vand.u32 2147483647, %v1851
      %vm2086 = vcmp.eq.f32.partialorder %v2085, 8.507059e+37
      %v2087 = vand.u32 %v1851, 2147483648
      %v2088 = vor.u32 1.1754944e-38, %v2087
      %v2089 = vsel %vm2086, %v2088, %v2084
      %v2090 = vmul.f32 1.0, %v2089
      %v2091 = vrcp.pop %v1853
      %v2092 = vmul.f32 %v1853, %v2091
      %v2093 = vsub.f32 1.0, %v2092
      %v2094 = vmul.f32 %v2091, %v2093
      %v2095 = vadd.f32 %v2091, %v2094
      %vm2096 = vweird.f32 %v1853
      %vm2097 = vweird.f32 %v2091
      %vm2098 = vmor %vm2096, %vm2097
      %v2099 = vsel %vm2098, %v2091, %v2095
      %v2100 = vand.u32 2147483647, %v1853
      %vm2101 = vcmp.eq.f32.partialorder %v2100, 8.507059e+37
      %v2102 = vand.u32 %v1853, 2147483648
      %v2103 = vor.u32 1.1754944e-38, %v2102
      %v2104 = vsel %vm2101, %v2103, %v2099
      %v2105 = vmul.f32 1.0, %v2104
      %v2106 = vrcp.pop %v1855
      %v2107 = vmul.f32 %v1855, %v2106
      %v2108 = vsub.f32 1.0, %v2107
      %v2109 = vmul.f32 %v2106, %v2108
      %v2110 = vadd.f32 %v2106, %v2109
      %vm2111 = vweird.f32 %v1855
      %vm2112 = vweird.f32 %v2106
      %vm2113 = vmor %vm2111, %vm2112
      %v2114 = vsel %vm2113, %v2106, %v2110
      %v2115 = vand.u32 2147483647, %v1855
      %vm2116 = vcmp.eq.f32.partialorder %v2115, 8.507059e+37
      %v2117 = vand.u32 %v1855, 2147483648
      %v2118 = vor.u32 1.1754944e-38, %v2117
      %v2119 = vsel %vm2116, %v2118, %v2114
      %v2120 = vmul.f32 1.0, %v2119
      %v2121 = vrcp.pop %v1857
      %v2122 = vmul.f32 %v1857, %v2121
      %v2123 = vsub.f32 1.0, %v2122
      %v2124 = vmul.f32 %v2121, %v2123
      %v2125 = vadd.f32 %v2121, %v2124
      %vm2126 = vweird.f32 %v1857
      %vm2127 = vweird.f32 %v2121
      %vm2128 = vmor %vm2126, %vm2127
      %v2129 = vsel %vm2128, %v2121, %v2125
      %v2130 = vand.u32 2147483647, %v1857
      %vm2131 = vcmp.eq.f32.partialorder %v2130, 8.507059e+37
      %v2132 = vand.u32 %v1857, 2147483648
      %v2133 = vor.u32 1.1754944e-38, %v2132
      %v2134 = vsel %vm2131, %v2133, %v2129
      %v2135 = vmul.f32 1.0, %v2134
      %v2136 = vrcp.pop %v1859
      %v2137 = vmul.f32 %v1859, %v2136
      %v2138 = vsub.f32 1.0, %v2137
      %v2139 = vmul.f32 %v2136, %v2138
      %v2140 = vadd.f32 %v2136, %v2139
      %vm2141 = vweird.f32 %v1859
      %vm2142 = vweird.f32 %v2136
      %vm2143 = vmor %vm2141, %vm2142
      %v2144 = vsel %vm2143, %v2136, %v2140
      %v2145 = vand.u32 2147483647, %v1859
      %vm2146 = vcmp.eq.f32.partialorder %v2145, 8.507059e+37
      %v2147 = vand.u32 %v1859, 2147483648
      %v2148 = vor.u32 1.1754944e-38, %v2147
      %v2149 = vsel %vm2146, %v2148, %v2144
      %v2150 = vmul.f32 1.0, %v2149
      %v2151 = vrcp.pop %v1861
      %v2152 = vmul.f32 %v1861, %v2151
      %v2153 = vsub.f32 1.0, %v2152
      %v2154 = vmul.f32 %v2151, %v2153
      %v2155 = vadd.f32 %v2151, %v2154
      %vm2156 = vweird.f32 %v1861
      %vm2157 = vweird.f32 %v2151
      %vm2158 = vmor %vm2156, %vm2157
      %v2159 = vsel %vm2158, %v2151, %v2155
      %v2160 = vand.u32 2147483647, %v1861
      %vm2161 = vcmp.eq.f32.partialorder %v2160, 8.507059e+37
      %v2162 = vand.u32 %v1861, 2147483648
      %v2163 = vor.u32 1.1754944e-38, %v2162
      %v2164 = vsel %vm2161, %v2163, %v2159
      %v2165 = vmul.f32 1.0, %v2164
      %v2166 = vrcp.pop %v1863
      %v2167 = vmul.f32 %v1863, %v2166
      %v2168 = vsub.f32 1.0, %v2167
      %v2169 = vmul.f32 %v2166, %v2168
      %v2170 = vadd.f32 %v2166, %v2169
      %vm2171 = vweird.f32 %v1863
      %vm2172 = vweird.f32 %v2166
      %vm2173 = vmor %vm2171, %vm2172
      %v2174 = vsel %vm2173, %v2166, %v2170
      %v2175 = vand.u32 2147483647, %v1863
      %vm2176 = vcmp.eq.f32.partialorder %v2175, 8.507059e+37
      %v2177 = vand.u32 %v1863, 2147483648
      %v2178 = vor.u32 1.1754944e-38, %v2177
      %v2179 = vsel %vm2176, %v2178, %v2174
      %v2180 = vmul.f32 1.0, %v2179
      %v2181 = vrcp.pop %v1865
      %v2182 = vmul.f32 %v1865, %v2181
      %v2183 = vsub.f32 1.0, %v2182
      %v2184 = vmul.f32 %v2181, %v2183
      %v2185 = vadd.f32 %v2181, %v2184
      %vm2186 = vweird.f32 %v1865
      %vm2187 = vweird.f32 %v2181
      %vm2188 = vmor %vm2186, %vm2187
      %v2189 = vsel %vm2188, %v2181, %v2185
      %v2190 = vand.u32 2147483647, %v1865
      %vm2191 = vcmp.eq.f32.partialorder %v2190, 8.507059e+37
      %v2192 = vand.u32 %v1865, 2147483648
      %v2193 = vor.u32 1.1754944e-38, %v2192
      %v2194 = vsel %vm2191, %v2193, %v2189
      %v2195 = vmul.f32 1.0, %v2194
      %v2196 = vrcp.pop %v1867
      %v2197 = vmul.f32 %v1867, %v2196
      %v2198 = vsub.f32 1.0, %v2197
      %v2199 = vmul.f32 %v2196, %v2198
      %v2200 = vadd.f32 %v2196, %v2199
      %vm2201 = vweird.f32 %v1867
      %vm2202 = vweird.f32 %v2196
      %vm2203 = vmor %vm2201, %vm2202
      %v2204 = vsel %vm2203, %v2196, %v2200
      %v2205 = vand.u32 2147483647, %v1867
      %vm2206 = vcmp.eq.f32.partialorder %v2205, 8.507059e+37
      %v2207 = vand.u32 %v1867, 2147483648
      %v2208 = vor.u32 1.1754944e-38, %v2207
      %v2209 = vsel %vm2206, %v2208, %v2204
      %v2210 = vmul.f32 1.0, %v2209
      %v2211 = vrcp.pop %v1869
      %v2212 = vmul.f32 %v1869, %v2211
      %v2213 = vsub.f32 1.0, %v2212
      %v2214 = vmul.f32 %v2211, %v2213
      %v2215 = vadd.f32 %v2211, %v2214
      %vm2216 = vweird.f32 %v1869
      %vm2217 = vweird.f32 %v2211
      %vm2218 = vmor %vm2216, %vm2217
      %v2219 = vsel %vm2218, %v2211, %v2215
      %v2220 = vand.u32 2147483647, %v1869
      %vm2221 = vcmp.eq.f32.partialorder %v2220, 8.507059e+37
      %v2222 = vand.u32 %v1869, 2147483648
      %v2223 = vor.u32 1.1754944e-38, %v2222
      %v2224 = vsel %vm2221, %v2223, %v2219
      %v2225 = vmul.f32 1.0, %v2224
      %v2226 = vrcp.pop %v1871
      %v2227 = vmul.f32 %v1871, %v2226
      %v2228 = vsub.f32 1.0, %v2227
      %v2229 = vmul.f32 %v2226, %v2228
      %v2230 = vadd.f32 %v2226, %v2229
      %vm2231 = vweird.f32 %v1871
      %vm2232 = vweird.f32 %v2226
      %vm2233 = vmor %vm2231, %vm2232
      %v2234 = vsel %vm2233, %v2226, %v2230
      %v2235 = vand.u32 2147483647, %v1871
      %vm2236 = vcmp.eq.f32.partialorder %v2235, 8.507059e+37
      %v2237 = vand.u32 %v1871, 2147483648
      %v2238 = vor.u32 1.1754944e-38, %v2237
      %v2239 = vsel %vm2236, %v2238, %v2234
      %v2240 = vmul.f32 1.0, %v2239
      %v2241 = vmul.f32 %v1954, %v2015
      %v2242 = vmul.f32 %v1957, %v2030
      %v2243 = vmul.f32 %v1960, %v2045
      %v2244 = vmul.f32 %v1963, %v2060
      %v2245 = vmul.f32 %v1966, %v2075
      %v2246 = vmul.f32 %v1969, %v2090
      %v2247 = vmul.f32 %v1972, %v2105
      %v2248 = vmul.f32 %v1975, %v2120
      %v2249 = vmul.f32 %v1978, %v2135
      %v2250 = vmul.f32 %v1981, %v2150
      %v2251 = vmul.f32 %v1984, %v2165
      %v2252 = vmul.f32 %v1987, %v2180
      %v2253 = vmul.f32 %v1990, %v2195
      %v2254 = vmul.f32 %v1993, %v2210
      %v2255 = vmul.f32 %v1996, %v2225
      %v2256 = vmul.f32 %v1999, %v2240
      %v2257 = vld [vmem:[#allocation6] sm:$0xff]
      %v2258 = vld [vmem:[#allocation6 + $0x8] sm:$0xff]
      %v2259 = vld [vmem:[#allocation6 + $0x10] sm:$0xff]
      %v2260 = vld [vmem:[#allocation6 + $0x18] sm:$0xff]
      %v2261 = vld [vmem:[#allocation6 + $0x20] sm:$0xff]
      %v2262 = vld [vmem:[#allocation6 + $0x28] sm:$0xff]
      %v2263 = vld [vmem:[#allocation6 + $0x30] sm:$0xff]
      %v2264 = vld [vmem:[#allocation6 + $0x38] sm:$0xff]
      %v2265 = vld [vmem:[#allocation6 + $0x40] sm:$0xff]
      %v2266 = vld [vmem:[#allocation6 + $0x48] sm:$0xff]
      %v2267 = vld [vmem:[#allocation6 + $0x50] sm:$0xff]
      %v2268 = vld [vmem:[#allocation6 + $0x58] sm:$0xff]
      %v2269 = vld [vmem:[#allocation6 + $0x60] sm:$0xff]
      %v2270 = vld [vmem:[#allocation6 + $0x68] sm:$0xff]
      %v2271 = vld [vmem:[#allocation6 + $0x70] sm:$0xff]
      %v2272 = vld [vmem:[#allocation6 + $0x78] sm:$0xff]
      %v2273 = vld [vmem:[%s3 + $0x8] sm:$0xff]
      %v2275 = vsel %vm714, %v2241, 0
      %v2278 = vsel %vm714, %v2242, 0
      %v2281 = vsel %vm714, %v2243, 0
      %v2284 = vsel %vm714, %v2244, 0
      %v2287 = vsel %vm714, %v2245, 0
      %v2290 = vsel %vm714, %v2246, 0
      %v2293 = vsel %vm714, %v2247, 0
      %v2296 = vsel %vm714, %v2248, 0
      %v2299 = vsel %vm714, %v2249, 0
      %v2302 = vsel %vm714, %v2250, 0
      %v2305 = vsel %vm714, %v2251, 0
      %v2308 = vsel %vm714, %v2252, 0
      %v2311 = vsel %vm714, %v2253, 0
      %v2314 = vsel %vm714, %v2254, 0
      %v2317 = vsel %vm714, %v2255, 0
      %v2320 = vsel %vm714, %v2256, 0
      %2322 = vmatpush.msra.mxu0 0.0
      %2323 = vmatpush.msra.mxu0 0.0
      %2324 = vmatpush.msra.mxu0 0.0
      %2325 = vmatpush.msra.mxu0 0.0
      %2326 = vmatpush.msra.mxu0 0.0
      %2327 = vmatpush.msra.mxu0 0.0
      %2328 = vmatpush.msra.mxu0 0.0
      %2329 = vmatpush.msra.mxu0 0.0
      %2330 = vmatpush.msra.mxu0 0.0
      %2331 = vmatpush.msra.mxu0 0.0
      %2332 = vmatpush.msra.mxu0 0.0
      %2333 = vmatpush.msra.mxu0 0.0
      %2334 = vmatpush.msra.mxu0 0.0
      %2335 = vmatpush.msra.mxu0 0.0
      %2336 = vmatpush.msra.mxu0 0.0
      %2337 = vmatpush.msra.mxu0 %v2273
      %2338 = vmatmul.f32.gmra.mxu0 %v2275
      %v2339 = vpop.f32.mrf.mxu0
      %v2340 = vadd.f32 0.0, %v2339
      %2341 = vmatmul.f32.gmra.mxu0 %v2278
      %v2342 = vpop.f32.mrf.mxu0
      %v2343 = vadd.f32 0.0, %v2342
      %2344 = vmatmul.f32.gmra.mxu0 %v2281
      %v2345 = vpop.f32.mrf.mxu0
      %v2346 = vadd.f32 0.0, %v2345
      %2347 = vmatmul.f32.gmra.mxu0 %v2284
      %v2348 = vpop.f32.mrf.mxu0
      %v2349 = vadd.f32 0.0, %v2348
      %2350 = vmatmul.f32.gmra.mxu0 %v2287
      %v2351 = vpop.f32.mrf.mxu0
      %v2352 = vadd.f32 0.0, %v2351
      %2353 = vmatmul.f32.gmra.mxu0 %v2290
      %v2354 = vpop.f32.mrf.mxu0
      %v2355 = vadd.f32 0.0, %v2354
      %2356 = vmatmul.f32.gmra.mxu0 %v2293
      %v2357 = vpop.f32.mrf.mxu0
      %v2358 = vadd.f32 0.0, %v2357
      %2359 = vmatmul.f32.gmra.mxu0 %v2296
      %v2360 = vpop.f32.mrf.mxu0
      %v2361 = vadd.f32 0.0, %v2360
      %2362 = vmatmul.f32.gmra.mxu0 %v2299
      %v2363 = vpop.f32.mrf.mxu0
      %v2364 = vadd.f32 0.0, %v2363
      %2365 = vmatmul.f32.gmra.mxu0 %v2302
      %v2366 = vpop.f32.mrf.mxu0
      %v2367 = vadd.f32 0.0, %v2366
      %2368 = vmatmul.f32.gmra.mxu0 %v2305
      %v2369 = vpop.f32.mrf.mxu0
      %v2370 = vadd.f32 0.0, %v2369
      %2371 = vmatmul.f32.gmra.mxu0 %v2308
      %v2372 = vpop.f32.mrf.mxu0
      %v2373 = vadd.f32 0.0, %v2372
      %2374 = vmatmul.f32.gmra.mxu0 %v2311
      %v2375 = vpop.f32.mrf.mxu0
      %v2376 = vadd.f32 0.0, %v2375
      %2377 = vmatmul.f32.gmra.mxu0 %v2314
      %v2378 = vpop.f32.mrf.mxu0
      %v2379 = vadd.f32 0.0, %v2378
      %2380 = vmatmul.f32.gmra.mxu0 %v2317
      %v2381 = vpop.f32.mrf.mxu0
      %v2382 = vadd.f32 0.0, %v2381
      %2383 = vmatmul.f32.gmra.mxu0 %v2320
      %v2384 = vpop.f32.mrf.mxu0
      %v2385 = vadd.f32 0.0, %v2384
      %2386 = vdwg.mxu0
      %v2387 = vadd.f32 %v2257, %v2340
      %v2388 = vadd.f32 %v2258, %v2343
      %v2389 = vadd.f32 %v2259, %v2346
      %v2390 = vadd.f32 %v2260, %v2349
      %v2391 = vadd.f32 %v2261, %v2352
      %v2392 = vadd.f32 %v2262, %v2355
      %v2393 = vadd.f32 %v2263, %v2358
      %v2394 = vadd.f32 %v2264, %v2361
      %v2395 = vadd.f32 %v2265, %v2364
      %v2396 = vadd.f32 %v2266, %v2367
      %v2397 = vadd.f32 %v2267, %v2370
      %v2398 = vadd.f32 %v2268, %v2373
      %v2399 = vadd.f32 %v2269, %v2376
      %v2400 = vadd.f32 %v2270, %v2379
      %v2401 = vadd.f32 %v2271, %v2382
      %v2402 = vadd.f32 %v2272, %v2385
      %2403 = vst.msk [vmem:[#allocation6] sm:$0xff] %vm318, %v2387
      %2404 = vst.msk [vmem:[#allocation6 + $0x8] sm:$0xff] %vm318, %v2388
      %2405 = vst.msk [vmem:[#allocation6 + $0x10] sm:$0xff] %vm318, %v2389
      %2406 = vst.msk [vmem:[#allocation6 + $0x18] sm:$0xff] %vm318, %v2390
      %2407 = vst.msk [vmem:[#allocation6 + $0x20] sm:$0xff] %vm318, %v2391
      %2408 = vst.msk [vmem:[#allocation6 + $0x28] sm:$0xff] %vm318, %v2392
      %2409 = vst.msk [vmem:[#allocation6 + $0x30] sm:$0xff] %vm318, %v2393
      %2410 = vst.msk [vmem:[#allocation6 + $0x38] sm:$0xff] %vm318, %v2394
      %2411 = vst.msk [vmem:[#allocation6 + $0x40] sm:$0xff] %vm318, %v2395
      %2412 = vst.msk [vmem:[#allocation6 + $0x48] sm:$0xff] %vm318, %v2396
      %2413 = vst.msk [vmem:[#allocation6 + $0x50] sm:$0xff] %vm318, %v2397
      %2414 = vst.msk [vmem:[#allocation6 + $0x58] sm:$0xff] %vm318, %v2398
      %2415 = vst.msk [vmem:[#allocation6 + $0x60] sm:$0xff] %vm318, %v2399
      %2416 = vst.msk [vmem:[#allocation6 + $0x68] sm:$0xff] %vm318, %v2400
      %2417 = vst.msk [vmem:[#allocation6 + $0x70] sm:$0xff] %vm318, %v2401
      %2418 = vst.msk [vmem:[#allocation6 + $0x78] sm:$0xff] %vm318, %v2402
      %v2419 = vld [vmem:[#allocation3] sm:$0xff]
      %v2420 = vld [vmem:[#allocation3 + $0x8] sm:$0xff]
      %v2421 = vld [vmem:[#allocation3 + $0x10] sm:$0xff]
      %v2422 = vld [vmem:[#allocation3 + $0x18] sm:$0xff]
      %v2423 = vld [vmem:[#allocation3 + $0x20] sm:$0xff]
      %v2424 = vld [vmem:[#allocation3 + $0x28] sm:$0xff]
      %v2425 = vld [vmem:[#allocation3 + $0x30] sm:$0xff]
      %v2426 = vld [vmem:[#allocation3 + $0x38] sm:$0xff]
      %v2427 = vld [vmem:[#allocation3 + $0x40] sm:$0xff]
      %v2428 = vld [vmem:[#allocation3 + $0x48] sm:$0xff]
      %v2429 = vld [vmem:[#allocation3 + $0x50] sm:$0xff]
      %v2430 = vld [vmem:[#allocation3 + $0x58] sm:$0xff]
      %v2431 = vld [vmem:[#allocation3 + $0x60] sm:$0xff]
      %v2432 = vld [vmem:[#allocation3 + $0x68] sm:$0xff]
      %v2433 = vld [vmem:[#allocation3 + $0x70] sm:$0xff]
      %v2434 = vld [vmem:[#allocation3 + $0x78] sm:$0xff]
      %v2435 = vld [vmem:[#allocation4] sm:$0xff]
      %v2436 = vld [vmem:[#allocation4 + $0x8] sm:$0xff]
      %v2437 = vld [vmem:[#allocation4 + $0x10] sm:$0xff]
      %v2438 = vld [vmem:[#allocation4 + $0x18] sm:$0xff]
      %v2439 = vld [vmem:[#allocation4 + $0x20] sm:$0xff]
      %v2440 = vld [vmem:[#allocation4 + $0x28] sm:$0xff]
      %v2441 = vld [vmem:[#allocation4 + $0x30] sm:$0xff]
      %v2442 = vld [vmem:[#allocation4 + $0x38] sm:$0xff]
      %v2443 = vld [vmem:[#allocation4 + $0x40] sm:$0xff]
      %v2444 = vld [vmem:[#allocation4 + $0x48] sm:$0xff]
      %v2445 = vld [vmem:[#allocation4 + $0x50] sm:$0xff]
      %v2446 = vld [vmem:[#allocation4 + $0x58] sm:$0xff]
      %v2447 = vld [vmem:[#allocation4 + $0x60] sm:$0xff]
      %v2448 = vld [vmem:[#allocation4 + $0x68] sm:$0xff]
      %v2449 = vld [vmem:[#allocation4 + $0x70] sm:$0xff]
      %v2450 = vld [vmem:[#allocation4 + $0x78] sm:$0xff]
      %v2451 = vld [vmem:[#allocation5] sm:$0xff]
      %v2452 = vld [vmem:[#allocation5 + $0x8] sm:$0xff]
      %v2453 = vld [vmem:[#allocation5 + $0x10] sm:$0xff]
      %v2454 = vld [vmem:[#allocation5 + $0x18] sm:$0xff]
      %v2455 = vld [vmem:[#allocation5 + $0x20] sm:$0xff]
      %v2456 = vld [vmem:[#allocation5 + $0x28] sm:$0xff]
      %v2457 = vld [vmem:[#allocation5 + $0x30] sm:$0xff]
      %v2458 = vld [vmem:[#allocation5 + $0x38] sm:$0xff]
      %v2459 = vld [vmem:[#allocation5 + $0x40] sm:$0xff]
      %v2460 = vld [vmem:[#allocation5 + $0x48] sm:$0xff]
      %v2461 = vld [vmem:[#allocation5 + $0x50] sm:$0xff]
      %v2462 = vld [vmem:[#allocation5 + $0x58] sm:$0xff]
      %v2463 = vld [vmem:[#allocation5 + $0x60] sm:$0xff]
      %v2464 = vld [vmem:[#allocation5 + $0x68] sm:$0xff]
      %v2465 = vld [vmem:[#allocation5 + $0x70] sm:$0xff]
      %v2466 = vld [vmem:[#allocation5 + $0x78] sm:$0xff]
      %v2467 = vld [vmem:[#allocation2] sm:$0xff]
      %v2468 = vld [vmem:[#allocation2 + $0x8] sm:$0xff]
      %v2469 = vld [vmem:[#allocation2 + $0x10] sm:$0xff]
      %v2470 = vld [vmem:[#allocation2 + $0x18] sm:$0xff]
      %v2471 = vld [vmem:[#allocation2 + $0x20] sm:$0xff]
      %v2472 = vld [vmem:[#allocation2 + $0x28] sm:$0xff]
      %v2473 = vld [vmem:[#allocation2 + $0x30] sm:$0xff]
      %v2474 = vld [vmem:[#allocation2 + $0x38] sm:$0xff]
      %v2475 = vld [vmem:[#allocation2 + $0x40] sm:$0xff]
      %v2476 = vld [vmem:[#allocation2 + $0x48] sm:$0xff]
      %v2477 = vld [vmem:[#allocation2 + $0x50] sm:$0xff]
      %v2478 = vld [vmem:[#allocation2 + $0x58] sm:$0xff]
      %v2479 = vld [vmem:[#allocation2 + $0x60] sm:$0xff]
      %v2480 = vld [vmem:[#allocation2 + $0x68] sm:$0xff]
      %v2481 = vld [vmem:[#allocation2 + $0x70] sm:$0xff]
      %v2482 = vld [vmem:[#allocation2 + $0x78] sm:$0xff]
      %2499 = vrot.lane.b32.xlu0 %v2419, 112
      %v2500 = vpop.permute.xlu0 %2499
      %2501 = vrot.lane.b32.xlu0 %v2420, 112
      %v2502 = vpop.permute.xlu0 %2501
      %2503 = vrot.lane.b32.xlu0 %v2421, 112
      %v2504 = vpop.permute.xlu0 %2503
      %2505 = vrot.lane.b32.xlu0 %v2422, 112
      %v2506 = vpop.permute.xlu0 %2505
      %2507 = vrot.lane.b32.xlu0 %v2423, 112
      %v2508 = vpop.permute.xlu0 %2507
      %2509 = vrot.lane.b32.xlu0 %v2424, 112
      %v2510 = vpop.permute.xlu0 %2509
      %2511 = vrot.lane.b32.xlu0 %v2425, 112
      %v2512 = vpop.permute.xlu0 %2511
      %2513 = vrot.lane.b32.xlu0 %v2426, 112
      %v2514 = vpop.permute.xlu0 %2513
      %2515 = vrot.lane.b32.xlu0 %v2427, 112
      %v2516 = vpop.permute.xlu0 %2515
      %2517 = vrot.lane.b32.xlu0 %v2428, 112
      %v2518 = vpop.permute.xlu0 %2517
      %2519 = vrot.lane.b32.xlu0 %v2429, 112
      %v2520 = vpop.permute.xlu0 %2519
      %2521 = vrot.lane.b32.xlu0 %v2430, 112
      %v2522 = vpop.permute.xlu0 %2521
      %2523 = vrot.lane.b32.xlu0 %v2431, 112
      %v2524 = vpop.permute.xlu0 %2523
      %2525 = vrot.lane.b32.xlu0 %v2432, 112
      %v2526 = vpop.permute.xlu0 %2525
      %2527 = vrot.lane.b32.xlu0 %v2433, 112
      %v2528 = vpop.permute.xlu0 %2527
      %2529 = vrot.lane.b32.xlu0 %v2434, 112
      %v2530 = vpop.permute.xlu0 %2529
      %2547 = vrot.lane.b32.xlu0 %v2435, 112
      %v2548 = vpop.permute.xlu0 %2547
      %2549 = vrot.lane.b32.xlu0 %v2436, 112
      %v2550 = vpop.permute.xlu0 %2549
      %2551 = vrot.lane.b32.xlu0 %v2437, 112
      %v2552 = vpop.permute.xlu0 %2551
      %2553 = vrot.lane.b32.xlu0 %v2438, 112
      %v2554 = vpop.permute.xlu0 %2553
      %2555 = vrot.lane.b32.xlu0 %v2439, 112
      %v2556 = vpop.permute.xlu0 %2555
      %2557 = vrot.lane.b32.xlu0 %v2440, 112
      %v2558 = vpop.permute.xlu0 %2557
      %2559 = vrot.lane.b32.xlu0 %v2441, 112
      %v2560 = vpop.permute.xlu0 %2559
      %2561 = vrot.lane.b32.xlu0 %v2442, 112
      %v2562 = vpop.permute.xlu0 %2561
      %2563 = vrot.lane.b32.xlu0 %v2443, 112
      %v2564 = vpop.permute.xlu0 %2563
      %2565 = vrot.lane.b32.xlu0 %v2444, 112
      %v2566 = vpop.permute.xlu0 %2565
      %2567 = vrot.lane.b32.xlu0 %v2445, 112
      %v2568 = vpop.permute.xlu0 %2567
      %2569 = vrot.lane.b32.xlu0 %v2446, 112
      %v2570 = vpop.permute.xlu0 %2569
      %2571 = vrot.lane.b32.xlu0 %v2447, 112
      %v2572 = vpop.permute.xlu0 %2571
      %2573 = vrot.lane.b32.xlu0 %v2448, 112
      %v2574 = vpop.permute.xlu0 %2573
      %2575 = vrot.lane.b32.xlu0 %v2449, 112
      %v2576 = vpop.permute.xlu0 %2575
      %2577 = vrot.lane.b32.xlu0 %v2450, 112
      %v2578 = vpop.permute.xlu0 %2577
      %v2579 = vsel %vm714, %v2500, 0
      %v2581 = vsel %vm714, %v2502, 0
      %v2583 = vsel %vm714, %v2504, 0
      %v2585 = vsel %vm714, %v2506, 0
      %v2587 = vsel %vm714, %v2508, 0
      %v2589 = vsel %vm714, %v2510, 0
      %v2591 = vsel %vm714, %v2512, 0
      %v2593 = vsel %vm714, %v2514, 0
      %v2595 = vsel %vm714, %v2516, 0
      %v2597 = vsel %vm714, %v2518, 0
      %v2599 = vsel %vm714, %v2520, 0
      %v2601 = vsel %vm714, %v2522, 0
      %v2603 = vsel %vm714, %v2524, 0
      %v2605 = vsel %vm714, %v2526, 0
      %v2607 = vsel %vm714, %v2528, 0
      %v2609 = vsel %vm714, %v2530, 0
      %v2611 = vsel %vm714, %v2548, 0
      %v2613 = vsel %vm714, %v2550, 0
      %v2615 = vsel %vm714, %v2552, 0
      %v2617 = vsel %vm714, %v2554, 0
      %v2619 = vsel %vm714, %v2556, 0
      %v2621 = vsel %vm714, %v2558, 0
      %v2623 = vsel %vm714, %v2560, 0
      %v2625 = vsel %vm714, %v2562, 0
      %v2627 = vsel %vm714, %v2564, 0
      %v2629 = vsel %vm714, %v2566, 0
      %v2631 = vsel %vm714, %v2568, 0
      %v2633 = vsel %vm714, %v2570, 0
      %v2635 = vsel %vm714, %v2572, 0
      %v2637 = vsel %vm714, %v2574, 0
      %v2639 = vsel %vm714, %v2576, 0
      %v2641 = vsel %vm714, %v2578, 0
      %2643 = vmatpush.xpose.msra.mxu0 %v2641
      %2644 = vmatpush.xpose.msra.mxu0 %v2639
      %2645 = vmatpush.xpose.msra.mxu0 %v2637
      %2646 = vmatpush.xpose.msra.mxu0 %v2635
      %2647 = vmatpush.xpose.msra.mxu0 %v2633
      %2648 = vmatpush.xpose.msra.mxu0 %v2631
      %2649 = vmatpush.xpose.msra.mxu0 %v2629
      %2650 = vmatpush.xpose.msra.mxu0 %v2627
      %2651 = vmatpush.xpose.msra.mxu0 %v2625
      %2652 = vmatpush.xpose.msra.mxu0 %v2623
      %2653 = vmatpush.xpose.msra.mxu0 %v2621
      %2654 = vmatpush.xpose.msra.mxu0 %v2619
      %2655 = vmatpush.xpose.msra.mxu0 %v2617
      %2656 = vmatpush.xpose.msra.mxu0 %v2615
      %2657 = vmatpush.xpose.msra.mxu0 %v2613
      %2658 = vmatpush.xpose.msra.mxu0 %v2611
      %2659 = vmatmul.f32.gmra.mxu0 %v2579
      %v2660 = vpop.f32.mrf.mxu0
      %v2661 = vadd.f32 %v2467, %v2660
      %2662 = vmatmul.f32.gmra.mxu0 %v2581
      %v2663 = vpop.f32.mrf.mxu0
      %v2664 = vadd.f32 %v2468, %v2663
      %2665 = vmatmul.f32.gmra.mxu0 %v2583
      %v2666 = vpop.f32.mrf.mxu0
      %v2667 = vadd.f32 %v2469, %v2666
      %2668 = vmatmul.f32.gmra.mxu0 %v2585
      %v2669 = vpop.f32.mrf.mxu0
      %v2670 = vadd.f32 %v2470, %v2669
      %2671 = vmatmul.f32.gmra.mxu0 %v2587
      %v2672 = vpop.f32.mrf.mxu0
      %v2673 = vadd.f32 %v2471, %v2672
      %2674 = vmatmul.f32.gmra.mxu0 %v2589
      %v2675 = vpop.f32.mrf.mxu0
      %v2676 = vadd.f32 %v2472, %v2675
      %2677 = vmatmul.f32.gmra.mxu0 %v2591
      %v2678 = vpop.f32.mrf.mxu0
      %v2679 = vadd.f32 %v2473, %v2678
      %2680 = vmatmul.f32.gmra.mxu0 %v2593
      %v2681 = vpop.f32.mrf.mxu0
      %v2682 = vadd.f32 %v2474, %v2681
      %2683 = vmatmul.f32.gmra.mxu0 %v2595
      %v2684 = vpop.f32.mrf.mxu0
      %v2685 = vadd.f32 %v2475, %v2684
      %2686 = vmatmul.f32.gmra.mxu0 %v2597
      %v2687 = vpop.f32.mrf.mxu0
      %v2688 = vadd.f32 %v2476, %v2687
      %2689 = vmatmul.f32.gmra.mxu0 %v2599
      %v2690 = vpop.f32.mrf.mxu0
      %v2691 = vadd.f32 %v2477, %v2690
      %2692 = vmatmul.f32.gmra.mxu0 %v2601
      %v2693 = vpop.f32.mrf.mxu0
      %v2694 = vadd.f32 %v2478, %v2693
      %2695 = vmatmul.f32.gmra.mxu0 %v2603
      %v2696 = vpop.f32.mrf.mxu0
      %v2697 = vadd.f32 %v2479, %v2696
      %2698 = vmatmul.f32.gmra.mxu0 %v2605
      %v2699 = vpop.f32.mrf.mxu0
      %v2700 = vadd.f32 %v2480, %v2699
      %2701 = vmatmul.f32.gmra.mxu0 %v2607
      %v2702 = vpop.f32.mrf.mxu0
      %v2703 = vadd.f32 %v2481, %v2702
      %2704 = vmatmul.f32.gmra.mxu0 %v2609
      %v2705 = vpop.f32.mrf.mxu0
      %v2706 = vadd.f32 %v2482, %v2705
      %2707 = vdwg.mxu0
      %2708 = vmax.xlane.f32.xlu0 %v2661
      %v2709 = vpop.xlane.xlu0 %2708
      %2710 = vmax.xlane.f32.xlu0 %v2664
      %v2711 = vpop.xlane.xlu0 %2710
      %2712 = vmax.xlane.f32.xlu0 %v2667
      %v2713 = vpop.xlane.xlu0 %2712
      %2714 = vmax.xlane.f32.xlu0 %v2670
      %v2715 = vpop.xlane.xlu0 %2714
      %2716 = vmax.xlane.f32.xlu0 %v2673
      %v2717 = vpop.xlane.xlu0 %2716
      %2718 = vmax.xlane.f32.xlu0 %v2676
      %v2719 = vpop.xlane.xlu0 %2718
      %2720 = vmax.xlane.f32.xlu0 %v2679
      %v2721 = vpop.xlane.xlu0 %2720
      %2722 = vmax.xlane.f32.xlu0 %v2682
      %v2723 = vpop.xlane.xlu0 %2722
      %2724 = vmax.xlane.f32.xlu0 %v2685
      %v2725 = vpop.xlane.xlu0 %2724
      %2726 = vmax.xlane.f32.xlu0 %v2688
      %v2727 = vpop.xlane.xlu0 %2726
      %2728 = vmax.xlane.f32.xlu0 %v2691
      %v2729 = vpop.xlane.xlu0 %2728
      %2730 = vmax.xlane.f32.xlu0 %v2694
      %v2731 = vpop.xlane.xlu0 %2730
      %2732 = vmax.xlane.f32.xlu0 %v2697
      %v2733 = vpop.xlane.xlu0 %2732
      %2734 = vmax.xlane.f32.xlu0 %v2700
      %v2735 = vpop.xlane.xlu0 %2734
      %2736 = vmax.xlane.f32.xlu0 %v2703
      %v2737 = vpop.xlane.xlu0 %2736
      %2738 = vmax.xlane.f32.xlu0 %v2706
      %v2739 = vpop.xlane.xlu0 %2738
      %v2740 = vsub.f32 %v2661, %v2709
      %v2741 = vsub.f32 %v2664, %v2711
      %v2742 = vsub.f32 %v2667, %v2713
      %v2743 = vsub.f32 %v2670, %v2715
      %v2744 = vsub.f32 %v2673, %v2717
      %v2745 = vsub.f32 %v2676, %v2719
      %v2746 = vsub.f32 %v2679, %v2721
      %v2747 = vsub.f32 %v2682, %v2723
      %v2748 = vsub.f32 %v2685, %v2725
      %v2749 = vsub.f32 %v2688, %v2727
      %v2750 = vsub.f32 %v2691, %v2729
      %v2751 = vsub.f32 %v2694, %v2731
      %v2752 = vsub.f32 %v2697, %v2733
      %v2753 = vsub.f32 %v2700, %v2735
      %v2754 = vsub.f32 %v2703, %v2737
      %v2755 = vsub.f32 %v2706, %v2739
      %v2756 = vmul.f32 %v2740, 1.442695
      %v2757 = vpow.pop %v2756
      %v2758 = vmul.f32 %v2741, 1.442695
      %v2759 = vpow.pop %v2758
      %v2760 = vmul.f32 %v2742, 1.442695
      %v2761 = vpow.pop %v2760
      %v2762 = vmul.f32 %v2743, 1.442695
      %v2763 = vpow.pop %v2762
      %v2764 = vmul.f32 %v2744, 1.442695
      %v2765 = vpow.pop %v2764
      %v2766 = vmul.f32 %v2745, 1.442695
      %v2767 = vpow.pop %v2766
      %v2768 = vmul.f32 %v2746, 1.442695
      %v2769 = vpow.pop %v2768
      %v2770 = vmul.f32 %v2747, 1.442695
      %v2771 = vpow.pop %v2770
      %v2772 = vmul.f32 %v2748, 1.442695
      %v2773 = vpow.pop %v2772
      %v2774 = vmul.f32 %v2749, 1.442695
      %v2775 = vpow.pop %v2774
      %v2776 = vmul.f32 %v2750, 1.442695
      %v2777 = vpow.pop %v2776
      %v2778 = vmul.f32 %v2751, 1.442695
      %v2779 = vpow.pop %v2778
      %v2780 = vmul.f32 %v2752, 1.442695
      %v2781 = vpow.pop %v2780
      %v2782 = vmul.f32 %v2753, 1.442695
      %v2783 = vpow.pop %v2782
      %v2784 = vmul.f32 %v2754, 1.442695
      %v2785 = vpow.pop %v2784
      %v2786 = vmul.f32 %v2755, 1.442695
      %v2787 = vpow.pop %v2786
      %2788 = vadd.xlane.f32.xlu0 %v2757
      %v2789 = vpop.xlane.xlu0 %2788
      %2790 = vadd.xlane.f32.xlu0 %v2759
      %v2791 = vpop.xlane.xlu0 %2790
      %2792 = vadd.xlane.f32.xlu0 %v2761
      %v2793 = vpop.xlane.xlu0 %2792
      %2794 = vadd.xlane.f32.xlu0 %v2763
      %v2795 = vpop.xlane.xlu0 %2794
      %2796 = vadd.xlane.f32.xlu0 %v2765
      %v2797 = vpop.xlane.xlu0 %2796
      %2798 = vadd.xlane.f32.xlu0 %v2767
      %v2799 = vpop.xlane.xlu0 %2798
      %2800 = vadd.xlane.f32.xlu0 %v2769
      %v2801 = vpop.xlane.xlu0 %2800
      %2802 = vadd.xlane.f32.xlu0 %v2771
      %v2803 = vpop.xlane.xlu0 %2802
      %2804 = vadd.xlane.f32.xlu0 %v2773
      %v2805 = vpop.xlane.xlu0 %2804
      %2806 = vadd.xlane.f32.xlu0 %v2775
      %v2807 = vpop.xlane.xlu0 %2806
      %2808 = vadd.xlane.f32.xlu0 %v2777
      %v2809 = vpop.xlane.xlu0 %2808
      %2810 = vadd.xlane.f32.xlu0 %v2779
      %v2811 = vpop.xlane.xlu0 %2810
      %2812 = vadd.xlane.f32.xlu0 %v2781
      %v2813 = vpop.xlane.xlu0 %2812
      %2814 = vadd.xlane.f32.xlu0 %v2783
      %v2815 = vpop.xlane.xlu0 %2814
      %2816 = vadd.xlane.f32.xlu0 %v2785
      %v2817 = vpop.xlane.xlu0 %2816
      %2818 = vadd.xlane.f32.xlu0 %v2787
      %v2819 = vpop.xlane.xlu0 %2818
      %2836 = vrot.lane.b32.xlu0 %v2451, 112
      %v2837 = vpop.permute.xlu0 %2836
      %2838 = vrot.lane.b32.xlu0 %v2452, 112
      %v2839 = vpop.permute.xlu0 %2838
      %2840 = vrot.lane.b32.xlu0 %v2453, 112
      %v2841 = vpop.permute.xlu0 %2840
      %2842 = vrot.lane.b32.xlu0 %v2454, 112
      %v2843 = vpop.permute.xlu0 %2842
      %2844 = vrot.lane.b32.xlu0 %v2455, 112
      %v2845 = vpop.permute.xlu0 %2844
      %2846 = vrot.lane.b32.xlu0 %v2456, 112
      %v2847 = vpop.permute.xlu0 %2846
      %2848 = vrot.lane.b32.xlu0 %v2457, 112
      %v2849 = vpop.permute.xlu0 %2848
      %2850 = vrot.lane.b32.xlu0 %v2458, 112
      %v2851 = vpop.permute.xlu0 %2850
      %2852 = vrot.lane.b32.xlu0 %v2459, 112
      %v2853 = vpop.permute.xlu0 %2852
      %2854 = vrot.lane.b32.xlu0 %v2460, 112
      %v2855 = vpop.permute.xlu0 %2854
      %2856 = vrot.lane.b32.xlu0 %v2461, 112
      %v2857 = vpop.permute.xlu0 %2856
      %2858 = vrot.lane.b32.xlu0 %v2462, 112
      %v2859 = vpop.permute.xlu0 %2858
      %2860 = vrot.lane.b32.xlu0 %v2463, 112
      %v2861 = vpop.permute.xlu0 %2860
      %2862 = vrot.lane.b32.xlu0 %v2464, 112
      %v2863 = vpop.permute.xlu0 %2862
      %2864 = vrot.lane.b32.xlu0 %v2465, 112
      %v2865 = vpop.permute.xlu0 %2864
      %2866 = vrot.lane.b32.xlu0 %v2466, 112
      %v2867 = vpop.permute.xlu0 %2866
      %2884 = vmatpush.msra.mxu0 %v2867
      %2885 = vmatpush.msra.mxu0 %v2865
      %2886 = vmatpush.msra.mxu0 %v2863
      %2887 = vmatpush.msra.mxu0 %v2861
      %2888 = vmatpush.msra.mxu0 %v2859
      %2889 = vmatpush.msra.mxu0 %v2857
      %2890 = vmatpush.msra.mxu0 %v2855
      %2891 = vmatpush.msra.mxu0 %v2853
      %2892 = vmatpush.msra.mxu0 %v2851
      %2893 = vmatpush.msra.mxu0 %v2849
      %2894 = vmatpush.msra.mxu0 %v2847
      %2895 = vmatpush.msra.mxu0 %v2845
      %2896 = vmatpush.msra.mxu0 %v2843
      %2897 = vmatpush.msra.mxu0 %v2841
      %2898 = vmatpush.msra.mxu0 %v2839
      %2899 = vmatpush.msra.mxu0 %v2837
      %2900 = vmatmul.f32.gmra.mxu0 %v2757
      %v2901 = vpop.f32.mrf.mxu0
      %v2902 = vadd.f32 0.0, %v2901
      %2903 = vmatmul.f32.gmra.mxu0 %v2759
      %v2904 = vpop.f32.mrf.mxu0
      %v2905 = vadd.f32 0.0, %v2904
      %2906 = vmatmul.f32.gmra.mxu0 %v2761
      %v2907 = vpop.f32.mrf.mxu0
      %v2908 = vadd.f32 0.0, %v2907
      %2909 = vmatmul.f32.gmra.mxu0 %v2763
      %v2910 = vpop.f32.mrf.mxu0
      %v2911 = vadd.f32 0.0, %v2910
      %2912 = vmatmul.f32.gmra.mxu0 %v2765
      %v2913 = vpop.f32.mrf.mxu0
      %v2914 = vadd.f32 0.0, %v2913
      %2915 = vmatmul.f32.gmra.mxu0 %v2767
      %v2916 = vpop.f32.mrf.mxu0
      %v2917 = vadd.f32 0.0, %v2916
      %2918 = vmatmul.f32.gmra.mxu0 %v2769
      %v2919 = vpop.f32.mrf.mxu0
      %v2920 = vadd.f32 0.0, %v2919
      %2921 = vmatmul.f32.gmra.mxu0 %v2771
      %v2922 = vpop.f32.mrf.mxu0
      %v2923 = vadd.f32 0.0, %v2922
      %2924 = vmatmul.f32.gmra.mxu0 %v2773
      %v2925 = vpop.f32.mrf.mxu0
      %v2926 = vadd.f32 0.0, %v2925
      %2927 = vmatmul.f32.gmra.mxu0 %v2775
      %v2928 = vpop.f32.mrf.mxu0
      %v2929 = vadd.f32 0.0, %v2928
      %2930 = vmatmul.f32.gmra.mxu0 %v2777
      %v2931 = vpop.f32.mrf.mxu0
      %v2932 = vadd.f32 0.0, %v2931
      %2933 = vmatmul.f32.gmra.mxu0 %v2779
      %v2934 = vpop.f32.mrf.mxu0
      %v2935 = vadd.f32 0.0, %v2934
      %2936 = vmatmul.f32.gmra.mxu0 %v2781
      %v2937 = vpop.f32.mrf.mxu0
      %v2938 = vadd.f32 0.0, %v2937
      %2939 = vmatmul.f32.gmra.mxu0 %v2783
      %v2940 = vpop.f32.mrf.mxu0
      %v2941 = vadd.f32 0.0, %v2940
      %2942 = vmatmul.f32.gmra.mxu0 %v2785
      %v2943 = vpop.f32.mrf.mxu0
      %v2944 = vadd.f32 0.0, %v2943
      %2945 = vmatmul.f32.gmra.mxu0 %v2787
      %v2946 = vpop.f32.mrf.mxu0
      %v2947 = vadd.f32 0.0, %v2946
      %2948 = vdwg.mxu0
      %v2949 = vrcp.pop %v2789
      %v2950 = vmul.f32 %v2789, %v2949
      %v2951 = vsub.f32 1.0, %v2950
      %v2952 = vmul.f32 %v2949, %v2951
      %v2953 = vadd.f32 %v2949, %v2952
      %vm2954 = vweird.f32 %v2789
      %vm2955 = vweird.f32 %v2949
      %vm2956 = vmor %vm2954, %vm2955
      %v2957 = vsel %vm2956, %v2949, %v2953
      %v2958 = vand.u32 2147483647, %v2789
      %vm2959 = vcmp.eq.f32.partialorder %v2958, 8.507059e+37
      %v2960 = vand.u32 %v2789, 2147483648
      %v2961 = vor.u32 1.1754944e-38, %v2960
      %v2962 = vsel %vm2959, %v2961, %v2957
      %v2963 = vmul.f32 1.0, %v2962
      %v2964 = vrcp.pop %v2791
      %v2965 = vmul.f32 %v2791, %v2964
      %v2966 = vsub.f32 1.0, %v2965
      %v2967 = vmul.f32 %v2964, %v2966
      %v2968 = vadd.f32 %v2964, %v2967
      %vm2969 = vweird.f32 %v2791
      %vm2970 = vweird.f32 %v2964
      %vm2971 = vmor %vm2969, %vm2970
      %v2972 = vsel %vm2971, %v2964, %v2968
      %v2973 = vand.u32 2147483647, %v2791
      %vm2974 = vcmp.eq.f32.partialorder %v2973, 8.507059e+37
      %v2975 = vand.u32 %v2791, 2147483648
      %v2976 = vor.u32 1.1754944e-38, %v2975
      %v2977 = vsel %vm2974, %v2976, %v2972
      %v2978 = vmul.f32 1.0, %v2977
      %v2979 = vrcp.pop %v2793
      %v2980 = vmul.f32 %v2793, %v2979
      %v2981 = vsub.f32 1.0, %v2980
      %v2982 = vmul.f32 %v2979, %v2981
      %v2983 = vadd.f32 %v2979, %v2982
      %vm2984 = vweird.f32 %v2793
      %vm2985 = vweird.f32 %v2979
      %vm2986 = vmor %vm2984, %vm2985
      %v2987 = vsel %vm2986, %v2979, %v2983
      %v2988 = vand.u32 2147483647, %v2793
      %vm2989 = vcmp.eq.f32.partialorder %v2988, 8.507059e+37
      %v2990 = vand.u32 %v2793, 2147483648
      %v2991 = vor.u32 1.1754944e-38, %v2990
      %v2992 = vsel %vm2989, %v2991, %v2987
      %v2993 = vmul.f32 1.0, %v2992
      %v2994 = vrcp.pop %v2795
      %v2995 = vmul.f32 %v2795, %v2994
      %v2996 = vsub.f32 1.0, %v2995
      %v2997 = vmul.f32 %v2994, %v2996
      %v2998 = vadd.f32 %v2994, %v2997
      %vm2999 = vweird.f32 %v2795
      %vm3000 = vweird.f32 %v2994
      %vm3001 = vmor %vm2999, %vm3000
      %v3002 = vsel %vm3001, %v2994, %v2998
      %v3003 = vand.u32 2147483647, %v2795
      %vm3004 = vcmp.eq.f32.partialorder %v3003, 8.507059e+37
      %v3005 = vand.u32 %v2795, 2147483648
      %v3006 = vor.u32 1.1754944e-38, %v3005
      %v3007 = vsel %vm3004, %v3006, %v3002
      %v3008 = vmul.f32 1.0, %v3007
      %v3009 = vrcp.pop %v2797
      %v3010 = vmul.f32 %v2797, %v3009
      %v3011 = vsub.f32 1.0, %v3010
      %v3012 = vmul.f32 %v3009, %v3011
      %v3013 = vadd.f32 %v3009, %v3012
      %vm3014 = vweird.f32 %v2797
      %vm3015 = vweird.f32 %v3009
      %vm3016 = vmor %vm3014, %vm3015
      %v3017 = vsel %vm3016, %v3009, %v3013
      %v3018 = vand.u32 2147483647, %v2797
      %vm3019 = vcmp.eq.f32.partialorder %v3018, 8.507059e+37
      %v3020 = vand.u32 %v2797, 2147483648
      %v3021 = vor.u32 1.1754944e-38, %v3020
      %v3022 = vsel %vm3019, %v3021, %v3017
      %v3023 = vmul.f32 1.0, %v3022
      %v3024 = vrcp.pop %v2799
      %v3025 = vmul.f32 %v2799, %v3024
      %v3026 = vsub.f32 1.0, %v3025
      %v3027 = vmul.f32 %v3024, %v3026
      %v3028 = vadd.f32 %v3024, %v3027
      %vm3029 = vweird.f32 %v2799
      %vm3030 = vweird.f32 %v3024
      %vm3031 = vmor %vm3029, %vm3030
      %v3032 = vsel %vm3031, %v3024, %v3028
      %v3033 = vand.u32 2147483647, %v2799
      %vm3034 = vcmp.eq.f32.partialorder %v3033, 8.507059e+37
      %v3035 = vand.u32 %v2799, 2147483648
      %v3036 = vor.u32 1.1754944e-38, %v3035
      %v3037 = vsel %vm3034, %v3036, %v3032
      %v3038 = vmul.f32 1.0, %v3037
      %v3039 = vrcp.pop %v2801
      %v3040 = vmul.f32 %v2801, %v3039
      %v3041 = vsub.f32 1.0, %v3040
      %v3042 = vmul.f32 %v3039, %v3041
      %v3043 = vadd.f32 %v3039, %v3042
      %vm3044 = vweird.f32 %v2801
      %vm3045 = vweird.f32 %v3039
      %vm3046 = vmor %vm3044, %vm3045
      %v3047 = vsel %vm3046, %v3039, %v3043
      %v3048 = vand.u32 2147483647, %v2801
      %vm3049 = vcmp.eq.f32.partialorder %v3048, 8.507059e+37
      %v3050 = vand.u32 %v2801, 2147483648
      %v3051 = vor.u32 1.1754944e-38, %v3050
      %v3052 = vsel %vm3049, %v3051, %v3047
      %v3053 = vmul.f32 1.0, %v3052
      %v3054 = vrcp.pop %v2803
      %v3055 = vmul.f32 %v2803, %v3054
      %v3056 = vsub.f32 1.0, %v3055
      %v3057 = vmul.f32 %v3054, %v3056
      %v3058 = vadd.f32 %v3054, %v3057
      %vm3059 = vweird.f32 %v2803
      %vm3060 = vweird.f32 %v3054
      %vm3061 = vmor %vm3059, %vm3060
      %v3062 = vsel %vm3061, %v3054, %v3058
      %v3063 = vand.u32 2147483647, %v2803
      %vm3064 = vcmp.eq.f32.partialorder %v3063, 8.507059e+37
      %v3065 = vand.u32 %v2803, 2147483648
      %v3066 = vor.u32 1.1754944e-38, %v3065
      %v3067 = vsel %vm3064, %v3066, %v3062
      %v3068 = vmul.f32 1.0, %v3067
      %v3069 = vrcp.pop %v2805
      %v3070 = vmul.f32 %v2805, %v3069
      %v3071 = vsub.f32 1.0, %v3070
      %v3072 = vmul.f32 %v3069, %v3071
      %v3073 = vadd.f32 %v3069, %v3072
      %vm3074 = vweird.f32 %v2805
      %vm3075 = vweird.f32 %v3069
      %vm3076 = vmor %vm3074, %vm3075
      %v3077 = vsel %vm3076, %v3069, %v3073
      %v3078 = vand.u32 2147483647, %v2805
      %vm3079 = vcmp.eq.f32.partialorder %v3078, 8.507059e+37
      %v3080 = vand.u32 %v2805, 2147483648
      %v3081 = vor.u32 1.1754944e-38, %v3080
      %v3082 = vsel %vm3079, %v3081, %v3077
      %v3083 = vmul.f32 1.0, %v3082
      %v3084 = vrcp.pop %v2807
      %v3085 = vmul.f32 %v2807, %v3084
      %v3086 = vsub.f32 1.0, %v3085
      %v3087 = vmul.f32 %v3084, %v3086
      %v3088 = vadd.f32 %v3084, %v3087
      %vm3089 = vweird.f32 %v2807
      %vm3090 = vweird.f32 %v3084
      %vm3091 = vmor %vm3089, %vm3090
      %v3092 = vsel %vm3091, %v3084, %v3088
      %v3093 = vand.u32 2147483647, %v2807
      %vm3094 = vcmp.eq.f32.partialorder %v3093, 8.507059e+37
      %v3095 = vand.u32 %v2807, 2147483648
      %v3096 = vor.u32 1.1754944e-38, %v3095
      %v3097 = vsel %vm3094, %v3096, %v3092
      %v3098 = vmul.f32 1.0, %v3097
      %v3099 = vrcp.pop %v2809
      %v3100 = vmul.f32 %v2809, %v3099
      %v3101 = vsub.f32 1.0, %v3100
      %v3102 = vmul.f32 %v3099, %v3101
      %v3103 = vadd.f32 %v3099, %v3102
      %vm3104 = vweird.f32 %v2809
      %vm3105 = vweird.f32 %v3099
      %vm3106 = vmor %vm3104, %vm3105
      %v3107 = vsel %vm3106, %v3099, %v3103
      %v3108 = vand.u32 2147483647, %v2809
      %vm3109 = vcmp.eq.f32.partialorder %v3108, 8.507059e+37
      %v3110 = vand.u32 %v2809, 2147483648
      %v3111 = vor.u32 1.1754944e-38, %v3110
      %v3112 = vsel %vm3109, %v3111, %v3107
      %v3113 = vmul.f32 1.0, %v3112
      %v3114 = vrcp.pop %v2811
      %v3115 = vmul.f32 %v2811, %v3114
      %v3116 = vsub.f32 1.0, %v3115
      %v3117 = vmul.f32 %v3114, %v3116
      %v3118 = vadd.f32 %v3114, %v3117
      %vm3119 = vweird.f32 %v2811
      %vm3120 = vweird.f32 %v3114
      %vm3121 = vmor %vm3119, %vm3120
      %v3122 = vsel %vm3121, %v3114, %v3118
      %v3123 = vand.u32 2147483647, %v2811
      %vm3124 = vcmp.eq.f32.partialorder %v3123, 8.507059e+37
      %v3125 = vand.u32 %v2811, 2147483648
      %v3126 = vor.u32 1.1754944e-38, %v3125
      %v3127 = vsel %vm3124, %v3126, %v3122
      %v3128 = vmul.f32 1.0, %v3127
      %v3129 = vrcp.pop %v2813
      %v3130 = vmul.f32 %v2813, %v3129
      %v3131 = vsub.f32 1.0, %v3130
      %v3132 = vmul.f32 %v3129, %v3131
      %v3133 = vadd.f32 %v3129, %v3132
      %vm3134 = vweird.f32 %v2813
      %vm3135 = vweird.f32 %v3129
      %vm3136 = vmor %vm3134, %vm3135
      %v3137 = vsel %vm3136, %v3129, %v3133
      %v3138 = vand.u32 2147483647, %v2813
      %vm3139 = vcmp.eq.f32.partialorder %v3138, 8.507059e+37
      %v3140 = vand.u32 %v2813, 2147483648
      %v3141 = vor.u32 1.1754944e-38, %v3140
      %v3142 = vsel %vm3139, %v3141, %v3137
      %v3143 = vmul.f32 1.0, %v3142
      %v3144 = vrcp.pop %v2815
      %v3145 = vmul.f32 %v2815, %v3144
      %v3146 = vsub.f32 1.0, %v3145
      %v3147 = vmul.f32 %v3144, %v3146
      %v3148 = vadd.f32 %v3144, %v3147
      %vm3149 = vweird.f32 %v2815
      %vm3150 = vweird.f32 %v3144
      %vm3151 = vmor %vm3149, %vm3150
      %v3152 = vsel %vm3151, %v3144, %v3148
      %v3153 = vand.u32 2147483647, %v2815
      %vm3154 = vcmp.eq.f32.partialorder %v3153, 8.507059e+37
      %v3155 = vand.u32 %v2815, 2147483648
      %v3156 = vor.u32 1.1754944e-38, %v3155
      %v3157 = vsel %vm3154, %v3156, %v3152
      %v3158 = vmul.f32 1.0, %v3157
      %v3159 = vrcp.pop %v2817
      %v3160 = vmul.f32 %v2817, %v3159
      %v3161 = vsub.f32 1.0, %v3160
      %v3162 = vmul.f32 %v3159, %v3161
      %v3163 = vadd.f32 %v3159, %v3162
      %vm3164 = vweird.f32 %v2817
      %vm3165 = vweird.f32 %v3159
      %vm3166 = vmor %vm3164, %vm3165
      %v3167 = vsel %vm3166, %v3159, %v3163
      %v3168 = vand.u32 2147483647, %v2817
      %vm3169 = vcmp.eq.f32.partialorder %v3168, 8.507059e+37
      %v3170 = vand.u32 %v2817, 2147483648
      %v3171 = vor.u32 1.1754944e-38, %v3170
      %v3172 = vsel %vm3169, %v3171, %v3167
      %v3173 = vmul.f32 1.0, %v3172
      %v3174 = vrcp.pop %v2819
      %v3175 = vmul.f32 %v2819, %v3174
      %v3176 = vsub.f32 1.0, %v3175
      %v3177 = vmul.f32 %v3174, %v3176
      %v3178 = vadd.f32 %v3174, %v3177
      %vm3179 = vweird.f32 %v2819
      %vm3180 = vweird.f32 %v3174
      %vm3181 = vmor %vm3179, %vm3180
      %v3182 = vsel %vm3181, %v3174, %v3178
      %v3183 = vand.u32 2147483647, %v2819
      %vm3184 = vcmp.eq.f32.partialorder %v3183, 8.507059e+37
      %v3185 = vand.u32 %v2819, 2147483648
      %v3186 = vor.u32 1.1754944e-38, %v3185
      %v3187 = vsel %vm3184, %v3186, %v3182
      %v3188 = vmul.f32 1.0, %v3187
      %v3189 = vmul.f32 %v2902, %v2963
      %v3190 = vmul.f32 %v2905, %v2978
      %v3191 = vmul.f32 %v2908, %v2993
      %v3192 = vmul.f32 %v2911, %v3008
      %v3193 = vmul.f32 %v2914, %v3023
      %v3194 = vmul.f32 %v2917, %v3038
      %v3195 = vmul.f32 %v2920, %v3053
      %v3196 = vmul.f32 %v2923, %v3068
      %v3197 = vmul.f32 %v2926, %v3083
      %v3198 = vmul.f32 %v2929, %v3098
      %v3199 = vmul.f32 %v2932, %v3113
      %v3200 = vmul.f32 %v2935, %v3128
      %v3201 = vmul.f32 %v2938, %v3143
      %v3202 = vmul.f32 %v2941, %v3158
      %v3203 = vmul.f32 %v2944, %v3173
      %v3204 = vmul.f32 %v2947, %v3188
      %v3205 = vld [vmem:[#allocation6] sm:$0xff]
      %v3206 = vld [vmem:[#allocation6 + $0x8] sm:$0xff]
      %v3207 = vld [vmem:[#allocation6 + $0x10] sm:$0xff]
      %v3208 = vld [vmem:[#allocation6 + $0x18] sm:$0xff]
      %v3209 = vld [vmem:[#allocation6 + $0x20] sm:$0xff]
      %v3210 = vld [vmem:[#allocation6 + $0x28] sm:$0xff]
      %v3211 = vld [vmem:[#allocation6 + $0x30] sm:$0xff]
      %v3212 = vld [vmem:[#allocation6 + $0x38] sm:$0xff]
      %v3213 = vld [vmem:[#allocation6 + $0x40] sm:$0xff]
      %v3214 = vld [vmem:[#allocation6 + $0x48] sm:$0xff]
      %v3215 = vld [vmem:[#allocation6 + $0x50] sm:$0xff]
      %v3216 = vld [vmem:[#allocation6 + $0x58] sm:$0xff]
      %v3217 = vld [vmem:[#allocation6 + $0x60] sm:$0xff]
      %v3218 = vld [vmem:[#allocation6 + $0x68] sm:$0xff]
      %v3219 = vld [vmem:[#allocation6 + $0x70] sm:$0xff]
      %v3220 = vld [vmem:[#allocation6 + $0x78] sm:$0xff]
      %v3221 = vld [vmem:[%s3 + $0x10] sm:$0xff]
      %v3223 = vsel %vm714, %v3189, 0
      %v3226 = vsel %vm714, %v3190, 0
      %v3229 = vsel %vm714, %v3191, 0
      %v3232 = vsel %vm714, %v3192, 0
      %v3235 = vsel %vm714, %v3193, 0
      %v3238 = vsel %vm714, %v3194, 0
      %v3241 = vsel %vm714, %v3195, 0
      %v3244 = vsel %vm714, %v3196, 0
      %v3247 = vsel %vm714, %v3197, 0
      %v3250 = vsel %vm714, %v3198, 0
      %v3253 = vsel %vm714, %v3199, 0
      %v3256 = vsel %vm714, %v3200, 0
      %v3259 = vsel %vm714, %v3201, 0
      %v3262 = vsel %vm714, %v3202, 0
      %v3265 = vsel %vm714, %v3203, 0
      %v3268 = vsel %vm714, %v3204, 0
      %3270 = vmatpush.msra.mxu0 0.0
      %3271 = vmatpush.msra.mxu0 0.0
      %3272 = vmatpush.msra.mxu0 0.0
      %3273 = vmatpush.msra.mxu0 0.0
      %3274 = vmatpush.msra.mxu0 0.0
      %3275 = vmatpush.msra.mxu0 0.0
      %3276 = vmatpush.msra.mxu0 0.0
      %3277 = vmatpush.msra.mxu0 0.0
      %3278 = vmatpush.msra.mxu0 0.0
      %3279 = vmatpush.msra.mxu0 0.0
      %3280 = vmatpush.msra.mxu0 0.0
      %3281 = vmatpush.msra.mxu0 0.0
      %3282 = vmatpush.msra.mxu0 0.0
      %3283 = vmatpush.msra.mxu0 0.0
      %3284 = vmatpush.msra.mxu0 0.0
      %3285 = vmatpush.msra.mxu0 %v3221
      %3286 = vmatmul.f32.gmra.mxu0 %v3223
      %v3287 = vpop.f32.mrf.mxu0
      %v3288 = vadd.f32 0.0, %v3287
      %3289 = vmatmul.f32.gmra.mxu0 %v3226
      %v3290 = vpop.f32.mrf.mxu0
      %v3291 = vadd.f32 0.0, %v3290
      %3292 = vmatmul.f32.gmra.mxu0 %v3229
      %v3293 = vpop.f32.mrf.mxu0
      %v3294 = vadd.f32 0.0, %v3293
      %3295 = vmatmul.f32.gmra.mxu0 %v3232
      %v3296 = vpop.f32.mrf.mxu0
      %v3297 = vadd.f32 0.0, %v3296
      %3298 = vmatmul.f32.gmra.mxu0 %v3235
      %v3299 = vpop.f32.mrf.mxu0
      %v3300 = vadd.f32 0.0, %v3299
      %3301 = vmatmul.f32.gmra.mxu0 %v3238
      %v3302 = vpop.f32.mrf.mxu0
      %v3303 = vadd.f32 0.0, %v3302
      %3304 = vmatmul.f32.gmra.mxu0 %v3241
      %v3305 = vpop.f32.mrf.mxu0
      %v3306 = vadd.f32 0.0, %v3305
      %3307 = vmatmul.f32.gmra.mxu0 %v3244
      %v3308 = vpop.f32.mrf.mxu0
      %v3309 = vadd.f32 0.0, %v3308
      %3310 = vmatmul.f32.gmra.mxu0 %v3247
      %v3311 = vpop.f32.mrf.mxu0
      %v3312 = vadd.f32 0.0, %v3311
      %3313 = vmatmul.f32.gmra.mxu0 %v3250
      %v3314 = vpop.f32.mrf.mxu0
      %v3315 = vadd.f32 0.0, %v3314
      %3316 = vmatmul.f32.gmra.mxu0 %v3253
      %v3317 = vpop.f32.mrf.mxu0
      %v3318 = vadd.f32 0.0, %v3317
      %3319 = vmatmul.f32.gmra.mxu0 %v3256
      %v3320 = vpop.f32.mrf.mxu0
      %v3321 = vadd.f32 0.0, %v3320
      %3322 = vmatmul.f32.gmra.mxu0 %v3259
      %v3323 = vpop.f32.mrf.mxu0
      %v3324 = vadd.f32 0.0, %v3323
      %3325 = vmatmul.f32.gmra.mxu0 %v3262
      %v3326 = vpop.f32.mrf.mxu0
      %v3327 = vadd.f32 0.0, %v3326
      %3328 = vmatmul.f32.gmra.mxu0 %v3265
      %v3329 = vpop.f32.mrf.mxu0
      %v3330 = vadd.f32 0.0, %v3329
      %3331 = vmatmul.f32.gmra.mxu0 %v3268
      %v3332 = vpop.f32.mrf.mxu0
      %v3333 = vadd.f32 0.0, %v3332
      %3334 = vdwg.mxu0
      %v3335 = vadd.f32 %v3205, %v3288
      %v3336 = vadd.f32 %v3206, %v3291
      %v3337 = vadd.f32 %v3207, %v3294
      %v3338 = vadd.f32 %v3208, %v3297
      %v3339 = vadd.f32 %v3209, %v3300
      %v3340 = vadd.f32 %v3210, %v3303
      %v3341 = vadd.f32 %v3211, %v3306
      %v3342 = vadd.f32 %v3212, %v3309
      %v3343 = vadd.f32 %v3213, %v3312
      %v3344 = vadd.f32 %v3214, %v3315
      %v3345 = vadd.f32 %v3215, %v3318
      %v3346 = vadd.f32 %v3216, %v3321
      %v3347 = vadd.f32 %v3217, %v3324
      %v3348 = vadd.f32 %v3218, %v3327
      %v3349 = vadd.f32 %v3219, %v3330
      %v3350 = vadd.f32 %v3220, %v3333
      %3351 = vst.msk [vmem:[#allocation6] sm:$0xff] %vm318, %v3335
      %3352 = vst.msk [vmem:[#allocation6 + $0x8] sm:$0xff] %vm318, %v3336
      %3353 = vst.msk [vmem:[#allocation6 + $0x10] sm:$0xff] %vm318, %v3337
      %3354 = vst.msk [vmem:[#allocation6 + $0x18] sm:$0xff] %vm318, %v3338
      %3355 = vst.msk [vmem:[#allocation6 + $0x20] sm:$0xff] %vm318, %v3339
      %3356 = vst.msk [vmem:[#allocation6 + $0x28] sm:$0xff] %vm318, %v3340
      %3357 = vst.msk [vmem:[#allocation6 + $0x30] sm:$0xff] %vm318, %v3341
      %3358 = vst.msk [vmem:[#allocation6 + $0x38] sm:$0xff] %vm318, %v3342
      %3359 = vst.msk [vmem:[#allocation6 + $0x40] sm:$0xff] %vm318, %v3343
      %3360 = vst.msk [vmem:[#allocation6 + $0x48] sm:$0xff] %vm318, %v3344
      %3361 = vst.msk [vmem:[#allocation6 + $0x50] sm:$0xff] %vm318, %v3345
      %3362 = vst.msk [vmem:[#allocation6 + $0x58] sm:$0xff] %vm318, %v3346
      %3363 = vst.msk [vmem:[#allocation6 + $0x60] sm:$0xff] %vm318, %v3347
      %3364 = vst.msk [vmem:[#allocation6 + $0x68] sm:$0xff] %vm318, %v3348
      %3365 = vst.msk [vmem:[#allocation6 + $0x70] sm:$0xff] %vm318, %v3349
      %3366 = vst.msk [vmem:[#allocation6 + $0x78] sm:$0xff] %vm318, %v3350
      %v3367 = vld [vmem:[#allocation3] sm:$0xff]
      %v3368 = vld [vmem:[#allocation3 + $0x8] sm:$0xff]
      %v3369 = vld [vmem:[#allocation3 + $0x10] sm:$0xff]
      %v3370 = vld [vmem:[#allocation3 + $0x18] sm:$0xff]
      %v3371 = vld [vmem:[#allocation3 + $0x20] sm:$0xff]
      %v3372 = vld [vmem:[#allocation3 + $0x28] sm:$0xff]
      %v3373 = vld [vmem:[#allocation3 + $0x30] sm:$0xff]
      %v3374 = vld [vmem:[#allocation3 + $0x38] sm:$0xff]
      %v3375 = vld [vmem:[#allocation3 + $0x40] sm:$0xff]
      %v3376 = vld [vmem:[#allocation3 + $0x48] sm:$0xff]
      %v3377 = vld [vmem:[#allocation3 + $0x50] sm:$0xff]
      %v3378 = vld [vmem:[#allocation3 + $0x58] sm:$0xff]
      %v3379 = vld [vmem:[#allocation3 + $0x60] sm:$0xff]
      %v3380 = vld [vmem:[#allocation3 + $0x68] sm:$0xff]
      %v3381 = vld [vmem:[#allocation3 + $0x70] sm:$0xff]
      %v3382 = vld [vmem:[#allocation3 + $0x78] sm:$0xff]
      %v3383 = vld [vmem:[#allocation4] sm:$0xff]
      %v3384 = vld [vmem:[#allocation4 + $0x8] sm:$0xff]
      %v3385 = vld [vmem:[#allocation4 + $0x10] sm:$0xff]
      %v3386 = vld [vmem:[#allocation4 + $0x18] sm:$0xff]
      %v3387 = vld [vmem:[#allocation4 + $0x20] sm:$0xff]
      %v3388 = vld [vmem:[#allocation4 + $0x28] sm:$0xff]
      %v3389 = vld [vmem:[#allocation4 + $0x30] sm:$0xff]
      %v3390 = vld [vmem:[#allocation4 + $0x38] sm:$0xff]
      %v3391 = vld [vmem:[#allocation4 + $0x40] sm:$0xff]
      %v3392 = vld [vmem:[#allocation4 + $0x48] sm:$0xff]
      %v3393 = vld [vmem:[#allocation4 + $0x50] sm:$0xff]
      %v3394 = vld [vmem:[#allocation4 + $0x58] sm:$0xff]
      %v3395 = vld [vmem:[#allocation4 + $0x60] sm:$0xff]
      %v3396 = vld [vmem:[#allocation4 + $0x68] sm:$0xff]
      %v3397 = vld [vmem:[#allocation4 + $0x70] sm:$0xff]
      %v3398 = vld [vmem:[#allocation4 + $0x78] sm:$0xff]
      %v3399 = vld [vmem:[#allocation5] sm:$0xff]
      %v3400 = vld [vmem:[#allocation5 + $0x8] sm:$0xff]
      %v3401 = vld [vmem:[#allocation5 + $0x10] sm:$0xff]
      %v3402 = vld [vmem:[#allocation5 + $0x18] sm:$0xff]
      %v3403 = vld [vmem:[#allocation5 + $0x20] sm:$0xff]
      %v3404 = vld [vmem:[#allocation5 + $0x28] sm:$0xff]
      %v3405 = vld [vmem:[#allocation5 + $0x30] sm:$0xff]
      %v3406 = vld [vmem:[#allocation5 + $0x38] sm:$0xff]
      %v3407 = vld [vmem:[#allocation5 + $0x40] sm:$0xff]
      %v3408 = vld [vmem:[#allocation5 + $0x48] sm:$0xff]
      %v3409 = vld [vmem:[#allocation5 + $0x50] sm:$0xff]
      %v3410 = vld [vmem:[#allocation5 + $0x58] sm:$0xff]
      %v3411 = vld [vmem:[#allocation5 + $0x60] sm:$0xff]
      %v3412 = vld [vmem:[#allocation5 + $0x68] sm:$0xff]
      %v3413 = vld [vmem:[#allocation5 + $0x70] sm:$0xff]
      %v3414 = vld [vmem:[#allocation5 + $0x78] sm:$0xff]
      %v3415 = vld [vmem:[#allocation2] sm:$0xff]
      %v3416 = vld [vmem:[#allocation2 + $0x8] sm:$0xff]
      %v3417 = vld [vmem:[#allocation2 + $0x10] sm:$0xff]
      %v3418 = vld [vmem:[#allocation2 + $0x18] sm:$0xff]
      %v3419 = vld [vmem:[#allocation2 + $0x20] sm:$0xff]
      %v3420 = vld [vmem:[#allocation2 + $0x28] sm:$0xff]
      %v3421 = vld [vmem:[#allocation2 + $0x30] sm:$0xff]
      %v3422 = vld [vmem:[#allocation2 + $0x38] sm:$0xff]
      %v3423 = vld [vmem:[#allocation2 + $0x40] sm:$0xff]
      %v3424 = vld [vmem:[#allocation2 + $0x48] sm:$0xff]
      %v3425 = vld [vmem:[#allocation2 + $0x50] sm:$0xff]
      %v3426 = vld [vmem:[#allocation2 + $0x58] sm:$0xff]
      %v3427 = vld [vmem:[#allocation2 + $0x60] sm:$0xff]
      %v3428 = vld [vmem:[#allocation2 + $0x68] sm:$0xff]
      %v3429 = vld [vmem:[#allocation2 + $0x70] sm:$0xff]
      %v3430 = vld [vmem:[#allocation2 + $0x78] sm:$0xff]
      %3447 = vrot.lane.b32.xlu0 %v3367, 104
      %v3448 = vpop.permute.xlu0 %3447
      %3449 = vrot.lane.b32.xlu0 %v3368, 104
      %v3450 = vpop.permute.xlu0 %3449
      %3451 = vrot.lane.b32.xlu0 %v3369, 104
      %v3452 = vpop.permute.xlu0 %3451
      %3453 = vrot.lane.b32.xlu0 %v3370, 104
      %v3454 = vpop.permute.xlu0 %3453
      %3455 = vrot.lane.b32.xlu0 %v3371, 104
      %v3456 = vpop.permute.xlu0 %3455
      %3457 = vrot.lane.b32.xlu0 %v3372, 104
      %v3458 = vpop.permute.xlu0 %3457
      %3459 = vrot.lane.b32.xlu0 %v3373, 104
      %v3460 = vpop.permute.xlu0 %3459
      %3461 = vrot.lane.b32.xlu0 %v3374, 104
      %v3462 = vpop.permute.xlu0 %3461
      %3463 = vrot.lane.b32.xlu0 %v3375, 104
      %v3464 = vpop.permute.xlu0 %3463
      %3465 = vrot.lane.b32.xlu0 %v3376, 104
      %v3466 = vpop.permute.xlu0 %3465
      %3467 = vrot.lane.b32.xlu0 %v3377, 104
      %v3468 = vpop.permute.xlu0 %3467
      %3469 = vrot.lane.b32.xlu0 %v3378, 104
      %v3470 = vpop.permute.xlu0 %3469
      %3471 = vrot.lane.b32.xlu0 %v3379, 104
      %v3472 = vpop.permute.xlu0 %3471
      %3473 = vrot.lane.b32.xlu0 %v3380, 104
      %v3474 = vpop.permute.xlu0 %3473
      %3475 = vrot.lane.b32.xlu0 %v3381, 104
      %v3476 = vpop.permute.xlu0 %3475
      %3477 = vrot.lane.b32.xlu0 %v3382, 104
      %v3478 = vpop.permute.xlu0 %3477
      %3495 = vrot.lane.b32.xlu0 %v3383, 104
      %v3496 = vpop.permute.xlu0 %3495
      %3497 = vrot.lane.b32.xlu0 %v3384, 104
      %v3498 = vpop.permute.xlu0 %3497
      %3499 = vrot.lane.b32.xlu0 %v3385, 104
      %v3500 = vpop.permute.xlu0 %3499
      %3501 = vrot.lane.b32.xlu0 %v3386, 104
      %v3502 = vpop.permute.xlu0 %3501
      %3503 = vrot.lane.b32.xlu0 %v3387, 104
      %v3504 = vpop.permute.xlu0 %3503
      %3505 = vrot.lane.b32.xlu0 %v3388, 104
      %v3506 = vpop.permute.xlu0 %3505
      %3507 = vrot.lane.b32.xlu0 %v3389, 104
      %v3508 = vpop.permute.xlu0 %3507
      %3509 = vrot.lane.b32.xlu0 %v3390, 104
      %v3510 = vpop.permute.xlu0 %3509
      %3511 = vrot.lane.b32.xlu0 %v3391, 104
      %v3512 = vpop.permute.xlu0 %3511
      %3513 = vrot.lane.b32.xlu0 %v3392, 104
      %v3514 = vpop.permute.xlu0 %3513
      %3515 = vrot.lane.b32.xlu0 %v3393, 104
      %v3516 = vpop.permute.xlu0 %3515
      %3517 = vrot.lane.b32.xlu0 %v3394, 104
      %v3518 = vpop.permute.xlu0 %3517
      %3519 = vrot.lane.b32.xlu0 %v3395, 104
      %v3520 = vpop.permute.xlu0 %3519
      %3521 = vrot.lane.b32.xlu0 %v3396, 104
      %v3522 = vpop.permute.xlu0 %3521
      %3523 = vrot.lane.b32.xlu0 %v3397, 104
      %v3524 = vpop.permute.xlu0 %3523
      %3525 = vrot.lane.b32.xlu0 %v3398, 104
      %v3526 = vpop.permute.xlu0 %3525
      %v3527 = vsel %vm714, %v3448, 0
      %v3529 = vsel %vm714, %v3450, 0
      %v3531 = vsel %vm714, %v3452, 0
      %v3533 = vsel %vm714, %v3454, 0
      %v3535 = vsel %vm714, %v3456, 0
      %v3537 = vsel %vm714, %v3458, 0
      %v3539 = vsel %vm714, %v3460, 0
      %v3541 = vsel %vm714, %v3462, 0
      %v3543 = vsel %vm714, %v3464, 0
      %v3545 = vsel %vm714, %v3466, 0
      %v3547 = vsel %vm714, %v3468, 0
      %v3549 = vsel %vm714, %v3470, 0
      %v3551 = vsel %vm714, %v3472, 0
      %v3553 = vsel %vm714, %v3474, 0
      %v3555 = vsel %vm714, %v3476, 0
      %v3557 = vsel %vm714, %v3478, 0
      %v3559 = vsel %vm714, %v3496, 0
      %v3561 = vsel %vm714, %v3498, 0
      %v3563 = vsel %vm714, %v3500, 0
      %v3565 = vsel %vm714, %v3502, 0
      %v3567 = vsel %vm714, %v3504, 0
      %v3569 = vsel %vm714, %v3506, 0
      %v3571 = vsel %vm714, %v3508, 0
      %v3573 = vsel %vm714, %v3510, 0
      %v3575 = vsel %vm714, %v3512, 0
      %v3577 = vsel %vm714, %v3514, 0
      %v3579 = vsel %vm714, %v3516, 0
      %v3581 = vsel %vm714, %v3518, 0
      %v3583 = vsel %vm714, %v3520, 0
      %v3585 = vsel %vm714, %v3522, 0
      %v3587 = vsel %vm714, %v3524, 0
      %v3589 = vsel %vm714, %v3526, 0
      %3591 = vmatpush.xpose.msra.mxu0 %v3589
      %3592 = vmatpush.xpose.msra.mxu0 %v3587
      %3593 = vmatpush.xpose.msra.mxu0 %v3585
      %3594 = vmatpush.xpose.msra.mxu0 %v3583
      %3595 = vmatpush.xpose.msra.mxu0 %v3581
      %3596 = vmatpush.xpose.msra.mxu0 %v3579
      %3597 = vmatpush.xpose.msra.mxu0 %v3577
      %3598 = vmatpush.xpose.msra.mxu0 %v3575
      %3599 = vmatpush.xpose.msra.mxu0 %v3573
      %3600 = vmatpush.xpose.msra.mxu0 %v3571
      %3601 = vmatpush.xpose.msra.mxu0 %v3569
      %3602 = vmatpush.xpose.msra.mxu0 %v3567
      %3603 = vmatpush.xpose.msra.mxu0 %v3565
      %3604 = vmatpush.xpose.msra.mxu0 %v3563
      %3605 = vmatpush.xpose.msra.mxu0 %v3561
      %3606 = vmatpush.xpose.msra.mxu0 %v3559
      %3607 = vmatmul.f32.gmra.mxu0 %v3527
      %v3608 = vpop.f32.mrf.mxu0
      %v3609 = vadd.f32 %v3415, %v3608
      %3610 = vmatmul.f32.gmra.mxu0 %v3529
      %v3611 = vpop.f32.mrf.mxu0
      %v3612 = vadd.f32 %v3416, %v3611
      %3613 = vmatmul.f32.gmra.mxu0 %v3531
      %v3614 = vpop.f32.mrf.mxu0
      %v3615 = vadd.f32 %v3417, %v3614
      %3616 = vmatmul.f32.gmra.mxu0 %v3533
      %v3617 = vpop.f32.mrf.mxu0
      %v3618 = vadd.f32 %v3418, %v3617
      %3619 = vmatmul.f32.gmra.mxu0 %v3535
      %v3620 = vpop.f32.mrf.mxu0
      %v3621 = vadd.f32 %v3419, %v3620
      %3622 = vmatmul.f32.gmra.mxu0 %v3537
      %v3623 = vpop.f32.mrf.mxu0
      %v3624 = vadd.f32 %v3420, %v3623
      %3625 = vmatmul.f32.gmra.mxu0 %v3539
      %v3626 = vpop.f32.mrf.mxu0
      %v3627 = vadd.f32 %v3421, %v3626
      %3628 = vmatmul.f32.gmra.mxu0 %v3541
      %v3629 = vpop.f32.mrf.mxu0
      %v3630 = vadd.f32 %v3422, %v3629
      %3631 = vmatmul.f32.gmra.mxu0 %v3543
      %v3632 = vpop.f32.mrf.mxu0
      %v3633 = vadd.f32 %v3423, %v3632
      %3634 = vmatmul.f32.gmra.mxu0 %v3545
      %v3635 = vpop.f32.mrf.mxu0
      %v3636 = vadd.f32 %v3424, %v3635
      %3637 = vmatmul.f32.gmra.mxu0 %v3547
      %v3638 = vpop.f32.mrf.mxu0
      %v3639 = vadd.f32 %v3425, %v3638
      %3640 = vmatmul.f32.gmra.mxu0 %v3549
      %v3641 = vpop.f32.mrf.mxu0
      %v3642 = vadd.f32 %v3426, %v3641
      %3643 = vmatmul.f32.gmra.mxu0 %v3551
      %v3644 = vpop.f32.mrf.mxu0
      %v3645 = vadd.f32 %v3427, %v3644
      %3646 = vmatmul.f32.gmra.mxu0 %v3553
      %v3647 = vpop.f32.mrf.mxu0
      %v3648 = vadd.f32 %v3428, %v3647
      %3649 = vmatmul.f32.gmra.mxu0 %v3555
      %v3650 = vpop.f32.mrf.mxu0
      %v3651 = vadd.f32 %v3429, %v3650
      %3652 = vmatmul.f32.gmra.mxu0 %v3557
      %v3653 = vpop.f32.mrf.mxu0
      %v3654 = vadd.f32 %v3430, %v3653
      %3655 = vdwg.mxu0
      %3656 = vmax.xlane.f32.xlu0 %v3609
      %v3657 = vpop.xlane.xlu0 %3656
      %3658 = vmax.xlane.f32.xlu0 %v3612
      %v3659 = vpop.xlane.xlu0 %3658
      %3660 = vmax.xlane.f32.xlu0 %v3615
      %v3661 = vpop.xlane.xlu0 %3660
      %3662 = vmax.xlane.f32.xlu0 %v3618
      %v3663 = vpop.xlane.xlu0 %3662
      %3664 = vmax.xlane.f32.xlu0 %v3621
      %v3665 = vpop.xlane.xlu0 %3664
      %3666 = vmax.xlane.f32.xlu0 %v3624
      %v3667 = vpop.xlane.xlu0 %3666
      %3668 = vmax.xlane.f32.xlu0 %v3627
      %v3669 = vpop.xlane.xlu0 %3668
      %3670 = vmax.xlane.f32.xlu0 %v3630
      %v3671 = vpop.xlane.xlu0 %3670
      %3672 = vmax.xlane.f32.xlu0 %v3633
      %v3673 = vpop.xlane.xlu0 %3672
      %3674 = vmax.xlane.f32.xlu0 %v3636
      %v3675 = vpop.xlane.xlu0 %3674
      %3676 = vmax.xlane.f32.xlu0 %v3639
      %v3677 = vpop.xlane.xlu0 %3676
      %3678 = vmax.xlane.f32.xlu0 %v3642
      %v3679 = vpop.xlane.xlu0 %3678
      %3680 = vmax.xlane.f32.xlu0 %v3645
      %v3681 = vpop.xlane.xlu0 %3680
      %3682 = vmax.xlane.f32.xlu0 %v3648
      %v3683 = vpop.xlane.xlu0 %3682
      %3684 = vmax.xlane.f32.xlu0 %v3651
      %v3685 = vpop.xlane.xlu0 %3684
      %3686 = vmax.xlane.f32.xlu0 %v3654
      %v3687 = vpop.xlane.xlu0 %3686
      %v3688 = vsub.f32 %v3609, %v3657
      %v3689 = vsub.f32 %v3612, %v3659
      %v3690 = vsub.f32 %v3615, %v3661
      %v3691 = vsub.f32 %v3618, %v3663
      %v3692 = vsub.f32 %v3621, %v3665
      %v3693 = vsub.f32 %v3624, %v3667
      %v3694 = vsub.f32 %v3627, %v3669
      %v3695 = vsub.f32 %v3630, %v3671
      %v3696 = vsub.f32 %v3633, %v3673
      %v3697 = vsub.f32 %v3636, %v3675
      %v3698 = vsub.f32 %v3639, %v3677
      %v3699 = vsub.f32 %v3642, %v3679
      %v3700 = vsub.f32 %v3645, %v3681
      %v3701 = vsub.f32 %v3648, %v3683
      %v3702 = vsub.f32 %v3651, %v3685
      %v3703 = vsub.f32 %v3654, %v3687
      %v3704 = vmul.f32 %v3688, 1.442695
      %v3705 = vpow.pop %v3704
      %v3706 = vmul.f32 %v3689, 1.442695
      %v3707 = vpow.pop %v3706
      %v3708 = vmul.f32 %v3690, 1.442695
      %v3709 = vpow.pop %v3708
      %v3710 = vmul.f32 %v3691, 1.442695
      %v3711 = vpow.pop %v3710
      %v3712 = vmul.f32 %v3692, 1.442695
      %v3713 = vpow.pop %v3712
      %v3714 = vmul.f32 %v3693, 1.442695
      %v3715 = vpow.pop %v3714
      %v3716 = vmul.f32 %v3694, 1.442695
      %v3717 = vpow.pop %v3716
      %v3718 = vmul.f32 %v3695, 1.442695
      %v3719 = vpow.pop %v3718
      %v3720 = vmul.f32 %v3696, 1.442695
      %v3721 = vpow.pop %v3720
      %v3722 = vmul.f32 %v3697, 1.442695
      %v3723 = vpow.pop %v3722
      %v3724 = vmul.f32 %v3698, 1.442695
      %v3725 = vpow.pop %v3724
      %v3726 = vmul.f32 %v3699, 1.442695
      %v3727 = vpow.pop %v3726
      %v3728 = vmul.f32 %v3700, 1.442695
      %v3729 = vpow.pop %v3728
      %v3730 = vmul.f32 %v3701, 1.442695
      %v3731 = vpow.pop %v3730
      %v3732 = vmul.f32 %v3702, 1.442695
      %v3733 = vpow.pop %v3732
      %v3734 = vmul.f32 %v3703, 1.442695
      %v3735 = vpow.pop %v3734
      %3736 = vadd.xlane.f32.xlu0 %v3705
      %v3737 = vpop.xlane.xlu0 %3736
      %3738 = vadd.xlane.f32.xlu0 %v3707
      %v3739 = vpop.xlane.xlu0 %3738
      %3740 = vadd.xlane.f32.xlu0 %v3709
      %v3741 = vpop.xlane.xlu0 %3740
      %3742 = vadd.xlane.f32.xlu0 %v3711
      %v3743 = vpop.xlane.xlu0 %3742
      %3744 = vadd.xlane.f32.xlu0 %v3713
      %v3745 = vpop.xlane.xlu0 %3744
      %3746 = vadd.xlane.f32.xlu0 %v3715
      %v3747 = vpop.xlane.xlu0 %3746
      %3748 = vadd.xlane.f32.xlu0 %v3717
      %v3749 = vpop.xlane.xlu0 %3748
      %3750 = vadd.xlane.f32.xlu0 %v3719
      %v3751 = vpop.xlane.xlu0 %3750
      %3752 = vadd.xlane.f32.xlu0 %v3721
      %v3753 = vpop.xlane.xlu0 %3752
      %3754 = vadd.xlane.f32.xlu0 %v3723
      %v3755 = vpop.xlane.xlu0 %3754
      %3756 = vadd.xlane.f32.xlu0 %v3725
      %v3757 = vpop.xlane.xlu0 %3756
      %3758 = vadd.xlane.f32.xlu0 %v3727
      %v3759 = vpop.xlane.xlu0 %3758
      %3760 = vadd.xlane.f32.xlu0 %v3729
      %v3761 = vpop.xlane.xlu0 %3760
      %3762 = vadd.xlane.f32.xlu0 %v3731
      %v3763 = vpop.xlane.xlu0 %3762
      %3764 = vadd.xlane.f32.xlu0 %v3733
      %v3765 = vpop.xlane.xlu0 %3764
      %3766 = vadd.xlane.f32.xlu0 %v3735
      %v3767 = vpop.xlane.xlu0 %3766
      %3784 = vrot.lane.b32.xlu0 %v3399, 104
      %v3785 = vpop.permute.xlu0 %3784
      %3786 = vrot.lane.b32.xlu0 %v3400, 104
      %v3787 = vpop.permute.xlu0 %3786
      %3788 = vrot.lane.b32.xlu0 %v3401, 104
      %v3789 = vpop.permute.xlu0 %3788
      %3790 = vrot.lane.b32.xlu0 %v3402, 104
      %v3791 = vpop.permute.xlu0 %3790
      %3792 = vrot.lane.b32.xlu0 %v3403, 104
      %v3793 = vpop.permute.xlu0 %3792
      %3794 = vrot.lane.b32.xlu0 %v3404, 104
      %v3795 = vpop.permute.xlu0 %3794
      %3796 = vrot.lane.b32.xlu0 %v3405, 104
      %v3797 = vpop.permute.xlu0 %3796
      %3798 = vrot.lane.b32.xlu0 %v3406, 104
      %v3799 = vpop.permute.xlu0 %3798
      %3800 = vrot.lane.b32.xlu0 %v3407, 104
      %v3801 = vpop.permute.xlu0 %3800
      %3802 = vrot.lane.b32.xlu0 %v3408, 104
      %v3803 = vpop.permute.xlu0 %3802
      %3804 = vrot.lane.b32.xlu0 %v3409, 104
      %v3805 = vpop.permute.xlu0 %3804
      %3806 = vrot.lane.b32.xlu0 %v3410, 104
      %v3807 = vpop.permute.xlu0 %3806
      %3808 = vrot.lane.b32.xlu0 %v3411, 104
      %v3809 = vpop.permute.xlu0 %3808
      %3810 = vrot.lane.b32.xlu0 %v3412, 104
      %v3811 = vpop.permute.xlu0 %3810
      %3812 = vrot.lane.b32.xlu0 %v3413, 104
      %v3813 = vpop.permute.xlu0 %3812
      %3814 = vrot.lane.b32.xlu0 %v3414, 104
      %v3815 = vpop.permute.xlu0 %3814
      %3832 = vmatpush.msra.mxu0 %v3815
      %3833 = vmatpush.msra.mxu0 %v3813
      %3834 = vmatpush.msra.mxu0 %v3811
      %3835 = vmatpush.msra.mxu0 %v3809
      %3836 = vmatpush.msra.mxu0 %v3807
      %3837 = vmatpush.msra.mxu0 %v3805
      %3838 = vmatpush.msra.mxu0 %v3803
      %3839 = vmatpush.msra.mxu0 %v3801
      %3840 = vmatpush.msra.mxu0 %v3799
      %3841 = vmatpush.msra.mxu0 %v3797
      %3842 = vmatpush.msra.mxu0 %v3795
      %3843 = vmatpush.msra.mxu0 %v3793
      %3844 = vmatpush.msra.mxu0 %v3791
      %3845 = vmatpush.msra.mxu0 %v3789
      %3846 = vmatpush.msra.mxu0 %v3787
      %3847 = vmatpush.msra.mxu0 %v3785
      %3848 = vmatmul.f32.gmra.mxu0 %v3705
      %v3849 = vpop.f32.mrf.mxu0
      %v3850 = vadd.f32 0.0, %v3849
      %3851 = vmatmul.f32.gmra.mxu0 %v3707
      %v3852 = vpop.f32.mrf.mxu0
      %v3853 = vadd.f32 0.0, %v3852
      %3854 = vmatmul.f32.gmra.mxu0 %v3709
      %v3855 = vpop.f32.mrf.mxu0
      %v3856 = vadd.f32 0.0, %v3855
      %3857 = vmatmul.f32.gmra.mxu0 %v3711
      %v3858 = vpop.f32.mrf.mxu0
      %v3859 = vadd.f32 0.0, %v3858
      %3860 = vmatmul.f32.gmra.mxu0 %v3713
      %v3861 = vpop.f32.mrf.mxu0
      %v3862 = vadd.f32 0.0, %v3861
      %3863 = vmatmul.f32.gmra.mxu0 %v3715
      %v3864 = vpop.f32.mrf.mxu0
      %v3865 = vadd.f32 0.0, %v3864
      %3866 = vmatmul.f32.gmra.mxu0 %v3717
      %v3867 = vpop.f32.mrf.mxu0
      %v3868 = vadd.f32 0.0, %v3867
      %3869 = vmatmul.f32.gmra.mxu0 %v3719
      %v3870 = vpop.f32.mrf.mxu0
      %v3871 = vadd.f32 0.0, %v3870
      %3872 = vmatmul.f32.gmra.mxu0 %v3721
      %v3873 = vpop.f32.mrf.mxu0
      %v3874 = vadd.f32 0.0, %v3873
      %3875 = vmatmul.f32.gmra.mxu0 %v3723
      %v3876 = vpop.f32.mrf.mxu0
      %v3877 = vadd.f32 0.0, %v3876
      %3878 = vmatmul.f32.gmra.mxu0 %v3725
      %v3879 = vpop.f32.mrf.mxu0
      %v3880 = vadd.f32 0.0, %v3879
      %3881 = vmatmul.f32.gmra.mxu0 %v3727
      %v3882 = vpop.f32.mrf.mxu0
      %v3883 = vadd.f32 0.0, %v3882
      %3884 = vmatmul.f32.gmra.mxu0 %v3729
      %v3885 = vpop.f32.mrf.mxu0
      %v3886 = vadd.f32 0.0, %v3885
      %3887 = vmatmul.f32.gmra.mxu0 %v3731
      %v3888 = vpop.f32.mrf.mxu0
      %v3889 = vadd.f32 0.0, %v3888
      %3890 = vmatmul.f32.gmra.mxu0 %v3733
      %v3891 = vpop.f32.mrf.mxu0
      %v3892 = vadd.f32 0.0, %v3891
      %3893 = vmatmul.f32.gmra.mxu0 %v3735
      %v3894 = vpop.f32.mrf.mxu0
      %v3895 = vadd.f32 0.0, %v3894
      %3896 = vdwg.mxu0
      %v3897 = vrcp.pop %v3737
      %v3898 = vmul.f32 %v3737, %v3897
      %v3899 = vsub.f32 1.0, %v3898
      %v3900 = vmul.f32 %v3897, %v3899
      %v3901 = vadd.f32 %v3897, %v3900
      %vm3902 = vweird.f32 %v3737
      %vm3903 = vweird.f32 %v3897
      %vm3904 = vmor %vm3902, %vm3903
      %v3905 = vsel %vm3904, %v3897, %v3901
      %v3906 = vand.u32 2147483647, %v3737
      %vm3907 = vcmp.eq.f32.partialorder %v3906, 8.507059e+37
      %v3908 = vand.u32 %v3737, 2147483648
      %v3909 = vor.u32 1.1754944e-38, %v3908
      %v3910 = vsel %vm3907, %v3909, %v3905
      %v3911 = vmul.f32 1.0, %v3910
      %v3912 = vrcp.pop %v3739
      %v3913 = vmul.f32 %v3739, %v3912
      %v3914 = vsub.f32 1.0, %v3913
      %v3915 = vmul.f32 %v3912, %v3914
      %v3916 = vadd.f32 %v3912, %v3915
      %vm3917 = vweird.f32 %v3739
      %vm3918 = vweird.f32 %v3912
      %vm3919 = vmor %vm3917, %vm3918
      %v3920 = vsel %vm3919, %v3912, %v3916
      %v3921 = vand.u32 2147483647, %v3739
      %vm3922 = vcmp.eq.f32.partialorder %v3921, 8.507059e+37
      %v3923 = vand.u32 %v3739, 2147483648
      %v3924 = vor.u32 1.1754944e-38, %v3923
      %v3925 = vsel %vm3922, %v3924, %v3920
      %v3926 = vmul.f32 1.0, %v3925
      %v3927 = vrcp.pop %v3741
      %v3928 = vmul.f32 %v3741, %v3927
      %v3929 = vsub.f32 1.0, %v3928
      %v3930 = vmul.f32 %v3927, %v3929
      %v3931 = vadd.f32 %v3927, %v3930
      %vm3932 = vweird.f32 %v3741
      %vm3933 = vweird.f32 %v3927
      %vm3934 = vmor %vm3932, %vm3933
      %v3935 = vsel %vm3934, %v3927, %v3931
      %v3936 = vand.u32 2147483647, %v3741
      %vm3937 = vcmp.eq.f32.partialorder %v3936, 8.507059e+37
      %v3938 = vand.u32 %v3741, 2147483648
      %v3939 = vor.u32 1.1754944e-38, %v3938
      %v3940 = vsel %vm3937, %v3939, %v3935
      %v3941 = vmul.f32 1.0, %v3940
      %v3942 = vrcp.pop %v3743
      %v3943 = vmul.f32 %v3743, %v3942
      %v3944 = vsub.f32 1.0, %v3943
      %v3945 = vmul.f32 %v3942, %v3944
      %v3946 = vadd.f32 %v3942, %v3945
      %vm3947 = vweird.f32 %v3743
      %vm3948 = vweird.f32 %v3942
      %vm3949 = vmor %vm3947, %vm3948
      %v3950 = vsel %vm3949, %v3942, %v3946
      %v3951 = vand.u32 2147483647, %v3743
      %vm3952 = vcmp.eq.f32.partialorder %v3951, 8.507059e+37
      %v3953 = vand.u32 %v3743, 2147483648
      %v3954 = vor.u32 1.1754944e-38, %v3953
      %v3955 = vsel %vm3952, %v3954, %v3950
      %v3956 = vmul.f32 1.0, %v3955
      %v3957 = vrcp.pop %v3745
      %v3958 = vmul.f32 %v3745, %v3957
      %v3959 = vsub.f32 1.0, %v3958
      %v3960 = vmul.f32 %v3957, %v3959
      %v3961 = vadd.f32 %v3957, %v3960
      %vm3962 = vweird.f32 %v3745
      %vm3963 = vweird.f32 %v3957
      %vm3964 = vmor %vm3962, %vm3963
      %v3965 = vsel %vm3964, %v3957, %v3961
      %v3966 = vand.u32 2147483647, %v3745
      %vm3967 = vcmp.eq.f32.partialorder %v3966, 8.507059e+37
      %v3968 = vand.u32 %v3745, 2147483648
      %v3969 = vor.u32 1.1754944e-38, %v3968
      %v3970 = vsel %vm3967, %v3969, %v3965
      %v3971 = vmul.f32 1.0, %v3970
      %v3972 = vrcp.pop %v3747
      %v3973 = vmul.f32 %v3747, %v3972
      %v3974 = vsub.f32 1.0, %v3973
      %v3975 = vmul.f32 %v3972, %v3974
      %v3976 = vadd.f32 %v3972, %v3975
      %vm3977 = vweird.f32 %v3747
      %vm3978 = vweird.f32 %v3972
      %vm3979 = vmor %vm3977, %vm3978
      %v3980 = vsel %vm3979, %v3972, %v3976
      %v3981 = vand.u32 2147483647, %v3747
      %vm3982 = vcmp.eq.f32.partialorder %v3981, 8.507059e+37
      %v3983 = vand.u32 %v3747, 2147483648
      %v3984 = vor.u32 1.1754944e-38, %v3983
      %v3985 = vsel %vm3982, %v3984, %v3980
      %v3986 = vmul.f32 1.0, %v3985
      %v3987 = vrcp.pop %v3749
      %v3988 = vmul.f32 %v3749, %v3987
      %v3989 = vsub.f32 1.0, %v3988
      %v3990 = vmul.f32 %v3987, %v3989
      %v3991 = vadd.f32 %v3987, %v3990
      %vm3992 = vweird.f32 %v3749
      %vm3993 = vweird.f32 %v3987
      %vm3994 = vmor %vm3992, %vm3993
      %v3995 = vsel %vm3994, %v3987, %v3991
      %v3996 = vand.u32 2147483647, %v3749
      %vm3997 = vcmp.eq.f32.partialorder %v3996, 8.507059e+37
      %v3998 = vand.u32 %v3749, 2147483648
      %v3999 = vor.u32 1.1754944e-38, %v3998
      %v4000 = vsel %vm3997, %v3999, %v3995
      %v4001 = vmul.f32 1.0, %v4000
      %v4002 = vrcp.pop %v3751
      %v4003 = vmul.f32 %v3751, %v4002
      %v4004 = vsub.f32 1.0, %v4003
      %v4005 = vmul.f32 %v4002, %v4004
      %v4006 = vadd.f32 %v4002, %v4005
      %vm4007 = vweird.f32 %v3751
      %vm4008 = vweird.f32 %v4002
      %vm4009 = vmor %vm4007, %vm4008
      %v4010 = vsel %vm4009, %v4002, %v4006
      %v4011 = vand.u32 2147483647, %v3751
      %vm4012 = vcmp.eq.f32.partialorder %v4011, 8.507059e+37
      %v4013 = vand.u32 %v3751, 2147483648
      %v4014 = vor.u32 1.1754944e-38, %v4013
      %v4015 = vsel %vm4012, %v4014, %v4010
      %v4016 = vmul.f32 1.0, %v4015
      %v4017 = vrcp.pop %v3753
      %v4018 = vmul.f32 %v3753, %v4017
      %v4019 = vsub.f32 1.0, %v4018
      %v4020 = vmul.f32 %v4017, %v4019
      %v4021 = vadd.f32 %v4017, %v4020
      %vm4022 = vweird.f32 %v3753
      %vm4023 = vweird.f32 %v4017
      %vm4024 = vmor %vm4022, %vm4023
      %v4025 = vsel %vm4024, %v4017, %v4021
      %v4026 = vand.u32 2147483647, %v3753
      %vm4027 = vcmp.eq.f32.partialorder %v4026, 8.507059e+37
      %v4028 = vand.u32 %v3753, 2147483648
      %v4029 = vor.u32 1.1754944e-38, %v4028
      %v4030 = vsel %vm4027, %v4029, %v4025
      %v4031 = vmul.f32 1.0, %v4030
      %v4032 = vrcp.pop %v3755
      %v4033 = vmul.f32 %v3755, %v4032
      %v4034 = vsub.f32 1.0, %v4033
      %v4035 = vmul.f32 %v4032, %v4034
      %v4036 = vadd.f32 %v4032, %v4035
      %vm4037 = vweird.f32 %v3755
      %vm4038 = vweird.f32 %v4032
      %vm4039 = vmor %vm4037, %vm4038
      %v4040 = vsel %vm4039, %v4032, %v4036
      %v4041 = vand.u32 2147483647, %v3755
      %vm4042 = vcmp.eq.f32.partialorder %v4041, 8.507059e+37
      %v4043 = vand.u32 %v3755, 2147483648
      %v4044 = vor.u32 1.1754944e-38, %v4043
      %v4045 = vsel %vm4042, %v4044, %v4040
      %v4046 = vmul.f32 1.0, %v4045
      %v4047 = vrcp.pop %v3757
      %v4048 = vmul.f32 %v3757, %v4047
      %v4049 = vsub.f32 1.0, %v4048
      %v4050 = vmul.f32 %v4047, %v4049
      %v4051 = vadd.f32 %v4047, %v4050
      %vm4052 = vweird.f32 %v3757
      %vm4053 = vweird.f32 %v4047
      %vm4054 = vmor %vm4052, %vm4053
      %v4055 = vsel %vm4054, %v4047, %v4051
      %v4056 = vand.u32 2147483647, %v3757
      %vm4057 = vcmp.eq.f32.partialorder %v4056, 8.507059e+37
      %v4058 = vand.u32 %v3757, 2147483648
      %v4059 = vor.u32 1.1754944e-38, %v4058
      %v4060 = vsel %vm4057, %v4059, %v4055
      %v4061 = vmul.f32 1.0, %v4060
      %v4062 = vrcp.pop %v3759
      %v4063 = vmul.f32 %v3759, %v4062
      %v4064 = vsub.f32 1.0, %v4063
      %v4065 = vmul.f32 %v4062, %v4064
      %v4066 = vadd.f32 %v4062, %v4065
      %vm4067 = vweird.f32 %v3759
      %vm4068 = vweird.f32 %v4062
      %vm4069 = vmor %vm4067, %vm4068
      %v4070 = vsel %vm4069, %v4062, %v4066
      %v4071 = vand.u32 2147483647, %v3759
      %vm4072 = vcmp.eq.f32.partialorder %v4071, 8.507059e+37
      %v4073 = vand.u32 %v3759, 2147483648
      %v4074 = vor.u32 1.1754944e-38, %v4073
      %v4075 = vsel %vm4072, %v4074, %v4070
      %v4076 = vmul.f32 1.0, %v4075
      %v4077 = vrcp.pop %v3761
      %v4078 = vmul.f32 %v3761, %v4077
      %v4079 = vsub.f32 1.0, %v4078
      %v4080 = vmul.f32 %v4077, %v4079
      %v4081 = vadd.f32 %v4077, %v4080
      %vm4082 = vweird.f32 %v3761
      %vm4083 = vweird.f32 %v4077
      %vm4084 = vmor %vm4082, %vm4083
      %v4085 = vsel %vm4084, %v4077, %v4081
      %v4086 = vand.u32 2147483647, %v3761
      %vm4087 = vcmp.eq.f32.partialorder %v4086, 8.507059e+37
      %v4088 = vand.u32 %v3761, 2147483648
      %v4089 = vor.u32 1.1754944e-38, %v4088
      %v4090 = vsel %vm4087, %v4089, %v4085
      %v4091 = vmul.f32 1.0, %v4090
      %v4092 = vrcp.pop %v3763
      %v4093 = vmul.f32 %v3763, %v4092
      %v4094 = vsub.f32 1.0, %v4093
      %v4095 = vmul.f32 %v4092, %v4094
      %v4096 = vadd.f32 %v4092, %v4095
      %vm4097 = vweird.f32 %v3763
      %vm4098 = vweird.f32 %v4092
      %vm4099 = vmor %vm4097, %vm4098
      %v4100 = vsel %vm4099, %v4092, %v4096
      %v4101 = vand.u32 2147483647, %v3763
      %vm4102 = vcmp.eq.f32.partialorder %v4101, 8.507059e+37
      %v4103 = vand.u32 %v3763, 2147483648
      %v4104 = vor.u32 1.1754944e-38, %v4103
      %v4105 = vsel %vm4102, %v4104, %v4100
      %v4106 = vmul.f32 1.0, %v4105
      %v4107 = vrcp.pop %v3765
      %v4108 = vmul.f32 %v3765, %v4107
      %v4109 = vsub.f32 1.0, %v4108
      %v4110 = vmul.f32 %v4107, %v4109
      %v4111 = vadd.f32 %v4107, %v4110
      %vm4112 = vweird.f32 %v3765
      %vm4113 = vweird.f32 %v4107
      %vm4114 = vmor %vm4112, %vm4113
      %v4115 = vsel %vm4114, %v4107, %v4111
      %v4116 = vand.u32 2147483647, %v3765
      %vm4117 = vcmp.eq.f32.partialorder %v4116, 8.507059e+37
      %v4118 = vand.u32 %v3765, 2147483648
      %v4119 = vor.u32 1.1754944e-38, %v4118
      %v4120 = vsel %vm4117, %v4119, %v4115
      %v4121 = vmul.f32 1.0, %v4120
      %v4122 = vrcp.pop %v3767
      %v4123 = vmul.f32 %v3767, %v4122
      %v4124 = vsub.f32 1.0, %v4123
      %v4125 = vmul.f32 %v4122, %v4124
      %v4126 = vadd.f32 %v4122, %v4125
      %vm4127 = vweird.f32 %v3767
      %vm4128 = vweird.f32 %v4122
      %vm4129 = vmor %vm4127, %vm4128
      %v4130 = vsel %vm4129, %v4122, %v4126
      %v4131 = vand.u32 2147483647, %v3767
      %vm4132 = vcmp.eq.f32.partialorder %v4131, 8.507059e+37
      %v4133 = vand.u32 %v3767, 2147483648
      %v4134 = vor.u32 1.1754944e-38, %v4133
      %v4135 = vsel %vm4132, %v4134, %v4130
      %v4136 = vmul.f32 1.0, %v4135
      %v4137 = vmul.f32 %v3850, %v3911
      %v4138 = vmul.f32 %v3853, %v3926
      %v4139 = vmul.f32 %v3856, %v3941
      %v4140 = vmul.f32 %v3859, %v3956
      %v4141 = vmul.f32 %v3862, %v3971
      %v4142 = vmul.f32 %v3865, %v3986
      %v4143 = vmul.f32 %v3868, %v4001
      %v4144 = vmul.f32 %v3871, %v4016
      %v4145 = vmul.f32 %v3874, %v4031
      %v4146 = vmul.f32 %v3877, %v4046
      %v4147 = vmul.f32 %v3880, %v4061
      %v4148 = vmul.f32 %v3883, %v4076
      %v4149 = vmul.f32 %v3886, %v4091
      %v4150 = vmul.f32 %v3889, %v4106
      %v4151 = vmul.f32 %v3892, %v4121
      %v4152 = vmul.f32 %v3895, %v4136
      %v4153 = vld [vmem:[#allocation6] sm:$0xff]
      %v4154 = vld [vmem:[#allocation6 + $0x8] sm:$0xff]
      %v4155 = vld [vmem:[#allocation6 + $0x10] sm:$0xff]
      %v4156 = vld [vmem:[#allocation6 + $0x18] sm:$0xff]
      %v4157 = vld [vmem:[#allocation6 + $0x20] sm:$0xff]
      %v4158 = vld [vmem:[#allocation6 + $0x28] sm:$0xff]
      %v4159 = vld [vmem:[#allocation6 + $0x30] sm:$0xff]
      %v4160 = vld [vmem:[#allocation6 + $0x38] sm:$0xff]
      %v4161 = vld [vmem:[#allocation6 + $0x40] sm:$0xff]
      %v4162 = vld [vmem:[#allocation6 + $0x48] sm:$0xff]
      %v4163 = vld [vmem:[#allocation6 + $0x50] sm:$0xff]
      %v4164 = vld [vmem:[#allocation6 + $0x58] sm:$0xff]
      %v4165 = vld [vmem:[#allocation6 + $0x60] sm:$0xff]
      %v4166 = vld [vmem:[#allocation6 + $0x68] sm:$0xff]
      %v4167 = vld [vmem:[#allocation6 + $0x70] sm:$0xff]
      %v4168 = vld [vmem:[#allocation6 + $0x78] sm:$0xff]
      %v4169 = vld [vmem:[%s3 + $0x18] sm:$0xff]
      %v4171 = vsel %vm714, %v4137, 0
      %v4174 = vsel %vm714, %v4138, 0
      %v4177 = vsel %vm714, %v4139, 0
      %v4180 = vsel %vm714, %v4140, 0
      %v4183 = vsel %vm714, %v4141, 0
      %v4186 = vsel %vm714, %v4142, 0
      %v4189 = vsel %vm714, %v4143, 0
      %v4192 = vsel %vm714, %v4144, 0
      %v4195 = vsel %vm714, %v4145, 0
      %v4198 = vsel %vm714, %v4146, 0
      %v4201 = vsel %vm714, %v4147, 0
      %v4204 = vsel %vm714, %v4148, 0
      %v4207 = vsel %vm714, %v4149, 0
      %v4210 = vsel %vm714, %v4150, 0
      %v4213 = vsel %vm714, %v4151, 0
      %v4216 = vsel %vm714, %v4152, 0
      %4218 = vmatpush.msra.mxu0 0.0
      %4219 = vmatpush.msra.mxu0 0.0
      %4220 = vmatpush.msra.mxu0 0.0
      %4221 = vmatpush.msra.mxu0 0.0
      %4222 = vmatpush.msra.mxu0 0.0
      %4223 = vmatpush.msra.mxu0 0.0
      %4224 = vmatpush.msra.mxu0 0.0
      %4225 = vmatpush.msra.mxu0 0.0
      %4226 = vmatpush.msra.mxu0 0.0
      %4227 = vmatpush.msra.mxu0 0.0
      %4228 = vmatpush.msra.mxu0 0.0
      %4229 = vmatpush.msra.mxu0 0.0
      %4230 = vmatpush.msra.mxu0 0.0
      %4231 = vmatpush.msra.mxu0 0.0
      %4232 = vmatpush.msra.mxu0 0.0
      %4233 = vmatpush.msra.mxu0 %v4169
      %4234 = vmatmul.f32.gmra.mxu0 %v4171
      %v4235 = vpop.f32.mrf.mxu0
      %v4236 = vadd.f32 0.0, %v4235
      %4237 = vmatmul.f32.gmra.mxu0 %v4174
      %v4238 = vpop.f32.mrf.mxu0
      %v4239 = vadd.f32 0.0, %v4238
      %4240 = vmatmul.f32.gmra.mxu0 %v4177
      %v4241 = vpop.f32.mrf.mxu0
      %v4242 = vadd.f32 0.0, %v4241
      %4243 = vmatmul.f32.gmra.mxu0 %v4180
      %v4244 = vpop.f32.mrf.mxu0
      %v4245 = vadd.f32 0.0, %v4244
      %4246 = vmatmul.f32.gmra.mxu0 %v4183
      %v4247 = vpop.f32.mrf.mxu0
      %v4248 = vadd.f32 0.0, %v4247
      %4249 = vmatmul.f32.gmra.mxu0 %v4186
      %v4250 = vpop.f32.mrf.mxu0
      %v4251 = vadd.f32 0.0, %v4250
      %4252 = vmatmul.f32.gmra.mxu0 %v4189
      %v4253 = vpop.f32.mrf.mxu0
      %v4254 = vadd.f32 0.0, %v4253
      %4255 = vmatmul.f32.gmra.mxu0 %v4192
      %v4256 = vpop.f32.mrf.mxu0
      %v4257 = vadd.f32 0.0, %v4256
      %4258 = vmatmul.f32.gmra.mxu0 %v4195
      %v4259 = vpop.f32.mrf.mxu0
      %v4260 = vadd.f32 0.0, %v4259
      %4261 = vmatmul.f32.gmra.mxu0 %v4198
      %v4262 = vpop.f32.mrf.mxu0
      %v4263 = vadd.f32 0.0, %v4262
      %4264 = vmatmul.f32.gmra.mxu0 %v4201
      %v4265 = vpop.f32.mrf.mxu0
      %v4266 = vadd.f32 0.0, %v4265
      %4267 = vmatmul.f32.gmra.mxu0 %v4204
      %v4268 = vpop.f32.mrf.mxu0
      %v4269 = vadd.f32 0.0, %v4268
      %4270 = vmatmul.f32.gmra.mxu0 %v4207
      %v4271 = vpop.f32.mrf.mxu0
      %v4272 = vadd.f32 0.0, %v4271
      %4273 = vmatmul.f32.gmra.mxu0 %v4210
      %v4274 = vpop.f32.mrf.mxu0
      %v4275 = vadd.f32 0.0, %v4274
      %4276 = vmatmul.f32.gmra.mxu0 %v4213
      %v4277 = vpop.f32.mrf.mxu0
      %v4278 = vadd.f32 0.0, %v4277
      %4279 = vmatmul.f32.gmra.mxu0 %v4216
      %v4280 = vpop.f32.mrf.mxu0
      %v4281 = vadd.f32 0.0, %v4280
      %4282 = vdwg.mxu0
      %v4283 = vadd.f32 %v4153, %v4236
      %v4284 = vadd.f32 %v4154, %v4239
      %v4285 = vadd.f32 %v4155, %v4242
      %v4286 = vadd.f32 %v4156, %v4245
      %v4287 = vadd.f32 %v4157, %v4248
      %v4288 = vadd.f32 %v4158, %v4251
      %v4289 = vadd.f32 %v4159, %v4254
      %v4290 = vadd.f32 %v4160, %v4257
      %v4291 = vadd.f32 %v4161, %v4260
      %v4292 = vadd.f32 %v4162, %v4263
      %v4293 = vadd.f32 %v4163, %v4266
      %v4294 = vadd.f32 %v4164, %v4269
      %v4295 = vadd.f32 %v4165, %v4272
      %v4296 = vadd.f32 %v4166, %v4275
      %v4297 = vadd.f32 %v4167, %v4278
      %v4298 = vadd.f32 %v4168, %v4281
      %4299 = vst.msk [vmem:[#allocation6] sm:$0xff] %vm318, %v4283
      %4300 = vst.msk [vmem:[#allocation6 + $0x8] sm:$0xff] %vm318, %v4284
      %4301 = vst.msk [vmem:[#allocation6 + $0x10] sm:$0xff] %vm318, %v4285
      %4302 = vst.msk [vmem:[#allocation6 + $0x18] sm:$0xff] %vm318, %v4286
      %4303 = vst.msk [vmem:[#allocation6 + $0x20] sm:$0xff] %vm318, %v4287
      %4304 = vst.msk [vmem:[#allocation6 + $0x28] sm:$0xff] %vm318, %v4288
      %4305 = vst.msk [vmem:[#allocation6 + $0x30] sm:$0xff] %vm318, %v4289
      %4306 = vst.msk [vmem:[#allocation6 + $0x38] sm:$0xff] %vm318, %v4290
      %4307 = vst.msk [vmem:[#allocation6 + $0x40] sm:$0xff] %vm318, %v4291
      %4308 = vst.msk [vmem:[#allocation6 + $0x48] sm:$0xff] %vm318, %v4292
      %4309 = vst.msk [vmem:[#allocation6 + $0x50] sm:$0xff] %vm318, %v4293
      %4310 = vst.msk [vmem:[#allocation6 + $0x58] sm:$0xff] %vm318, %v4294
      %4311 = vst.msk [vmem:[#allocation6 + $0x60] sm:$0xff] %vm318, %v4295
      %4312 = vst.msk [vmem:[#allocation6 + $0x68] sm:$0xff] %vm318, %v4296
      %4313 = vst.msk [vmem:[#allocation6 + $0x70] sm:$0xff] %vm318, %v4297
      %4314 = vst.msk [vmem:[#allocation6 + $0x78] sm:$0xff] %vm318, %v4298
      %v4315 = vld [vmem:[#allocation3] sm:$0xff]
      %v4316 = vld [vmem:[#allocation3 + $0x8] sm:$0xff]
      %v4317 = vld [vmem:[#allocation3 + $0x10] sm:$0xff]
      %v4318 = vld [vmem:[#allocation3 + $0x18] sm:$0xff]
      %v4319 = vld [vmem:[#allocation3 + $0x20] sm:$0xff]
      %v4320 = vld [vmem:[#allocation3 + $0x28] sm:$0xff]
      %v4321 = vld [vmem:[#allocation3 + $0x30] sm:$0xff]
      %v4322 = vld [vmem:[#allocation3 + $0x38] sm:$0xff]
      %v4323 = vld [vmem:[#allocation3 + $0x40] sm:$0xff]
      %v4324 = vld [vmem:[#allocation3 + $0x48] sm:$0xff]
      %v4325 = vld [vmem:[#allocation3 + $0x50] sm:$0xff]
      %v4326 = vld [vmem:[#allocation3 + $0x58] sm:$0xff]
      %v4327 = vld [vmem:[#allocation3 + $0x60] sm:$0xff]
      %v4328 = vld [vmem:[#allocation3 + $0x68] sm:$0xff]
      %v4329 = vld [vmem:[#allocation3 + $0x70] sm:$0xff]
      %v4330 = vld [vmem:[#allocation3 + $0x78] sm:$0xff]
      %v4331 = vld [vmem:[#allocation4] sm:$0xff]
      %v4332 = vld [vmem:[#allocation4 + $0x8] sm:$0xff]
      %v4333 = vld [vmem:[#allocation4 + $0x10] sm:$0xff]
      %v4334 = vld [vmem:[#allocation4 + $0x18] sm:$0xff]
      %v4335 = vld [vmem:[#allocation4 + $0x20] sm:$0xff]
      %v4336 = vld [vmem:[#allocation4 + $0x28] sm:$0xff]
      %v4337 = vld [vmem:[#allocation4 + $0x30] sm:$0xff]
      %v4338 = vld [vmem:[#allocation4 + $0x38] sm:$0xff]
      %v4339 = vld [vmem:[#allocation4 + $0x40] sm:$0xff]
      %v4340 = vld [vmem:[#allocation4 + $0x48] sm:$0xff]
      %v4341 = vld [vmem:[#allocation4 + $0x50] sm:$0xff]
      %v4342 = vld [vmem:[#allocation4 + $0x58] sm:$0xff]
      %v4343 = vld [vmem:[#allocation4 + $0x60] sm:$0xff]
      %v4344 = vld [vmem:[#allocation4 + $0x68] sm:$0xff]
      %v4345 = vld [vmem:[#allocation4 + $0x70] sm:$0xff]
      %v4346 = vld [vmem:[#allocation4 + $0x78] sm:$0xff]
      %v4347 = vld [vmem:[#allocation5] sm:$0xff]
      %v4348 = vld [vmem:[#allocation5 + $0x8] sm:$0xff]
      %v4349 = vld [vmem:[#allocation5 + $0x10] sm:$0xff]
      %v4350 = vld [vmem:[#allocation5 + $0x18] sm:$0xff]
      %v4351 = vld [vmem:[#allocation5 + $0x20] sm:$0xff]
      %v4352 = vld [vmem:[#allocation5 + $0x28] sm:$0xff]
      %v4353 = vld [vmem:[#allocation5 + $0x30] sm:$0xff]
      %v4354 = vld [vmem:[#allocation5 + $0x38] sm:$0xff]
      %v4355 = vld [vmem:[#allocation5 + $0x40] sm:$0xff]
      %v4356 = vld [vmem:[#allocation5 + $0x48] sm:$0xff]
      %v4357 = vld [vmem:[#allocation5 + $0x50] sm:$0xff]
      %v4358 = vld [vmem:[#allocation5 + $0x58] sm:$0xff]
      %v4359 = vld [vmem:[#allocation5 + $0x60] sm:$0xff]
      %v4360 = vld [vmem:[#allocation5 + $0x68] sm:$0xff]
      %v4361 = vld [vmem:[#allocation5 + $0x70] sm:$0xff]
      %v4362 = vld [vmem:[#allocation5 + $0x78] sm:$0xff]
      %v4363 = vld [vmem:[#allocation2] sm:$0xff]
      %v4364 = vld [vmem:[#allocation2 + $0x8] sm:$0xff]
      %v4365 = vld [vmem:[#allocation2 + $0x10] sm:$0xff]
      %v4366 = vld [vmem:[#allocation2 + $0x18] sm:$0xff]
      %v4367 = vld [vmem:[#allocation2 + $0x20] sm:$0xff]
      %v4368 = vld [vmem:[#allocation2 + $0x28] sm:$0xff]
      %v4369 = vld [vmem:[#allocation2 + $0x30] sm:$0xff]
      %v4370 = vld [vmem:[#allocation2 + $0x38] sm:$0xff]
      %v4371 = vld [vmem:[#allocation2 + $0x40] sm:$0xff]
      %v4372 = vld [vmem:[#allocation2 + $0x48] sm:$0xff]
      %v4373 = vld [vmem:[#allocation2 + $0x50] sm:$0xff]
      %v4374 = vld [vmem:[#allocation2 + $0x58] sm:$0xff]
      %v4375 = vld [vmem:[#allocation2 + $0x60] sm:$0xff]
      %v4376 = vld [vmem:[#allocation2 + $0x68] sm:$0xff]
      %v4377 = vld [vmem:[#allocation2 + $0x70] sm:$0xff]
      %v4378 = vld [vmem:[#allocation2 + $0x78] sm:$0xff]
      %4395 = vrot.lane.b32.xlu0 %v4315, 96
      %v4396 = vpop.permute.xlu0 %4395
      %4397 = vrot.lane.b32.xlu0 %v4316, 96
      %v4398 = vpop.permute.xlu0 %4397
      %4399 = vrot.lane.b32.xlu0 %v4317, 96
      %v4400 = vpop.permute.xlu0 %4399
      %4401 = vrot.lane.b32.xlu0 %v4318, 96
      %v4402 = vpop.permute.xlu0 %4401
      %4403 = vrot.lane.b32.xlu0 %v4319, 96
      %v4404 = vpop.permute.xlu0 %4403
      %4405 = vrot.lane.b32.xlu0 %v4320, 96
      %v4406 = vpop.permute.xlu0 %4405
      %4407 = vrot.lane.b32.xlu0 %v4321, 96
      %v4408 = vpop.permute.xlu0 %4407
      %4409 = vrot.lane.b32.xlu0 %v4322, 96
      %v4410 = vpop.permute.xlu0 %4409
      %4411 = vrot.lane.b32.xlu0 %v4323, 96
      %v4412 = vpop.permute.xlu0 %4411
      %4413 = vrot.lane.b32.xlu0 %v4324, 96
      %v4414 = vpop.permute.xlu0 %4413
      %4415 = vrot.lane.b32.xlu0 %v4325, 96
      %v4416 = vpop.permute.xlu0 %4415
      %4417 = vrot.lane.b32.xlu0 %v4326, 96
      %v4418 = vpop.permute.xlu0 %4417
      %4419 = vrot.lane.b32.xlu0 %v4327, 96
      %v4420 = vpop.permute.xlu0 %4419
      %4421 = vrot.lane.b32.xlu0 %v4328, 96
      %v4422 = vpop.permute.xlu0 %4421
      %4423 = vrot.lane.b32.xlu0 %v4329, 96
      %v4424 = vpop.permute.xlu0 %4423
      %4425 = vrot.lane.b32.xlu0 %v4330, 96
      %v4426 = vpop.permute.xlu0 %4425
      %4443 = vrot.lane.b32.xlu0 %v4331, 96
      %v4444 = vpop.permute.xlu0 %4443
      %4445 = vrot.lane.b32.xlu0 %v4332, 96
      %v4446 = vpop.permute.xlu0 %4445
      %4447 = vrot.lane.b32.xlu0 %v4333, 96
      %v4448 = vpop.permute.xlu0 %4447
      %4449 = vrot.lane.b32.xlu0 %v4334, 96
      %v4450 = vpop.permute.xlu0 %4449
      %4451 = vrot.lane.b32.xlu0 %v4335, 96
      %v4452 = vpop.permute.xlu0 %4451
      %4453 = vrot.lane.b32.xlu0 %v4336, 96
      %v4454 = vpop.permute.xlu0 %4453
      %4455 = vrot.lane.b32.xlu0 %v4337, 96
      %v4456 = vpop.permute.xlu0 %4455
      %4457 = vrot.lane.b32.xlu0 %v4338, 96
      %v4458 = vpop.permute.xlu0 %4457
      %4459 = vrot.lane.b32.xlu0 %v4339, 96
      %v4460 = vpop.permute.xlu0 %4459
      %4461 = vrot.lane.b32.xlu0 %v4340, 96
      %v4462 = vpop.permute.xlu0 %4461
      %4463 = vrot.lane.b32.xlu0 %v4341, 96
      %v4464 = vpop.permute.xlu0 %4463
      %4465 = vrot.lane.b32.xlu0 %v4342, 96
      %v4466 = vpop.permute.xlu0 %4465
      %4467 = vrot.lane.b32.xlu0 %v4343, 96
      %v4468 = vpop.permute.xlu0 %4467
      %4469 = vrot.lane.b32.xlu0 %v4344, 96
      %v4470 = vpop.permute.xlu0 %4469
      %4471 = vrot.lane.b32.xlu0 %v4345, 96
      %v4472 = vpop.permute.xlu0 %4471
      %4473 = vrot.lane.b32.xlu0 %v4346, 96
      %v4474 = vpop.permute.xlu0 %4473
      %v4475 = vsel %vm714, %v4396, 0
      %v4477 = vsel %vm714, %v4398, 0
      %v4479 = vsel %vm714, %v4400, 0
      %v4481 = vsel %vm714, %v4402, 0
      %v4483 = vsel %vm714, %v4404, 0
      %v4485 = vsel %vm714, %v4406, 0
      %v4487 = vsel %vm714, %v4408, 0
      %v4489 = vsel %vm714, %v4410, 0
      %v4491 = vsel %vm714, %v4412, 0
      %v4493 = vsel %vm714, %v4414, 0
      %v4495 = vsel %vm714, %v4416, 0
      %v4497 = vsel %vm714, %v4418, 0
      %v4499 = vsel %vm714, %v4420, 0
      %v4501 = vsel %vm714, %v4422, 0
      %v4503 = vsel %vm714, %v4424, 0
      %v4505 = vsel %vm714, %v4426, 0
      %v4507 = vsel %vm714, %v4444, 0
      %v4509 = vsel %vm714, %v4446, 0
      %v4511 = vsel %vm714, %v4448, 0
      %v4513 = vsel %vm714, %v4450, 0
      %v4515 = vsel %vm714, %v4452, 0
      %v4517 = vsel %vm714, %v4454, 0
      %v4519 = vsel %vm714, %v4456, 0
      %v4521 = vsel %vm714, %v4458, 0
      %v4523 = vsel %vm714, %v4460, 0
      %v4525 = vsel %vm714, %v4462, 0
      %v4527 = vsel %vm714, %v4464, 0
      %v4529 = vsel %vm714, %v4466, 0
      %v4531 = vsel %vm714, %v4468, 0
      %v4533 = vsel %vm714, %v4470, 0
      %v4535 = vsel %vm714, %v4472, 0
      %v4537 = vsel %vm714, %v4474, 0
      %4539 = vmatpush.xpose.msra.mxu0 %v4537
      %4540 = vmatpush.xpose.msra.mxu0 %v4535
      %4541 = vmatpush.xpose.msra.mxu0 %v4533
      %4542 = vmatpush.xpose.msra.mxu0 %v4531
      %4543 = vmatpush.xpose.msra.mxu0 %v4529
      %4544 = vmatpush.xpose.msra.mxu0 %v4527
      %4545 = vmatpush.xpose.msra.mxu0 %v4525
      %4546 = vmatpush.xpose.msra.mxu0 %v4523
      %4547 = vmatpush.xpose.msra.mxu0 %v4521
      %4548 = vmatpush.xpose.msra.mxu0 %v4519
      %4549 = vmatpush.xpose.msra.mxu0 %v4517
      %4550 = vmatpush.xpose.msra.mxu0 %v4515
      %4551 = vmatpush.xpose.msra.mxu0 %v4513
      %4552 = vmatpush.xpose.msra.mxu0 %v4511
      %4553 = vmatpush.xpose.msra.mxu0 %v4509
      %4554 = vmatpush.xpose.msra.mxu0 %v4507
      %4555 = vmatmul.f32.gmra.mxu0 %v4475
      %v4556 = vpop.f32.mrf.mxu0
      %v4557 = vadd.f32 %v4363, %v4556
      %4558 = vmatmul.f32.gmra.mxu0 %v4477
      %v4559 = vpop.f32.mrf.mxu0
      %v4560 = vadd.f32 %v4364, %v4559
      %4561 = vmatmul.f32.gmra.mxu0 %v4479
      %v4562 = vpop.f32.mrf.mxu0
      %v4563 = vadd.f32 %v4365, %v4562
      %4564 = vmatmul.f32.gmra.mxu0 %v4481
      %v4565 = vpop.f32.mrf.mxu0
      %v4566 = vadd.f32 %v4366, %v4565
      %4567 = vmatmul.f32.gmra.mxu0 %v4483
      %v4568 = vpop.f32.mrf.mxu0
      %v4569 = vadd.f32 %v4367, %v4568
      %4570 = vmatmul.f32.gmra.mxu0 %v4485
      %v4571 = vpop.f32.mrf.mxu0
      %v4572 = vadd.f32 %v4368, %v4571
      %4573 = vmatmul.f32.gmra.mxu0 %v4487
      %v4574 = vpop.f32.mrf.mxu0
      %v4575 = vadd.f32 %v4369, %v4574
      %4576 = vmatmul.f32.gmra.mxu0 %v4489
      %v4577 = vpop.f32.mrf.mxu0
      %v4578 = vadd.f32 %v4370, %v4577
      %4579 = vmatmul.f32.gmra.mxu0 %v4491
      %v4580 = vpop.f32.mrf.mxu0
      %v4581 = vadd.f32 %v4371, %v4580
      %4582 = vmatmul.f32.gmra.mxu0 %v4493
      %v4583 = vpop.f32.mrf.mxu0
      %v4584 = vadd.f32 %v4372, %v4583
      %4585 = vmatmul.f32.gmra.mxu0 %v4495
      %v4586 = vpop.f32.mrf.mxu0
      %v4587 = vadd.f32 %v4373, %v4586
      %4588 = vmatmul.f32.gmra.mxu0 %v4497
      %v4589 = vpop.f32.mrf.mxu0
      %v4590 = vadd.f32 %v4374, %v4589
      %4591 = vmatmul.f32.gmra.mxu0 %v4499
      %v4592 = vpop.f32.mrf.mxu0
      %v4593 = vadd.f32 %v4375, %v4592
      %4594 = vmatmul.f32.gmra.mxu0 %v4501
      %v4595 = vpop.f32.mrf.mxu0
      %v4596 = vadd.f32 %v4376, %v4595
      %4597 = vmatmul.f32.gmra.mxu0 %v4503
      %v4598 = vpop.f32.mrf.mxu0
      %v4599 = vadd.f32 %v4377, %v4598
      %4600 = vmatmul.f32.gmra.mxu0 %v4505
      %v4601 = vpop.f32.mrf.mxu0
      %v4602 = vadd.f32 %v4378, %v4601
      %4603 = vdwg.mxu0
      %4604 = vmax.xlane.f32.xlu0 %v4557
      %v4605 = vpop.xlane.xlu0 %4604
      %4606 = vmax.xlane.f32.xlu0 %v4560
      %v4607 = vpop.xlane.xlu0 %4606
      %4608 = vmax.xlane.f32.xlu0 %v4563
      %v4609 = vpop.xlane.xlu0 %4608
      %4610 = vmax.xlane.f32.xlu0 %v4566
      %v4611 = vpop.xlane.xlu0 %4610
      %4612 = vmax.xlane.f32.xlu0 %v4569
      %v4613 = vpop.xlane.xlu0 %4612
      %4614 = vmax.xlane.f32.xlu0 %v4572
      %v4615 = vpop.xlane.xlu0 %4614
      %4616 = vmax.xlane.f32.xlu0 %v4575
      %v4617 = vpop.xlane.xlu0 %4616
      %4618 = vmax.xlane.f32.xlu0 %v4578
      %v4619 = vpop.xlane.xlu0 %4618
      %4620 = vmax.xlane.f32.xlu0 %v4581
      %v4621 = vpop.xlane.xlu0 %4620
      %4622 = vmax.xlane.f32.xlu0 %v4584
      %v4623 = vpop.xlane.xlu0 %4622
      %4624 = vmax.xlane.f32.xlu0 %v4587
      %v4625 = vpop.xlane.xlu0 %4624
      %4626 = vmax.xlane.f32.xlu0 %v4590
      %v4627 = vpop.xlane.xlu0 %4626
      %4628 = vmax.xlane.f32.xlu0 %v4593
      %v4629 = vpop.xlane.xlu0 %4628
      %4630 = vmax.xlane.f32.xlu0 %v4596
      %v4631 = vpop.xlane.xlu0 %4630
      %4632 = vmax.xlane.f32.xlu0 %v4599
      %v4633 = vpop.xlane.xlu0 %4632
      %4634 = vmax.xlane.f32.xlu0 %v4602
      %v4635 = vpop.xlane.xlu0 %4634
      %v4636 = vsub.f32 %v4557, %v4605
      %v4637 = vsub.f32 %v4560, %v4607
      %v4638 = vsub.f32 %v4563, %v4609
      %v4639 = vsub.f32 %v4566, %v4611
      %v4640 = vsub.f32 %v4569, %v4613
      %v4641 = vsub.f32 %v4572, %v4615
      %v4642 = vsub.f32 %v4575, %v4617
      %v4643 = vsub.f32 %v4578, %v4619
      %v4644 = vsub.f32 %v4581, %v4621
      %v4645 = vsub.f32 %v4584, %v4623
      %v4646 = vsub.f32 %v4587, %v4625
      %v4647 = vsub.f32 %v4590, %v4627
      %v4648 = vsub.f32 %v4593, %v4629
      %v4649 = vsub.f32 %v4596, %v4631
      %v4650 = vsub.f32 %v4599, %v4633
      %v4651 = vsub.f32 %v4602, %v4635
      %v4652 = vmul.f32 %v4636, 1.442695
      %v4653 = vpow.pop %v4652
      %v4654 = vmul.f32 %v4637, 1.442695
      %v4655 = vpow.pop %v4654
      %v4656 = vmul.f32 %v4638, 1.442695
      %v4657 = vpow.pop %v4656
      %v4658 = vmul.f32 %v4639, 1.442695
      %v4659 = vpow.pop %v4658
      %v4660 = vmul.f32 %v4640, 1.442695
      %v4661 = vpow.pop %v4660
      %v4662 = vmul.f32 %v4641, 1.442695
      %v4663 = vpow.pop %v4662
      %v4664 = vmul.f32 %v4642, 1.442695
      %v4665 = vpow.pop %v4664
      %v4666 = vmul.f32 %v4643, 1.442695
      %v4667 = vpow.pop %v4666
      %v4668 = vmul.f32 %v4644, 1.442695
      %v4669 = vpow.pop %v4668
      %v4670 = vmul.f32 %v4645, 1.442695
      %v4671 = vpow.pop %v4670
      %v4672 = vmul.f32 %v4646, 1.442695
      %v4673 = vpow.pop %v4672
      %v4674 = vmul.f32 %v4647, 1.442695
      %v4675 = vpow.pop %v4674
      %v4676 = vmul.f32 %v4648, 1.442695
      %v4677 = vpow.pop %v4676
      %v4678 = vmul.f32 %v4649, 1.442695
      %v4679 = vpow.pop %v4678
      %v4680 = vmul.f32 %v4650, 1.442695
      %v4681 = vpow.pop %v4680
      %v4682 = vmul.f32 %v4651, 1.442695
      %v4683 = vpow.pop %v4682
      %4684 = vadd.xlane.f32.xlu0 %v4653
      %v4685 = vpop.xlane.xlu0 %4684
      %4686 = vadd.xlane.f32.xlu0 %v4655
      %v4687 = vpop.xlane.xlu0 %4686
      %4688 = vadd.xlane.f32.xlu0 %v4657
      %v4689 = vpop.xlane.xlu0 %4688
      %4690 = vadd.xlane.f32.xlu0 %v4659
      %v4691 = vpop.xlane.xlu0 %4690
      %4692 = vadd.xlane.f32.xlu0 %v4661
      %v4693 = vpop.xlane.xlu0 %4692
      %4694 = vadd.xlane.f32.xlu0 %v4663
      %v4695 = vpop.xlane.xlu0 %4694
      %4696 = vadd.xlane.f32.xlu0 %v4665
      %v4697 = vpop.xlane.xlu0 %4696
      %4698 = vadd.xlane.f32.xlu0 %v4667
      %v4699 = vpop.xlane.xlu0 %4698
      %4700 = vadd.xlane.f32.xlu0 %v4669
      %v4701 = vpop.xlane.xlu0 %4700
      %4702 = vadd.xlane.f32.xlu0 %v4671
      %v4703 = vpop.xlane.xlu0 %4702
      %4704 = vadd.xlane.f32.xlu0 %v4673
      %v4705 = vpop.xlane.xlu0 %4704
      %4706 = vadd.xlane.f32.xlu0 %v4675
      %v4707 = vpop.xlane.xlu0 %4706
      %4708 = vadd.xlane.f32.xlu0 %v4677
      %v4709 = vpop.xlane.xlu0 %4708
      %4710 = vadd.xlane.f32.xlu0 %v4679
      %v4711 = vpop.xlane.xlu0 %4710
      %4712 = vadd.xlane.f32.xlu0 %v4681
      %v4713 = vpop.xlane.xlu0 %4712
      %4714 = vadd.xlane.f32.xlu0 %v4683
      %v4715 = vpop.xlane.xlu0 %4714
      %4732 = vrot.lane.b32.xlu0 %v4347, 96
      %v4733 = vpop.permute.xlu0 %4732
      %4734 = vrot.lane.b32.xlu0 %v4348, 96
      %v4735 = vpop.permute.xlu0 %4734
      %4736 = vrot.lane.b32.xlu0 %v4349, 96
      %v4737 = vpop.permute.xlu0 %4736
      %4738 = vrot.lane.b32.xlu0 %v4350, 96
      %v4739 = vpop.permute.xlu0 %4738
      %4740 = vrot.lane.b32.xlu0 %v4351, 96
      %v4741 = vpop.permute.xlu0 %4740
      %4742 = vrot.lane.b32.xlu0 %v4352, 96
      %v4743 = vpop.permute.xlu0 %4742
      %4744 = vrot.lane.b32.xlu0 %v4353, 96
      %v4745 = vpop.permute.xlu0 %4744
      %4746 = vrot.lane.b32.xlu0 %v4354, 96
      %v4747 = vpop.permute.xlu0 %4746
      %4748 = vrot.lane.b32.xlu0 %v4355, 96
      %v4749 = vpop.permute.xlu0 %4748
      %4750 = vrot.lane.b32.xlu0 %v4356, 96
      %v4751 = vpop.permute.xlu0 %4750
      %4752 = vrot.lane.b32.xlu0 %v4357, 96
      %v4753 = vpop.permute.xlu0 %4752
      %4754 = vrot.lane.b32.xlu0 %v4358, 96
      %v4755 = vpop.permute.xlu0 %4754
      %4756 = vrot.lane.b32.xlu0 %v4359, 96
      %v4757 = vpop.permute.xlu0 %4756
      %4758 = vrot.lane.b32.xlu0 %v4360, 96
      %v4759 = vpop.permute.xlu0 %4758
      %4760 = vrot.lane.b32.xlu0 %v4361, 96
      %v4761 = vpop.permute.xlu0 %4760
      %4762 = vrot.lane.b32.xlu0 %v4362, 96
      %v4763 = vpop.permute.xlu0 %4762
      %4780 = vmatpush.msra.mxu0 %v4763
      %4781 = vmatpush.msra.mxu0 %v4761
      %4782 = vmatpush.msra.mxu0 %v4759
      %4783 = vmatpush.msra.mxu0 %v4757
      %4784 = vmatpush.msra.mxu0 %v4755
      %4785 = vmatpush.msra.mxu0 %v4753
      %4786 = vmatpush.msra.mxu0 %v4751
      %4787 = vmatpush.msra.mxu0 %v4749
      %4788 = vmatpush.msra.mxu0 %v4747
      %4789 = vmatpush.msra.mxu0 %v4745
      %4790 = vmatpush.msra.mxu0 %v4743
      %4791 = vmatpush.msra.mxu0 %v4741
      %4792 = vmatpush.msra.mxu0 %v4739
      %4793 = vmatpush.msra.mxu0 %v4737
      %4794 = vmatpush.msra.mxu0 %v4735
      %4795 = vmatpush.msra.mxu0 %v4733
      %4796 = vmatmul.f32.gmra.mxu0 %v4653
      %v4797 = vpop.f32.mrf.mxu0
      %v4798 = vadd.f32 0.0, %v4797
      %4799 = vmatmul.f32.gmra.mxu0 %v4655
      %v4800 = vpop.f32.mrf.mxu0
      %v4801 = vadd.f32 0.0, %v4800
      %4802 = vmatmul.f32.gmra.mxu0 %v4657
      %v4803 = vpop.f32.mrf.mxu0
      %v4804 = vadd.f32 0.0, %v4803
      %4805 = vmatmul.f32.gmra.mxu0 %v4659
      %v4806 = vpop.f32.mrf.mxu0
      %v4807 = vadd.f32 0.0, %v4806
      %4808 = vmatmul.f32.gmra.mxu0 %v4661
      %v4809 = vpop.f32.mrf.mxu0
      %v4810 = vadd.f32 0.0, %v4809
      %4811 = vmatmul.f32.gmra.mxu0 %v4663
      %v4812 = vpop.f32.mrf.mxu0
      %v4813 = vadd.f32 0.0, %v4812
      %4814 = vmatmul.f32.gmra.mxu0 %v4665
      %v4815 = vpop.f32.mrf.mxu0
      %v4816 = vadd.f32 0.0, %v4815
      %4817 = vmatmul.f32.gmra.mxu0 %v4667
      %v4818 = vpop.f32.mrf.mxu0
      %v4819 = vadd.f32 0.0, %v4818
      %4820 = vmatmul.f32.gmra.mxu0 %v4669
      %v4821 = vpop.f32.mrf.mxu0
      %v4822 = vadd.f32 0.0, %v4821
      %4823 = vmatmul.f32.gmra.mxu0 %v4671
      %v4824 = vpop.f32.mrf.mxu0
      %v4825 = vadd.f32 0.0, %v4824
      %4826 = vmatmul.f32.gmra.mxu0 %v4673
      %v4827 = vpop.f32.mrf.mxu0
      %v4828 = vadd.f32 0.0, %v4827
      %4829 = vmatmul.f32.gmra.mxu0 %v4675
      %v4830 = vpop.f32.mrf.mxu0
      %v4831 = vadd.f32 0.0, %v4830
      %4832 = vmatmul.f32.gmra.mxu0 %v4677
      %v4833 = vpop.f32.mrf.mxu0
      %v4834 = vadd.f32 0.0, %v4833
      %4835 = vmatmul.f32.gmra.mxu0 %v4679
      %v4836 = vpop.f32.mrf.mxu0
      %v4837 = vadd.f32 0.0, %v4836
      %4838 = vmatmul.f32.gmra.mxu0 %v4681
      %v4839 = vpop.f32.mrf.mxu0
      %v4840 = vadd.f32 0.0, %v4839
      %4841 = vmatmul.f32.gmra.mxu0 %v4683
      %v4842 = vpop.f32.mrf.mxu0
      %v4843 = vadd.f32 0.0, %v4842
      %4844 = vdwg.mxu0
      %v4845 = vrcp.pop %v4685
      %v4846 = vmul.f32 %v4685, %v4845
      %v4847 = vsub.f32 1.0, %v4846
      %v4848 = vmul.f32 %v4845, %v4847
      %v4849 = vadd.f32 %v4845, %v4848
      %vm4850 = vweird.f32 %v4685
      %vm4851 = vweird.f32 %v4845
      %vm4852 = vmor %vm4850, %vm4851
      %v4853 = vsel %vm4852, %v4845, %v4849
      %v4854 = vand.u32 2147483647, %v4685
      %vm4855 = vcmp.eq.f32.partialorder %v4854, 8.507059e+37
      %v4856 = vand.u32 %v4685, 2147483648
      %v4857 = vor.u32 1.1754944e-38, %v4856
      %v4858 = vsel %vm4855, %v4857, %v4853
      %v4859 = vmul.f32 1.0, %v4858
      %v4860 = vrcp.pop %v4687
      %v4861 = vmul.f32 %v4687, %v4860
      %v4862 = vsub.f32 1.0, %v4861
      %v4863 = vmul.f32 %v4860, %v4862
      %v4864 = vadd.f32 %v4860, %v4863
      %vm4865 = vweird.f32 %v4687
      %vm4866 = vweird.f32 %v4860
      %vm4867 = vmor %vm4865, %vm4866
      %v4868 = vsel %vm4867, %v4860, %v4864
      %v4869 = vand.u32 2147483647, %v4687
      %vm4870 = vcmp.eq.f32.partialorder %v4869, 8.507059e+37
      %v4871 = vand.u32 %v4687, 2147483648
      %v4872 = vor.u32 1.1754944e-38, %v4871
      %v4873 = vsel %vm4870, %v4872, %v4868
      %v4874 = vmul.f32 1.0, %v4873
      %v4875 = vrcp.pop %v4689
      %v4876 = vmul.f32 %v4689, %v4875
      %v4877 = vsub.f32 1.0, %v4876
      %v4878 = vmul.f32 %v4875, %v4877
      %v4879 = vadd.f32 %v4875, %v4878
      %vm4880 = vweird.f32 %v4689
      %vm4881 = vweird.f32 %v4875
      %vm4882 = vmor %vm4880, %vm4881
      %v4883 = vsel %vm4882, %v4875, %v4879
      %v4884 = vand.u32 2147483647, %v4689
      %vm4885 = vcmp.eq.f32.partialorder %v4884, 8.507059e+37
      %v4886 = vand.u32 %v4689, 2147483648
      %v4887 = vor.u32 1.1754944e-38, %v4886
      %v4888 = vsel %vm4885, %v4887, %v4883
      %v4889 = vmul.f32 1.0, %v4888
      %v4890 = vrcp.pop %v4691
      %v4891 = vmul.f32 %v4691, %v4890
      %v4892 = vsub.f32 1.0, %v4891
      %v4893 = vmul.f32 %v4890, %v4892
      %v4894 = vadd.f32 %v4890, %v4893
      %vm4895 = vweird.f32 %v4691
      %vm4896 = vweird.f32 %v4890
      %vm4897 = vmor %vm4895, %vm4896
      %v4898 = vsel %vm4897, %v4890, %v4894
      %v4899 = vand.u32 2147483647, %v4691
      %vm4900 = vcmp.eq.f32.partialorder %v4899, 8.507059e+37
      %v4901 = vand.u32 %v4691, 2147483648
      %v4902 = vor.u32 1.1754944e-38, %v4901
      %v4903 = vsel %vm4900, %v4902, %v4898
      %v4904 = vmul.f32 1.0, %v4903
      %v4905 = vrcp.pop %v4693
      %v4906 = vmul.f32 %v4693, %v4905
      %v4907 = vsub.f32 1.0, %v4906
      %v4908 = vmul.f32 %v4905, %v4907
      %v4909 = vadd.f32 %v4905, %v4908
      %vm4910 = vweird.f32 %v4693
      %vm4911 = vweird.f32 %v4905
      %vm4912 = vmor %vm4910, %vm4911
      %v4913 = vsel %vm4912, %v4905, %v4909
      %v4914 = vand.u32 2147483647, %v4693
      %vm4915 = vcmp.eq.f32.partialorder %v4914, 8.507059e+37
      %v4916 = vand.u32 %v4693, 2147483648
      %v4917 = vor.u32 1.1754944e-38, %v4916
      %v4918 = vsel %vm4915, %v4917, %v4913
      %v4919 = vmul.f32 1.0, %v4918
      %v4920 = vrcp.pop %v4695
      %v4921 = vmul.f32 %v4695, %v4920
      %v4922 = vsub.f32 1.0, %v4921
      %v4923 = vmul.f32 %v4920, %v4922
      %v4924 = vadd.f32 %v4920, %v4923
      %vm4925 = vweird.f32 %v4695
      %vm4926 = vweird.f32 %v4920
      %vm4927 = vmor %vm4925, %vm4926
      %v4928 = vsel %vm4927, %v4920, %v4924
      %v4929 = vand.u32 2147483647, %v4695
      %vm4930 = vcmp.eq.f32.partialorder %v4929, 8.507059e+37
      %v4931 = vand.u32 %v4695, 2147483648
      %v4932 = vor.u32 1.1754944e-38, %v4931
      %v4933 = vsel %vm4930, %v4932, %v4928
      %v4934 = vmul.f32 1.0, %v4933
      %v4935 = vrcp.pop %v4697
      %v4936 = vmul.f32 %v4697, %v4935
      %v4937 = vsub.f32 1.0, %v4936
      %v4938 = vmul.f32 %v4935, %v4937
      %v4939 = vadd.f32 %v4935, %v4938
      %vm4940 = vweird.f32 %v4697
      %vm4941 = vweird.f32 %v4935
      %vm4942 = vmor %vm4940, %vm4941
      %v4943 = vsel %vm4942, %v4935, %v4939
      %v4944 = vand.u32 2147483647, %v4697
      %vm4945 = vcmp.eq.f32.partialorder %v4944, 8.507059e+37
      %v4946 = vand.u32 %v4697, 2147483648
      %v4947 = vor.u32 1.1754944e-38, %v4946
      %v4948 = vsel %vm4945, %v4947, %v4943
      %v4949 = vmul.f32 1.0, %v4948
      %v4950 = vrcp.pop %v4699
      %v4951 = vmul.f32 %v4699, %v4950
      %v4952 = vsub.f32 1.0, %v4951
      %v4953 = vmul.f32 %v4950, %v4952
      %v4954 = vadd.f32 %v4950, %v4953
      %vm4955 = vweird.f32 %v4699
      %vm4956 = vweird.f32 %v4950
      %vm4957 = vmor %vm4955, %vm4956
      %v4958 = vsel %vm4957, %v4950, %v4954
      %v4959 = vand.u32 2147483647, %v4699
      %vm4960 = vcmp.eq.f32.partialorder %v4959, 8.507059e+37
      %v4961 = vand.u32 %v4699, 2147483648
      %v4962 = vor.u32 1.1754944e-38, %v4961
      %v4963 = vsel %vm4960, %v4962, %v4958
      %v4964 = vmul.f32 1.0, %v4963
      %v4965 = vrcp.pop %v4701
      %v4966 = vmul.f32 %v4701, %v4965
      %v4967 = vsub.f32 1.0, %v4966
      %v4968 = vmul.f32 %v4965, %v4967
      %v4969 = vadd.f32 %v4965, %v4968
      %vm4970 = vweird.f32 %v4701
      %vm4971 = vweird.f32 %v4965
      %vm4972 = vmor %vm4970, %vm4971
      %v4973 = vsel %vm4972, %v4965, %v4969
      %v4974 = vand.u32 2147483647, %v4701
      %vm4975 = vcmp.eq.f32.partialorder %v4974, 8.507059e+37
      %v4976 = vand.u32 %v4701, 2147483648
      %v4977 = vor.u32 1.1754944e-38, %v4976
      %v4978 = vsel %vm4975, %v4977, %v4973
      %v4979 = vmul.f32 1.0, %v4978
      %v4980 = vrcp.pop %v4703
      %v4981 = vmul.f32 %v4703, %v4980
      %v4982 = vsub.f32 1.0, %v4981
      %v4983 = vmul.f32 %v4980, %v4982
      %v4984 = vadd.f32 %v4980, %v4983
      %vm4985 = vweird.f32 %v4703
      %vm4986 = vweird.f32 %v4980
      %vm4987 = vmor %vm4985, %vm4986
      %v4988 = vsel %vm4987, %v4980, %v4984
      %v4989 = vand.u32 2147483647, %v4703
      %vm4990 = vcmp.eq.f32.partialorder %v4989, 8.507059e+37
      %v4991 = vand.u32 %v4703, 2147483648
      %v4992 = vor.u32 1.1754944e-38, %v4991
      %v4993 = vsel %vm4990, %v4992, %v4988
      %v4994 = vmul.f32 1.0, %v4993
      %v4995 = vrcp.pop %v4705
      %v4996 = vmul.f32 %v4705, %v4995
      %v4997 = vsub.f32 1.0, %v4996
      %v4998 = vmul.f32 %v4995, %v4997
      %v4999 = vadd.f32 %v4995, %v4998
      %vm5000 = vweird.f32 %v4705
      %vm5001 = vweird.f32 %v4995
      %vm5002 = vmor %vm5000, %vm5001
      %v5003 = vsel %vm5002, %v4995, %v4999
      %v5004 = vand.u32 2147483647, %v4705
      %vm5005 = vcmp.eq.f32.partialorder %v5004, 8.507059e+37
      %v5006 = vand.u32 %v4705, 2147483648
      %v5007 = vor.u32 1.1754944e-38, %v5006
      %v5008 = vsel %vm5005, %v5007, %v5003
      %v5009 = vmul.f32 1.0, %v5008
      %v5010 = vrcp.pop %v4707
      %v5011 = vmul.f32 %v4707, %v5010
      %v5012 = vsub.f32 1.0, %v5011
      %v5013 = vmul.f32 %v5010, %v5012
      %v5014 = vadd.f32 %v5010, %v5013
      %vm5015 = vweird.f32 %v4707
      %vm5016 = vweird.f32 %v5010
      %vm5017 = vmor %vm5015, %vm5016
      %v5018 = vsel %vm5017, %v5010, %v5014
      %v5019 = vand.u32 2147483647, %v4707
      %vm5020 = vcmp.eq.f32.partialorder %v5019, 8.507059e+37
      %v5021 = vand.u32 %v4707, 2147483648
      %v5022 = vor.u32 1.1754944e-38, %v5021
      %v5023 = vsel %vm5020, %v5022, %v5018
      %v5024 = vmul.f32 1.0, %v5023
      %v5025 = vrcp.pop %v4709
      %v5026 = vmul.f32 %v4709, %v5025
      %v5027 = vsub.f32 1.0, %v5026
      %v5028 = vmul.f32 %v5025, %v5027
      %v5029 = vadd.f32 %v5025, %v5028
      %vm5030 = vweird.f32 %v4709
      %vm5031 = vweird.f32 %v5025
      %vm5032 = vmor %vm5030, %vm5031
      %v5033 = vsel %vm5032, %v5025, %v5029
      %v5034 = vand.u32 2147483647, %v4709
      %vm5035 = vcmp.eq.f32.partialorder %v5034, 8.507059e+37
      %v5036 = vand.u32 %v4709, 2147483648
      %v5037 = vor.u32 1.1754944e-38, %v5036
      %v5038 = vsel %vm5035, %v5037, %v5033
      %v5039 = vmul.f32 1.0, %v5038
      %v5040 = vrcp.pop %v4711
      %v5041 = vmul.f32 %v4711, %v5040
      %v5042 = vsub.f32 1.0, %v5041
      %v5043 = vmul.f32 %v5040, %v5042
      %v5044 = vadd.f32 %v5040, %v5043
      %vm5045 = vweird.f32 %v4711
      %vm5046 = vweird.f32 %v5040
      %vm5047 = vmor %vm5045, %vm5046
      %v5048 = vsel %vm5047, %v5040, %v5044
      %v5049 = vand.u32 2147483647, %v4711
      %vm5050 = vcmp.eq.f32.partialorder %v5049, 8.507059e+37
      %v5051 = vand.u32 %v4711, 2147483648
      %v5052 = vor.u32 1.1754944e-38, %v5051
      %v5053 = vsel %vm5050, %v5052, %v5048
      %v5054 = vmul.f32 1.0, %v5053
      %v5055 = vrcp.pop %v4713
      %v5056 = vmul.f32 %v4713, %v5055
      %v5057 = vsub.f32 1.0, %v5056
      %v5058 = vmul.f32 %v5055, %v5057
      %v5059 = vadd.f32 %v5055, %v5058
      %vm5060 = vweird.f32 %v4713
      %vm5061 = vweird.f32 %v5055
      %vm5062 = vmor %vm5060, %vm5061
      %v5063 = vsel %vm5062, %v5055, %v5059
      %v5064 = vand.u32 2147483647, %v4713
      %vm5065 = vcmp.eq.f32.partialorder %v5064, 8.507059e+37
      %v5066 = vand.u32 %v4713, 2147483648
      %v5067 = vor.u32 1.1754944e-38, %v5066
      %v5068 = vsel %vm5065, %v5067, %v5063
      %v5069 = vmul.f32 1.0, %v5068
      %v5070 = vrcp.pop %v4715
      %v5071 = vmul.f32 %v4715, %v5070
      %v5072 = vsub.f32 1.0, %v5071
      %v5073 = vmul.f32 %v5070, %v5072
      %v5074 = vadd.f32 %v5070, %v5073
      %vm5075 = vweird.f32 %v4715
      %vm5076 = vweird.f32 %v5070
      %vm5077 = vmor %vm5075, %vm5076
      %v5078 = vsel %vm5077, %v5070, %v5074
      %v5079 = vand.u32 2147483647, %v4715
      %vm5080 = vcmp.eq.f32.partialorder %v5079, 8.507059e+37
      %v5081 = vand.u32 %v4715, 2147483648
      %v5082 = vor.u32 1.1754944e-38, %v5081
      %v5083 = vsel %vm5080, %v5082, %v5078
      %v5084 = vmul.f32 1.0, %v5083
      %v5085 = vmul.f32 %v4798, %v4859
      %v5086 = vmul.f32 %v4801, %v4874
      %v5087 = vmul.f32 %v4804, %v4889
      %v5088 = vmul.f32 %v4807, %v4904
      %v5089 = vmul.f32 %v4810, %v4919
      %v5090 = vmul.f32 %v4813, %v4934
      %v5091 = vmul.f32 %v4816, %v4949
      %v5092 = vmul.f32 %v4819, %v4964
      %v5093 = vmul.f32 %v4822, %v4979
      %v5094 = vmul.f32 %v4825, %v4994
      %v5095 = vmul.f32 %v4828, %v5009
      %v5096 = vmul.f32 %v4831, %v5024
      %v5097 = vmul.f32 %v4834, %v5039
      %v5098 = vmul.f32 %v4837, %v5054
      %v5099 = vmul.f32 %v4840, %v5069
      %v5100 = vmul.f32 %v4843, %v5084
      %v5101 = vld [vmem:[#allocation6] sm:$0xff]
      %v5102 = vld [vmem:[#allocation6 + $0x8] sm:$0xff]
      %v5103 = vld [vmem:[#allocation6 + $0x10] sm:$0xff]
      %v5104 = vld [vmem:[#allocation6 + $0x18] sm:$0xff]
      %v5105 = vld [vmem:[#allocation6 + $0x20] sm:$0xff]
      %v5106 = vld [vmem:[#allocation6 + $0x28] sm:$0xff]
      %v5107 = vld [vmem:[#allocation6 + $0x30] sm:$0xff]
      %v5108 = vld [vmem:[#allocation6 + $0x38] sm:$0xff]
      %v5109 = vld [vmem:[#allocation6 + $0x40] sm:$0xff]
      %v5110 = vld [vmem:[#allocation6 + $0x48] sm:$0xff]
      %v5111 = vld [vmem:[#allocation6 + $0x50] sm:$0xff]
      %v5112 = vld [vmem:[#allocation6 + $0x58] sm:$0xff]
      %v5113 = vld [vmem:[#allocation6 + $0x60] sm:$0xff]
      %v5114 = vld [vmem:[#allocation6 + $0x68] sm:$0xff]
      %v5115 = vld [vmem:[#allocation6 + $0x70] sm:$0xff]
      %v5116 = vld [vmem:[#allocation6 + $0x78] sm:$0xff]
      %v5117 = vld [vmem:[%s3 + $0x20] sm:$0xff]
      %v5119 = vsel %vm714, %v5085, 0
      %v5122 = vsel %vm714, %v5086, 0
      %v5125 = vsel %vm714, %v5087, 0
      %v5128 = vsel %vm714, %v5088, 0
      %v5131 = vsel %vm714, %v5089, 0
      %v5134 = vsel %vm714, %v5090, 0
      %v5137 = vsel %vm714, %v5091, 0
      %v5140 = vsel %vm714, %v5092, 0
      %v5143 = vsel %vm714, %v5093, 0
      %v5146 = vsel %vm714, %v5094, 0
      %v5149 = vsel %vm714, %v5095, 0
      %v5152 = vsel %vm714, %v5096, 0
      %v5155 = vsel %vm714, %v5097, 0
      %v5158 = vsel %vm714, %v5098, 0
      %v5161 = vsel %vm714, %v5099, 0
      %v5164 = vsel %vm714, %v5100, 0
      %5166 = vmatpush.msra.mxu0 0.0
      %5167 = vmatpush.msra.mxu0 0.0
      %5168 = vmatpush.msra.mxu0 0.0
      %5169 = vmatpush.msra.mxu0 0.0
      %5170 = vmatpush.msra.mxu0 0.0
      %5171 = vmatpush.msra.mxu0 0.0
      %5172 = vmatpush.msra.mxu0 0.0
      %5173 = vmatpush.msra.mxu0 0.0
      %5174 = vmatpush.msra.mxu0 0.0
      %5175 = vmatpush.msra.mxu0 0.0
      %5176 = vmatpush.msra.mxu0 0.0
      %5177 = vmatpush.msra.mxu0 0.0
      %5178 = vmatpush.msra.mxu0 0.0
      %5179 = vmatpush.msra.mxu0 0.0
      %5180 = vmatpush.msra.mxu0 0.0
      %5181 = vmatpush.msra.mxu0 %v5117
      %5182 = vmatmul.f32.gmra.mxu0 %v5119
      %v5183 = vpop.f32.mrf.mxu0
      %v5184 = vadd.f32 0.0, %v5183
      %5185 = vmatmul.f32.gmra.mxu0 %v5122
      %v5186 = vpop.f32.mrf.mxu0
      %v5187 = vadd.f32 0.0, %v5186
      %5188 = vmatmul.f32.gmra.mxu0 %v5125
      %v5189 = vpop.f32.mrf.mxu0
      %v5190 = vadd.f32 0.0, %v5189
      %5191 = vmatmul.f32.gmra.mxu0 %v5128
      %v5192 = vpop.f32.mrf.mxu0
      %v5193 = vadd.f32 0.0, %v5192
      %5194 = vmatmul.f32.gmra.mxu0 %v5131
      %v5195 = vpop.f32.mrf.mxu0
      %v5196 = vadd.f32 0.0, %v5195
      %5197 = vmatmul.f32.gmra.mxu0 %v5134
      %v5198 = vpop.f32.mrf.mxu0
      %v5199 = vadd.f32 0.0, %v5198
      %5200 = vmatmul.f32.gmra.mxu0 %v5137
      %v5201 = vpop.f32.mrf.mxu0
      %v5202 = vadd.f32 0.0, %v5201
      %5203 = vmatmul.f32.gmra.mxu0 %v5140
      %v5204 = vpop.f32.mrf.mxu0
      %v5205 = vadd.f32 0.0, %v5204
      %5206 = vmatmul.f32.gmra.mxu0 %v5143
      %v5207 = vpop.f32.mrf.mxu0
      %v5208 = vadd.f32 0.0, %v5207
      %5209 = vmatmul.f32.gmra.mxu0 %v5146
      %v5210 = vpop.f32.mrf.mxu0
      %v5211 = vadd.f32 0.0, %v5210
      %5212 = vmatmul.f32.gmra.mxu0 %v5149
      %v5213 = vpop.f32.mrf.mxu0
      %v5214 = vadd.f32 0.0, %v5213
      %5215 = vmatmul.f32.gmra.mxu0 %v5152
      %v5216 = vpop.f32.mrf.mxu0
      %v5217 = vadd.f32 0.0, %v5216
      %5218 = vmatmul.f32.gmra.mxu0 %v5155
      %v5219 = vpop.f32.mrf.mxu0
      %v5220 = vadd.f32 0.0, %v5219
      %5221 = vmatmul.f32.gmra.mxu0 %v5158
      %v5222 = vpop.f32.mrf.mxu0
      %v5223 = vadd.f32 0.0, %v5222
      %5224 = vmatmul.f32.gmra.mxu0 %v5161
      %v5225 = vpop.f32.mrf.mxu0
      %v5226 = vadd.f32 0.0, %v5225
      %5227 = vmatmul.f32.gmra.mxu0 %v5164
      %v5228 = vpop.f32.mrf.mxu0
      %v5229 = vadd.f32 0.0, %v5228
      %5230 = vdwg.mxu0
      %v5231 = vadd.f32 %v5101, %v5184
      %v5232 = vadd.f32 %v5102, %v5187
      %v5233 = vadd.f32 %v5103, %v5190
      %v5234 = vadd.f32 %v5104, %v5193
      %v5235 = vadd.f32 %v5105, %v5196
      %v5236 = vadd.f32 %v5106, %v5199
      %v5237 = vadd.f32 %v5107, %v5202
      %v5238 = vadd.f32 %v5108, %v5205
      %v5239 = vadd.f32 %v5109, %v5208
      %v5240 = vadd.f32 %v5110, %v5211
      %v5241 = vadd.f32 %v5111, %v5214
      %v5242 = vadd.f32 %v5112, %v5217
      %v5243 = vadd.f32 %v5113, %v5220
      %v5244 = vadd.f32 %v5114, %v5223
      %v5245 = vadd.f32 %v5115, %v5226
      %v5246 = vadd.f32 %v5116, %v5229
      %5247 = vst.msk [vmem:[#allocation6] sm:$0xff] %vm318, %v5231
      %5248 = vst.msk [vmem:[#allocation6 + $0x8] sm:$0xff] %vm318, %v5232
      %5249 = vst.msk [vmem:[#allocation6 + $0x10] sm:$0xff] %vm318, %v5233
      %5250 = vst.msk [vmem:[#allocation6 + $0x18] sm:$0xff] %vm318, %v5234
      %5251 = vst.msk [vmem:[#allocation6 + $0x20] sm:$0xff] %vm318, %v5235
      %5252 = vst.msk [vmem:[#allocation6 + $0x28] sm:$0xff] %vm318, %v5236
      %5253 = vst.msk [vmem:[#allocation6 + $0x30] sm:$0xff] %vm318, %v5237
      %5254 = vst.msk [vmem:[#allocation6 + $0x38] sm:$0xff] %vm318, %v5238
      %5255 = vst.msk [vmem:[#allocation6 + $0x40] sm:$0xff] %vm318, %v5239
      %5256 = vst.msk [vmem:[#allocation6 + $0x48] sm:$0xff] %vm318, %v5240
      %5257 = vst.msk [vmem:[#allocation6 + $0x50] sm:$0xff] %vm318, %v5241
      %5258 = vst.msk [vmem:[#allocation6 + $0x58] sm:$0xff] %vm318, %v5242
      %5259 = vst.msk [vmem:[#allocation6 + $0x60] sm:$0xff] %vm318, %v5243
      %5260 = vst.msk [vmem:[#allocation6 + $0x68] sm:$0xff] %vm318, %v5244
      %5261 = vst.msk [vmem:[#allocation6 + $0x70] sm:$0xff] %vm318, %v5245
      %5262 = vst.msk [vmem:[#allocation6 + $0x78] sm:$0xff] %vm318, %v5246
      %v5263 = vld [vmem:[#allocation3] sm:$0xff]
      %v5264 = vld [vmem:[#allocation3 + $0x8] sm:$0xff]
      %v5265 = vld [vmem:[#allocation3 + $0x10] sm:$0xff]
      %v5266 = vld [vmem:[#allocation3 + $0x18] sm:$0xff]
      %v5267 = vld [vmem:[#allocation3 + $0x20] sm:$0xff]
      %v5268 = vld [vmem:[#allocation3 + $0x28] sm:$0xff]
      %v5269 = vld [vmem:[#allocation3 + $0x30] sm:$0xff]
      %v5270 = vld [vmem:[#allocation3 + $0x38] sm:$0xff]
      %v5271 = vld [vmem:[#allocation3 + $0x40] sm:$0xff]
      %v5272 = vld [vmem:[#allocation3 + $0x48] sm:$0xff]
      %v5273 = vld [vmem:[#allocation3 + $0x50] sm:$0xff]
      %v5274 = vld [vmem:[#allocation3 + $0x58] sm:$0xff]
      %v5275 = vld [vmem:[#allocation3 + $0x60] sm:$0xff]
      %v5276 = vld [vmem:[#allocation3 + $0x68] sm:$0xff]
      %v5277 = vld [vmem:[#allocation3 + $0x70] sm:$0xff]
      %v5278 = vld [vmem:[#allocation3 + $0x78] sm:$0xff]
      %v5279 = vld [vmem:[#allocation4] sm:$0xff]
      %v5280 = vld [vmem:[#allocation4 + $0x8] sm:$0xff]
      %v5281 = vld [vmem:[#allocation4 + $0x10] sm:$0xff]
      %v5282 = vld [vmem:[#allocation4 + $0x18] sm:$0xff]
      %v5283 = vld [vmem:[#allocation4 + $0x20] sm:$0xff]
      %v5284 = vld [vmem:[#allocation4 + $0x28] sm:$0xff]
      %v5285 = vld [vmem:[#allocation4 + $0x30] sm:$0xff]
      %v5286 = vld [vmem:[#allocation4 + $0x38] sm:$0xff]
      %v5287 = vld [vmem:[#allocation4 + $0x40] sm:$0xff]
      %v5288 = vld [vmem:[#allocation4 + $0x48] sm:$0xff]
      %v5289 = vld [vmem:[#allocation4 + $0x50] sm:$0xff]
      %v5290 = vld [vmem:[#allocation4 + $0x58] sm:$0xff]
      %v5291 = vld [vmem:[#allocation4 + $0x60] sm:$0xff]
      %v5292 = vld [vmem:[#allocation4 + $0x68] sm:$0xff]
      %v5293 = vld [vmem:[#allocation4 + $0x70] sm:$0xff]
      %v5294 = vld [vmem:[#allocation4 + $0x78] sm:$0xff]
      %v5295 = vld [vmem:[#allocation5] sm:$0xff]
      %v5296 = vld [vmem:[#allocation5 + $0x8] sm:$0xff]
      %v5297 = vld [vmem:[#allocation5 + $0x10] sm:$0xff]
      %v5298 = vld [vmem:[#allocation5 + $0x18] sm:$0xff]
      %v5299 = vld [vmem:[#allocation5 + $0x20] sm:$0xff]
      %v5300 = vld [vmem:[#allocation5 + $0x28] sm:$0xff]
      %v5301 = vld [vmem:[#allocation5 + $0x30] sm:$0xff]
      %v5302 = vld [vmem:[#allocation5 + $0x38] sm:$0xff]
      %v5303 = vld [vmem:[#allocation5 + $0x40] sm:$0xff]
      %v5304 = vld [vmem:[#allocation5 + $0x48] sm:$0xff]
      %v5305 = vld [vmem:[#allocation5 + $0x50] sm:$0xff]
      %v5306 = vld [vmem:[#allocation5 + $0x58] sm:$0xff]
      %v5307 = vld [vmem:[#allocation5 + $0x60] sm:$0xff]
      %v5308 = vld [vmem:[#allocation5 + $0x68] sm:$0xff]
      %v5309 = vld [vmem:[#allocation5 + $0x70] sm:$0xff]
      %v5310 = vld [vmem:[#allocation5 + $0x78] sm:$0xff]
      %v5311 = vld [vmem:[#allocation2] sm:$0xff]
      %v5312 = vld [vmem:[#allocation2 + $0x8] sm:$0xff]
      %v5313 = vld [vmem:[#allocation2 + $0x10] sm:$0xff]
      %v5314 = vld [vmem:[#allocation2 + $0x18] sm:$0xff]
      %v5315 = vld [vmem:[#allocation2 + $0x20] sm:$0xff]
      %v5316 = vld [vmem:[#allocation2 + $0x28] sm:$0xff]
      %v5317 = vld [vmem:[#allocation2 + $0x30] sm:$0xff]
      %v5318 = vld [vmem:[#allocation2 + $0x38] sm:$0xff]
      %v5319 = vld [vmem:[#allocation2 + $0x40] sm:$0xff]
      %v5320 = vld [vmem:[#allocation2 + $0x48] sm:$0xff]
      %v5321 = vld [vmem:[#allocation2 + $0x50] sm:$0xff]
      %v5322 = vld [vmem:[#allocation2 + $0x58] sm:$0xff]
      %v5323 = vld [vmem:[#allocation2 + $0x60] sm:$0xff]
      %v5324 = vld [vmem:[#allocation2 + $0x68] sm:$0xff]
      %v5325 = vld [vmem:[#allocation2 + $0x70] sm:$0xff]
      %v5326 = vld [vmem:[#allocation2 + $0x78] sm:$0xff]
      %5343 = vrot.lane.b32.xlu0 %v5263, 88
      %v5344 = vpop.permute.xlu0 %5343
      %5345 = vrot.lane.b32.xlu0 %v5264, 88
      %v5346 = vpop.permute.xlu0 %5345
      %5347 = vrot.lane.b32.xlu0 %v5265, 88
      %v5348 = vpop.permute.xlu0 %5347
      %5349 = vrot.lane.b32.xlu0 %v5266, 88
      %v5350 = vpop.permute.xlu0 %5349
      %5351 = vrot.lane.b32.xlu0 %v5267, 88
      %v5352 = vpop.permute.xlu0 %5351
      %5353 = vrot.lane.b32.xlu0 %v5268, 88
      %v5354 = vpop.permute.xlu0 %5353
      %5355 = vrot.lane.b32.xlu0 %v5269, 88
      %v5356 = vpop.permute.xlu0 %5355
      %5357 = vrot.lane.b32.xlu0 %v5270, 88
      %v5358 = vpop.permute.xlu0 %5357
      %5359 = vrot.lane.b32.xlu0 %v5271, 88
      %v5360 = vpop.permute.xlu0 %5359
      %5361 = vrot.lane.b32.xlu0 %v5272, 88
      %v5362 = vpop.permute.xlu0 %5361
      %5363 = vrot.lane.b32.xlu0 %v5273, 88
      %v5364 = vpop.permute.xlu0 %5363
      %5365 = vrot.lane.b32.xlu0 %v5274, 88
      %v5366 = vpop.permute.xlu0 %5365
      %5367 = vrot.lane.b32.xlu0 %v5275, 88
      %v5368 = vpop.permute.xlu0 %5367
      %5369 = vrot.lane.b32.xlu0 %v5276, 88
      %v5370 = vpop.permute.xlu0 %5369
      %5371 = vrot.lane.b32.xlu0 %v5277, 88
      %v5372 = vpop.permute.xlu0 %5371
      %5373 = vrot.lane.b32.xlu0 %v5278, 88
      %v5374 = vpop.permute.xlu0 %5373
      %5391 = vrot.lane.b32.xlu0 %v5279, 88
      %v5392 = vpop.permute.xlu0 %5391
      %5393 = vrot.lane.b32.xlu0 %v5280, 88
      %v5394 = vpop.permute.xlu0 %5393
      %5395 = vrot.lane.b32.xlu0 %v5281, 88
      %v5396 = vpop.permute.xlu0 %5395
      %5397 = vrot.lane.b32.xlu0 %v5282, 88
      %v5398 = vpop.permute.xlu0 %5397
      %5399 = vrot.lane.b32.xlu0 %v5283, 88
      %v5400 = vpop.permute.xlu0 %5399
      %5401 = vrot.lane.b32.xlu0 %v5284, 88
      %v5402 = vpop.permute.xlu0 %5401
      %5403 = vrot.lane.b32.xlu0 %v5285, 88
      %v5404 = vpop.permute.xlu0 %5403
      %5405 = vrot.lane.b32.xlu0 %v5286, 88
      %v5406 = vpop.permute.xlu0 %5405
      %5407 = vrot.lane.b32.xlu0 %v5287, 88
      %v5408 = vpop.permute.xlu0 %5407
      %5409 = vrot.lane.b32.xlu0 %v5288, 88
      %v5410 = vpop.permute.xlu0 %5409
      %5411 = vrot.lane.b32.xlu0 %v5289, 88
      %v5412 = vpop.permute.xlu0 %5411
      %5413 = vrot.lane.b32.xlu0 %v5290, 88
      %v5414 = vpop.permute.xlu0 %5413
      %5415 = vrot.lane.b32.xlu0 %v5291, 88
      %v5416 = vpop.permute.xlu0 %5415
      %5417 = vrot.lane.b32.xlu0 %v5292, 88
      %v5418 = vpop.permute.xlu0 %5417
      %5419 = vrot.lane.b32.xlu0 %v5293, 88
      %v5420 = vpop.permute.xlu0 %5419
      %5421 = vrot.lane.b32.xlu0 %v5294, 88
      %v5422 = vpop.permute.xlu0 %5421
      %v5423 = vsel %vm714, %v5344, 0
      %v5425 = vsel %vm714, %v5346, 0
      %v5427 = vsel %vm714, %v5348, 0
      %v5429 = vsel %vm714, %v5350, 0
      %v5431 = vsel %vm714, %v5352, 0
      %v5433 = vsel %vm714, %v5354, 0
      %v5435 = vsel %vm714, %v5356, 0
      %v5437 = vsel %vm714, %v5358, 0
      %v5439 = vsel %vm714, %v5360, 0
      %v5441 = vsel %vm714, %v5362, 0
      %v5443 = vsel %vm714, %v5364, 0
      %v5445 = vsel %vm714, %v5366, 0
      %v5447 = vsel %vm714, %v5368, 0
      %v5449 = vsel %vm714, %v5370, 0
      %v5451 = vsel %vm714, %v5372, 0
      %v5453 = vsel %vm714, %v5374, 0
      %v5455 = vsel %vm714, %v5392, 0
      %v5457 = vsel %vm714, %v5394, 0
      %v5459 = vsel %vm714, %v5396, 0
      %v5461 = vsel %vm714, %v5398, 0
      %v5463 = vsel %vm714, %v5400, 0
      %v5465 = vsel %vm714, %v5402, 0
      %v5467 = vsel %vm714, %v5404, 0
      %v5469 = vsel %vm714, %v5406, 0
      %v5471 = vsel %vm714, %v5408, 0
      %v5473 = vsel %vm714, %v5410, 0
      %v5475 = vsel %vm714, %v5412, 0
      %v5477 = vsel %vm714, %v5414, 0
      %v5479 = vsel %vm714, %v5416, 0
      %v5481 = vsel %vm714, %v5418, 0
      %v5483 = vsel %vm714, %v5420, 0
      %v5485 = vsel %vm714, %v5422, 0
      %5487 = vmatpush.xpose.msra.mxu0 %v5485
      %5488 = vmatpush.xpose.msra.mxu0 %v5483
      %5489 = vmatpush.xpose.msra.mxu0 %v5481
      %5490 = vmatpush.xpose.msra.mxu0 %v5479
      %5491 = vmatpush.xpose.msra.mxu0 %v5477
      %5492 = vmatpush.xpose.msra.mxu0 %v5475
      %5493 = vmatpush.xpose.msra.mxu0 %v5473
      %5494 = vmatpush.xpose.msra.mxu0 %v5471
      %5495 = vmatpush.xpose.msra.mxu0 %v5469
      %5496 = vmatpush.xpose.msra.mxu0 %v5467
      %5497 = vmatpush.xpose.msra.mxu0 %v5465
      %5498 = vmatpush.xpose.msra.mxu0 %v5463
      %5499 = vmatpush.xpose.msra.mxu0 %v5461
      %5500 = vmatpush.xpose.msra.mxu0 %v5459
      %5501 = vmatpush.xpose.msra.mxu0 %v5457
      %5502 = vmatpush.xpose.msra.mxu0 %v5455
      %5503 = vmatmul.f32.gmra.mxu0 %v5423
      %v5504 = vpop.f32.mrf.mxu0
      %v5505 = vadd.f32 %v5311, %v5504
      %5506 = vmatmul.f32.gmra.mxu0 %v5425
      %v5507 = vpop.f32.mrf.mxu0
      %v5508 = vadd.f32 %v5312, %v5507
      %5509 = vmatmul.f32.gmra.mxu0 %v5427
      %v5510 = vpop.f32.mrf.mxu0
      %v5511 = vadd.f32 %v5313, %v5510
      %5512 = vmatmul.f32.gmra.mxu0 %v5429
      %v5513 = vpop.f32.mrf.mxu0
      %v5514 = vadd.f32 %v5314, %v5513
      %5515 = vmatmul.f32.gmra.mxu0 %v5431
      %v5516 = vpop.f32.mrf.mxu0
      %v5517 = vadd.f32 %v5315, %v5516
      %5518 = vmatmul.f32.gmra.mxu0 %v5433
      %v5519 = vpop.f32.mrf.mxu0
      %v5520 = vadd.f32 %v5316, %v5519
      %5521 = vmatmul.f32.gmra.mxu0 %v5435
      %v5522 = vpop.f32.mrf.mxu0
      %v5523 = vadd.f32 %v5317, %v5522
      %5524 = vmatmul.f32.gmra.mxu0 %v5437
      %v5525 = vpop.f32.mrf.mxu0
      %v5526 = vadd.f32 %v5318, %v5525
      %5527 = vmatmul.f32.gmra.mxu0 %v5439
      %v5528 = vpop.f32.mrf.mxu0
      %v5529 = vadd.f32 %v5319, %v5528
      %5530 = vmatmul.f32.gmra.mxu0 %v5441
      %v5531 = vpop.f32.mrf.mxu0
      %v5532 = vadd.f32 %v5320, %v5531
      %5533 = vmatmul.f32.gmra.mxu0 %v5443
      %v5534 = vpop.f32.mrf.mxu0
      %v5535 = vadd.f32 %v5321, %v5534
      %5536 = vmatmul.f32.gmra.mxu0 %v5445
      %v5537 = vpop.f32.mrf.mxu0
      %v5538 = vadd.f32 %v5322, %v5537
      %5539 = vmatmul.f32.gmra.mxu0 %v5447
      %v5540 = vpop.f32.mrf.mxu0
      %v5541 = vadd.f32 %v5323, %v5540
      %5542 = vmatmul.f32.gmra.mxu0 %v5449
      %v5543 = vpop.f32.mrf.mxu0
      %v5544 = vadd.f32 %v5324, %v5543
      %5545 = vmatmul.f32.gmra.mxu0 %v5451
      %v5546 = vpop.f32.mrf.mxu0
      %v5547 = vadd.f32 %v5325, %v5546
      %5548 = vmatmul.f32.gmra.mxu0 %v5453
      %v5549 = vpop.f32.mrf.mxu0
      %v5550 = vadd.f32 %v5326, %v5549
      %5551 = vdwg.mxu0
      %5552 = vmax.xlane.f32.xlu0 %v5505
      %v5553 = vpop.xlane.xlu0 %5552
      %5554 = vmax.xlane.f32.xlu0 %v5508
      %v5555 = vpop.xlane.xlu0 %5554
      %5556 = vmax.xlane.f32.xlu0 %v5511
      %v5557 = vpop.xlane.xlu0 %5556
      %5558 = vmax.xlane.f32.xlu0 %v5514
      %v5559 = vpop.xlane.xlu0 %5558
      %5560 = vmax.xlane.f32.xlu0 %v5517
      %v5561 = vpop.xlane.xlu0 %5560
      %5562 = vmax.xlane.f32.xlu0 %v5520
      %v5563 = vpop.xlane.xlu0 %5562
      %5564 = vmax.xlane.f32.xlu0 %v5523
      %v5565 = vpop.xlane.xlu0 %5564
      %5566 = vmax.xlane.f32.xlu0 %v5526
      %v5567 = vpop.xlane.xlu0 %5566
      %5568 = vmax.xlane.f32.xlu0 %v5529
      %v5569 = vpop.xlane.xlu0 %5568
      %5570 = vmax.xlane.f32.xlu0 %v5532
      %v5571 = vpop.xlane.xlu0 %5570
      %5572 = vmax.xlane.f32.xlu0 %v5535
      %v5573 = vpop.xlane.xlu0 %5572
      %5574 = vmax.xlane.f32.xlu0 %v5538
      %v5575 = vpop.xlane.xlu0 %5574
      %5576 = vmax.xlane.f32.xlu0 %v5541
      %v5577 = vpop.xlane.xlu0 %5576
      %5578 = vmax.xlane.f32.xlu0 %v5544
      %v5579 = vpop.xlane.xlu0 %5578
      %5580 = vmax.xlane.f32.xlu0 %v5547
      %v5581 = vpop.xlane.xlu0 %5580
      %5582 = vmax.xlane.f32.xlu0 %v5550
      %v5583 = vpop.xlane.xlu0 %5582
      %v5584 = vsub.f32 %v5505, %v5553
      %v5585 = vsub.f32 %v5508, %v5555
      %v5586 = vsub.f32 %v5511, %v5557
      %v5587 = vsub.f32 %v5514, %v5559
      %v5588 = vsub.f32 %v5517, %v5561
      %v5589 = vsub.f32 %v5520, %v5563
      %v5590 = vsub.f32 %v5523, %v5565
      %v5591 = vsub.f32 %v5526, %v5567
      %v5592 = vsub.f32 %v5529, %v5569
      %v5593 = vsub.f32 %v5532, %v5571
      %v5594 = vsub.f32 %v5535, %v5573
      %v5595 = vsub.f32 %v5538, %v5575
      %v5596 = vsub.f32 %v5541, %v5577
      %v5597 = vsub.f32 %v5544, %v5579
      %v5598 = vsub.f32 %v5547, %v5581
      %v5599 = vsub.f32 %v5550, %v5583
      %v5600 = vmul.f32 %v5584, 1.442695
      %v5601 = vpow.pop %v5600
      %v5602 = vmul.f32 %v5585, 1.442695
      %v5603 = vpow.pop %v5602
      %v5604 = vmul.f32 %v5586, 1.442695
      %v5605 = vpow.pop %v5604
      %v5606 = vmul.f32 %v5587, 1.442695
      %v5607 = vpow.pop %v5606
      %v5608 = vmul.f32 %v5588, 1.442695
      %v5609 = vpow.pop %v5608
      %v5610 = vmul.f32 %v5589, 1.442695
      %v5611 = vpow.pop %v5610
      %v5612 = vmul.f32 %v5590, 1.442695
      %v5613 = vpow.pop %v5612
      %v5614 = vmul.f32 %v5591, 1.442695
      %v5615 = vpow.pop %v5614
      %v5616 = vmul.f32 %v5592, 1.442695
      %v5617 = vpow.pop %v5616
      %v5618 = vmul.f32 %v5593, 1.442695
      %v5619 = vpow.pop %v5618
      %v5620 = vmul.f32 %v5594, 1.442695
      %v5621 = vpow.pop %v5620
      %v5622 = vmul.f32 %v5595, 1.442695
      %v5623 = vpow.pop %v5622
      %v5624 = vmul.f32 %v5596, 1.442695
      %v5625 = vpow.pop %v5624
      %v5626 = vmul.f32 %v5597, 1.442695
      %v5627 = vpow.pop %v5626
      %v5628 = vmul.f32 %v5598, 1.442695
      %v5629 = vpow.pop %v5628
      %v5630 = vmul.f32 %v5599, 1.442695
      %v5631 = vpow.pop %v5630
      %5632 = vadd.xlane.f32.xlu0 %v5601
      %v5633 = vpop.xlane.xlu0 %5632
      %5634 = vadd.xlane.f32.xlu0 %v5603
      %v5635 = vpop.xlane.xlu0 %5634
      %5636 = vadd.xlane.f32.xlu0 %v5605
      %v5637 = vpop.xlane.xlu0 %5636
      %5638 = vadd.xlane.f32.xlu0 %v5607
      %v5639 = vpop.xlane.xlu0 %5638
      %5640 = vadd.xlane.f32.xlu0 %v5609
      %v5641 = vpop.xlane.xlu0 %5640
      %5642 = vadd.xlane.f32.xlu0 %v5611
      %v5643 = vpop.xlane.xlu0 %5642
      %5644 = vadd.xlane.f32.xlu0 %v5613
      %v5645 = vpop.xlane.xlu0 %5644
      %5646 = vadd.xlane.f32.xlu0 %v5615
      %v5647 = vpop.xlane.xlu0 %5646
      %5648 = vadd.xlane.f32.xlu0 %v5617
      %v5649 = vpop.xlane.xlu0 %5648
      %5650 = vadd.xlane.f32.xlu0 %v5619
      %v5651 = vpop.xlane.xlu0 %5650
      %5652 = vadd.xlane.f32.xlu0 %v5621
      %v5653 = vpop.xlane.xlu0 %5652
      %5654 = vadd.xlane.f32.xlu0 %v5623
      %v5655 = vpop.xlane.xlu0 %5654
      %5656 = vadd.xlane.f32.xlu0 %v5625
      %v5657 = vpop.xlane.xlu0 %5656
      %5658 = vadd.xlane.f32.xlu0 %v5627
      %v5659 = vpop.xlane.xlu0 %5658
      %5660 = vadd.xlane.f32.xlu0 %v5629
      %v5661 = vpop.xlane.xlu0 %5660
      %5662 = vadd.xlane.f32.xlu0 %v5631
      %v5663 = vpop.xlane.xlu0 %5662
      %5680 = vrot.lane.b32.xlu0 %v5295, 88
      %v5681 = vpop.permute.xlu0 %5680
      %5682 = vrot.lane.b32.xlu0 %v5296, 88
      %v5683 = vpop.permute.xlu0 %5682
      %5684 = vrot.lane.b32.xlu0 %v5297, 88
      %v5685 = vpop.permute.xlu0 %5684
      %5686 = vrot.lane.b32.xlu0 %v5298, 88
      %v5687 = vpop.permute.xlu0 %5686
      %5688 = vrot.lane.b32.xlu0 %v5299, 88
      %v5689 = vpop.permute.xlu0 %5688
      %5690 = vrot.lane.b32.xlu0 %v5300, 88
      %v5691 = vpop.permute.xlu0 %5690
      %5692 = vrot.lane.b32.xlu0 %v5301, 88
      %v5693 = vpop.permute.xlu0 %5692
      %5694 = vrot.lane.b32.xlu0 %v5302, 88
      %v5695 = vpop.permute.xlu0 %5694
      %5696 = vrot.lane.b32.xlu0 %v5303, 88
      %v5697 = vpop.permute.xlu0 %5696
      %5698 = vrot.lane.b32.xlu0 %v5304, 88
      %v5699 = vpop.permute.xlu0 %5698
      %5700 = vrot.lane.b32.xlu0 %v5305, 88
      %v5701 = vpop.permute.xlu0 %5700
      %5702 = vrot.lane.b32.xlu0 %v5306, 88
      %v5703 = vpop.permute.xlu0 %5702
      %5704 = vrot.lane.b32.xlu0 %v5307, 88
      %v5705 = vpop.permute.xlu0 %5704
      %5706 = vrot.lane.b32.xlu0 %v5308, 88
      %v5707 = vpop.permute.xlu0 %5706
      %5708 = vrot.lane.b32.xlu0 %v5309, 88
      %v5709 = vpop.permute.xlu0 %5708
      %5710 = vrot.lane.b32.xlu0 %v5310, 88
      %v5711 = vpop.permute.xlu0 %5710
      %5728 = vmatpush.msra.mxu0 %v5711
      %5729 = vmatpush.msra.mxu0 %v5709
      %5730 = vmatpush.msra.mxu0 %v5707
      %5731 = vmatpush.msra.mxu0 %v5705
      %5732 = vmatpush.msra.mxu0 %v5703
      %5733 = vmatpush.msra.mxu0 %v5701
      %5734 = vmatpush.msra.mxu0 %v5699
      %5735 = vmatpush.msra.mxu0 %v5697
      %5736 = vmatpush.msra.mxu0 %v5695
      %5737 = vmatpush.msra.mxu0 %v5693
      %5738 = vmatpush.msra.mxu0 %v5691
      %5739 = vmatpush.msra.mxu0 %v5689
      %5740 = vmatpush.msra.mxu0 %v5687
      %5741 = vmatpush.msra.mxu0 %v5685
      %5742 = vmatpush.msra.mxu0 %v5683
      %5743 = vmatpush.msra.mxu0 %v5681
      %5744 = vmatmul.f32.gmra.mxu0 %v5601
      %v5745 = vpop.f32.mrf.mxu0
      %v5746 = vadd.f32 0.0, %v5745
      %5747 = vmatmul.f32.gmra.mxu0 %v5603
      %v5748 = vpop.f32.mrf.mxu0
      %v5749 = vadd.f32 0.0, %v5748
      %5750 = vmatmul.f32.gmra.mxu0 %v5605
      %v5751 = vpop.f32.mrf.mxu0
      %v5752 = vadd.f32 0.0, %v5751
      %5753 = vmatmul.f32.gmra.mxu0 %v5607
      %v5754 = vpop.f32.mrf.mxu0
      %v5755 = vadd.f32 0.0, %v5754
      %5756 = vmatmul.f32.gmra.mxu0 %v5609
      %v5757 = vpop.f32.mrf.mxu0
      %v5758 = vadd.f32 0.0, %v5757
      %5759 = vmatmul.f32.gmra.mxu0 %v5611
      %v5760 = vpop.f32.mrf.mxu0
      %v5761 = vadd.f32 0.0, %v5760
      %5762 = vmatmul.f32.gmra.mxu0 %v5613
      %v5763 = vpop.f32.mrf.mxu0
      %v5764 = vadd.f32 0.0, %v5763
      %5765 = vmatmul.f32.gmra.mxu0 %v5615
      %v5766 = vpop.f32.mrf.mxu0
      %v5767 = vadd.f32 0.0, %v5766
      %5768 = vmatmul.f32.gmra.mxu0 %v5617
      %v5769 = vpop.f32.mrf.mxu0
      %v5770 = vadd.f32 0.0, %v5769
      %5771 = vmatmul.f32.gmra.mxu0 %v5619
      %v5772 = vpop.f32.mrf.mxu0
      %v5773 = vadd.f32 0.0, %v5772
      %5774 = vmatmul.f32.gmra.mxu0 %v5621
      %v5775 = vpop.f32.mrf.mxu0
      %v5776 = vadd.f32 0.0, %v5775
      %5777 = vmatmul.f32.gmra.mxu0 %v5623
      %v5778 = vpop.f32.mrf.mxu0
      %v5779 = vadd.f32 0.0, %v5778
      %5780 = vmatmul.f32.gmra.mxu0 %v5625
      %v5781 = vpop.f32.mrf.mxu0
      %v5782 = vadd.f32 0.0, %v5781
      %5783 = vmatmul.f32.gmra.mxu0 %v5627
      %v5784 = vpop.f32.mrf.mxu0
      %v5785 = vadd.f32 0.0, %v5784
      %5786 = vmatmul.f32.gmra.mxu0 %v5629
      %v5787 = vpop.f32.mrf.mxu0
      %v5788 = vadd.f32 0.0, %v5787
      %5789 = vmatmul.f32.gmra.mxu0 %v5631
      %v5790 = vpop.f32.mrf.mxu0
      %v5791 = vadd.f32 0.0, %v5790
      %5792 = vdwg.mxu0
      %v5793 = vrcp.pop %v5633
      %v5794 = vmul.f32 %v5633, %v5793
      %v5795 = vsub.f32 1.0, %v5794
      %v5796 = vmul.f32 %v5793, %v5795
      %v5797 = vadd.f32 %v5793, %v5796
      %vm5798 = vweird.f32 %v5633
      %vm5799 = vweird.f32 %v5793
      %vm5800 = vmor %vm5798, %vm5799
      %v5801 = vsel %vm5800, %v5793, %v5797
      %v5802 = vand.u32 2147483647, %v5633
      %vm5803 = vcmp.eq.f32.partialorder %v5802, 8.507059e+37
      %v5804 = vand.u32 %v5633, 2147483648
      %v5805 = vor.u32 1.1754944e-38, %v5804
      %v5806 = vsel %vm5803, %v5805, %v5801
      %v5807 = vmul.f32 1.0, %v5806
      %v5808 = vrcp.pop %v5635
      %v5809 = vmul.f32 %v5635, %v5808
      %v5810 = vsub.f32 1.0, %v5809
      %v5811 = vmul.f32 %v5808, %v5810
      %v5812 = vadd.f32 %v5808, %v5811
      %vm5813 = vweird.f32 %v5635
      %vm5814 = vweird.f32 %v5808
      %vm5815 = vmor %vm5813, %vm5814
      %v5816 = vsel %vm5815, %v5808, %v5812
      %v5817 = vand.u32 2147483647, %v5635
      %vm5818 = vcmp.eq.f32.partialorder %v5817, 8.507059e+37
      %v5819 = vand.u32 %v5635, 2147483648
      %v5820 = vor.u32 1.1754944e-38, %v5819
      %v5821 = vsel %vm5818, %v5820, %v5816
      %v5822 = vmul.f32 1.0, %v5821
      %v5823 = vrcp.pop %v5637
      %v5824 = vmul.f32 %v5637, %v5823
      %v5825 = vsub.f32 1.0, %v5824
      %v5826 = vmul.f32 %v5823, %v5825
      %v5827 = vadd.f32 %v5823, %v5826
      %vm5828 = vweird.f32 %v5637
      %vm5829 = vweird.f32 %v5823
      %vm5830 = vmor %vm5828, %vm5829
      %v5831 = vsel %vm5830, %v5823, %v5827
      %v5832 = vand.u32 2147483647, %v5637
      %vm5833 = vcmp.eq.f32.partialorder %v5832, 8.507059e+37
      %v5834 = vand.u32 %v5637, 2147483648
      %v5835 = vor.u32 1.1754944e-38, %v5834
      %v5836 = vsel %vm5833, %v5835, %v5831
      %v5837 = vmul.f32 1.0, %v5836
      %v5838 = vrcp.pop %v5639
      %v5839 = vmul.f32 %v5639, %v5838
      %v5840 = vsub.f32 1.0, %v5839
      %v5841 = vmul.f32 %v5838, %v5840
      %v5842 = vadd.f32 %v5838, %v5841
      %vm5843 = vweird.f32 %v5639
      %vm5844 = vweird.f32 %v5838
      %vm5845 = vmor %vm5843, %vm5844
      %v5846 = vsel %vm5845, %v5838, %v5842
      %v5847 = vand.u32 2147483647, %v5639
      %vm5848 = vcmp.eq.f32.partialorder %v5847, 8.507059e+37
      %v5849 = vand.u32 %v5639, 2147483648
      %v5850 = vor.u32 1.1754944e-38, %v5849
      %v5851 = vsel %vm5848, %v5850, %v5846
      %v5852 = vmul.f32 1.0, %v5851
      %v5853 = vrcp.pop %v5641
      %v5854 = vmul.f32 %v5641, %v5853
      %v5855 = vsub.f32 1.0, %v5854
      %v5856 = vmul.f32 %v5853, %v5855
      %v5857 = vadd.f32 %v5853, %v5856
      %vm5858 = vweird.f32 %v5641
      %vm5859 = vweird.f32 %v5853
      %vm5860 = vmor %vm5858, %vm5859
      %v5861 = vsel %vm5860, %v5853, %v5857
      %v5862 = vand.u32 2147483647, %v5641
      %vm5863 = vcmp.eq.f32.partialorder %v5862, 8.507059e+37
      %v5864 = vand.u32 %v5641, 2147483648
      %v5865 = vor.u32 1.1754944e-38, %v5864
      %v5866 = vsel %vm5863, %v5865, %v5861
      %v5867 = vmul.f32 1.0, %v5866
      %v5868 = vrcp.pop %v5643
      %v5869 = vmul.f32 %v5643, %v5868
      %v5870 = vsub.f32 1.0, %v5869
      %v5871 = vmul.f32 %v5868, %v5870
      %v5872 = vadd.f32 %v5868, %v5871
      %vm5873 = vweird.f32 %v5643
      %vm5874 = vweird.f32 %v5868
      %vm5875 = vmor %vm5873, %vm5874
      %v5876 = vsel %vm5875, %v5868, %v5872
      %v5877 = vand.u32 2147483647, %v5643
      %vm5878 = vcmp.eq.f32.partialorder %v5877, 8.507059e+37
      %v5879 = vand.u32 %v5643, 2147483648
      %v5880 = vor.u32 1.1754944e-38, %v5879
      %v5881 = vsel %vm5878, %v5880, %v5876
      %v5882 = vmul.f32 1.0, %v5881
      %v5883 = vrcp.pop %v5645
      %v5884 = vmul.f32 %v5645, %v5883
      %v5885 = vsub.f32 1.0, %v5884
      %v5886 = vmul.f32 %v5883, %v5885
      %v5887 = vadd.f32 %v5883, %v5886
      %vm5888 = vweird.f32 %v5645
      %vm5889 = vweird.f32 %v5883
      %vm5890 = vmor %vm5888, %vm5889
      %v5891 = vsel %vm5890, %v5883, %v5887
      %v5892 = vand.u32 2147483647, %v5645
      %vm5893 = vcmp.eq.f32.partialorder %v5892, 8.507059e+37
      %v5894 = vand.u32 %v5645, 2147483648
      %v5895 = vor.u32 1.1754944e-38, %v5894
      %v5896 = vsel %vm5893, %v5895, %v5891
      %v5897 = vmul.f32 1.0, %v5896
      %v5898 = vrcp.pop %v5647
      %v5899 = vmul.f32 %v5647, %v5898
      %v5900 = vsub.f32 1.0, %v5899
      %v5901 = vmul.f32 %v5898, %v5900
      %v5902 = vadd.f32 %v5898, %v5901
      %vm5903 = vweird.f32 %v5647
      %vm5904 = vweird.f32 %v5898
      %vm5905 = vmor %vm5903, %vm5904
      %v5906 = vsel %vm5905, %v5898, %v5902
      %v5907 = vand.u32 2147483647, %v5647
      %vm5908 = vcmp.eq.f32.partialorder %v5907, 8.507059e+37
      %v5909 = vand.u32 %v5647, 2147483648
      %v5910 = vor.u32 1.1754944e-38, %v5909
      %v5911 = vsel %vm5908, %v5910, %v5906
      %v5912 = vmul.f32 1.0, %v5911
      %v5913 = vrcp.pop %v5649
      %v5914 = vmul.f32 %v5649, %v5913
      %v5915 = vsub.f32 1.0, %v5914
      %v5916 = vmul.f32 %v5913, %v5915
      %v5917 = vadd.f32 %v5913, %v5916
      %vm5918 = vweird.f32 %v5649
      %vm5919 = vweird.f32 %v5913
      %vm5920 = vmor %vm5918, %vm5919
      %v5921 = vsel %vm5920, %v5913, %v5917
      %v5922 = vand.u32 2147483647, %v5649
      %vm5923 = vcmp.eq.f32.partialorder %v5922, 8.507059e+37
      %v5924 = vand.u32 %v5649, 2147483648
      %v5925 = vor.u32 1.1754944e-38, %v5924
      %v5926 = vsel %vm5923, %v5925, %v5921
      %v5927 = vmul.f32 1.0, %v5926
      %v5928 = vrcp.pop %v5651
      %v5929 = vmul.f32 %v5651, %v5928
      %v5930 = vsub.f32 1.0, %v5929
      %v5931 = vmul.f32 %v5928, %v5930
      %v5932 = vadd.f32 %v5928, %v5931
      %vm5933 = vweird.f32 %v5651
      %vm5934 = vweird.f32 %v5928
      %vm5935 = vmor %vm5933, %vm5934
      %v5936 = vsel %vm5935, %v5928, %v5932
      %v5937 = vand.u32 2147483647, %v5651
      %vm5938 = vcmp.eq.f32.partialorder %v5937, 8.507059e+37
      %v5939 = vand.u32 %v5651, 2147483648
      %v5940 = vor.u32 1.1754944e-38, %v5939
      %v5941 = vsel %vm5938, %v5940, %v5936
      %v5942 = vmul.f32 1.0, %v5941
      %v5943 = vrcp.pop %v5653
      %v5944 = vmul.f32 %v5653, %v5943
      %v5945 = vsub.f32 1.0, %v5944
      %v5946 = vmul.f32 %v5943, %v5945
      %v5947 = vadd.f32 %v5943, %v5946
      %vm5948 = vweird.f32 %v5653
      %vm5949 = vweird.f32 %v5943
      %vm5950 = vmor %vm5948, %vm5949
      %v5951 = vsel %vm5950, %v5943, %v5947
      %v5952 = vand.u32 2147483647, %v5653
      %vm5953 = vcmp.eq.f32.partialorder %v5952, 8.507059e+37
      %v5954 = vand.u32 %v5653, 2147483648
      %v5955 = vor.u32 1.1754944e-38, %v5954
      %v5956 = vsel %vm5953, %v5955, %v5951
      %v5957 = vmul.f32 1.0, %v5956
      %v5958 = vrcp.pop %v5655
      %v5959 = vmul.f32 %v5655, %v5958
      %v5960 = vsub.f32 1.0, %v5959
      %v5961 = vmul.f32 %v5958, %v5960
      %v5962 = vadd.f32 %v5958, %v5961
      %vm5963 = vweird.f32 %v5655
      %vm5964 = vweird.f32 %v5958
      %vm5965 = vmor %vm5963, %vm5964
      %v5966 = vsel %vm5965, %v5958, %v5962
      %v5967 = vand.u32 2147483647, %v5655
      %vm5968 = vcmp.eq.f32.partialorder %v5967, 8.507059e+37
      %v5969 = vand.u32 %v5655, 2147483648
      %v5970 = vor.u32 1.1754944e-38, %v5969
      %v5971 = vsel %vm5968, %v5970, %v5966
      %v5972 = vmul.f32 1.0, %v5971
      %v5973 = vrcp.pop %v5657
      %v5974 = vmul.f32 %v5657, %v5973
      %v5975 = vsub.f32 1.0, %v5974
      %v5976 = vmul.f32 %v5973, %v5975
      %v5977 = vadd.f32 %v5973, %v5976
      %vm5978 = vweird.f32 %v5657
      %vm5979 = vweird.f32 %v5973
      %vm5980 = vmor %vm5978, %vm5979
      %v5981 = vsel %vm5980, %v5973, %v5977
      %v5982 = vand.u32 2147483647, %v5657
      %vm5983 = vcmp.eq.f32.partialorder %v5982, 8.507059e+37
      %v5984 = vand.u32 %v5657, 2147483648
      %v5985 = vor.u32 1.1754944e-38, %v5984
      %v5986 = vsel %vm5983, %v5985, %v5981
      %v5987 = vmul.f32 1.0, %v5986
      %v5988 = vrcp.pop %v5659
      %v5989 = vmul.f32 %v5659, %v5988
      %v5990 = vsub.f32 1.0, %v5989
      %v5991 = vmul.f32 %v5988, %v5990
      %v5992 = vadd.f32 %v5988, %v5991
      %vm5993 = vweird.f32 %v5659
      %vm5994 = vweird.f32 %v5988
      %vm5995 = vmor %vm5993, %vm5994
      %v5996 = vsel %vm5995, %v5988, %v5992
      %v5997 = vand.u32 2147483647, %v5659
      %vm5998 = vcmp.eq.f32.partialorder %v5997, 8.507059e+37
      %v5999 = vand.u32 %v5659, 2147483648
      %v6000 = vor.u32 1.1754944e-38, %v5999
      %v6001 = vsel %vm5998, %v6000, %v5996
      %v6002 = vmul.f32 1.0, %v6001
      %v6003 = vrcp.pop %v5661
      %v6004 = vmul.f32 %v5661, %v6003
      %v6005 = vsub.f32 1.0, %v6004
      %v6006 = vmul.f32 %v6003, %v6005
      %v6007 = vadd.f32 %v6003, %v6006
      %vm6008 = vweird.f32 %v5661
      %vm6009 = vweird.f32 %v6003
      %vm6010 = vmor %vm6008, %vm6009
      %v6011 = vsel %vm6010, %v6003, %v6007
      %v6012 = vand.u32 2147483647, %v5661
      %vm6013 = vcmp.eq.f32.partialorder %v6012, 8.507059e+37
      %v6014 = vand.u32 %v5661, 2147483648
      %v6015 = vor.u32 1.1754944e-38, %v6014
      %v6016 = vsel %vm6013, %v6015, %v6011
      %v6017 = vmul.f32 1.0, %v6016
      %v6018 = vrcp.pop %v5663
      %v6019 = vmul.f32 %v5663, %v6018
      %v6020 = vsub.f32 1.0, %v6019
      %v6021 = vmul.f32 %v6018, %v6020
      %v6022 = vadd.f32 %v6018, %v6021
      %vm6023 = vweird.f32 %v5663
      %vm6024 = vweird.f32 %v6018
      %vm6025 = vmor %vm6023, %vm6024
      %v6026 = vsel %vm6025, %v6018, %v6022
      %v6027 = vand.u32 2147483647, %v5663
      %vm6028 = vcmp.eq.f32.partialorder %v6027, 8.507059e+37
      %v6029 = vand.u32 %v5663, 2147483648
      %v6030 = vor.u32 1.1754944e-38, %v6029
      %v6031 = vsel %vm6028, %v6030, %v6026
      %v6032 = vmul.f32 1.0, %v6031
      %v6033 = vmul.f32 %v5746, %v5807
      %v6034 = vmul.f32 %v5749, %v5822
      %v6035 = vmul.f32 %v5752, %v5837
      %v6036 = vmul.f32 %v5755, %v5852
      %v6037 = vmul.f32 %v5758, %v5867
      %v6038 = vmul.f32 %v5761, %v5882
      %v6039 = vmul.f32 %v5764, %v5897
      %v6040 = vmul.f32 %v5767, %v5912
      %v6041 = vmul.f32 %v5770, %v5927
      %v6042 = vmul.f32 %v5773, %v5942
      %v6043 = vmul.f32 %v5776, %v5957
      %v6044 = vmul.f32 %v5779, %v5972
      %v6045 = vmul.f32 %v5782, %v5987
      %v6046 = vmul.f32 %v5785, %v6002
      %v6047 = vmul.f32 %v5788, %v6017
      %v6048 = vmul.f32 %v5791, %v6032
      %v6049 = vld [vmem:[#allocation6] sm:$0xff]
      %v6050 = vld [vmem:[#allocation6 + $0x8] sm:$0xff]
      %v6051 = vld [vmem:[#allocation6 + $0x10] sm:$0xff]
      %v6052 = vld [vmem:[#allocation6 + $0x18] sm:$0xff]
      %v6053 = vld [vmem:[#allocation6 + $0x20] sm:$0xff]
      %v6054 = vld [vmem:[#allocation6 + $0x28] sm:$0xff]
      %v6055 = vld [vmem:[#allocation6 + $0x30] sm:$0xff]
      %v6056 = vld [vmem:[#allocation6 + $0x38] sm:$0xff]
      %v6057 = vld [vmem:[#allocation6 + $0x40] sm:$0xff]
      %v6058 = vld [vmem:[#allocation6 + $0x48] sm:$0xff]
      %v6059 = vld [vmem:[#allocation6 + $0x50] sm:$0xff]
      %v6060 = vld [vmem:[#allocation6 + $0x58] sm:$0xff]
      %v6061 = vld [vmem:[#allocation6 + $0x60] sm:$0xff]
      %v6062 = vld [vmem:[#allocation6 + $0x68] sm:$0xff]
      %v6063 = vld [vmem:[#allocation6 + $0x70] sm:$0xff]
      %v6064 = vld [vmem:[#allocation6 + $0x78] sm:$0xff]
      %v6065 = vld [vmem:[%s3 + $0x28] sm:$0xff]
      %v6067 = vsel %vm714, %v6033, 0
      %v6070 = vsel %vm714, %v6034, 0
      %v6073 = vsel %vm714, %v6035, 0
      %v6076 = vsel %vm714, %v6036, 0
      %v6079 = vsel %vm714, %v6037, 0
      %v6082 = vsel %vm714, %v6038, 0
      %v6085 = vsel %vm714, %v6039, 0
      %v6088 = vsel %vm714, %v6040, 0
      %v6091 = vsel %vm714, %v6041, 0
      %v6094 = vsel %vm714, %v6042, 0
      %v6097 = vsel %vm714, %v6043, 0
      %v6100 = vsel %vm714, %v6044, 0
      %v6103 = vsel %vm714, %v6045, 0
      %v6106 = vsel %vm714, %v6046, 0
      %v6109 = vsel %vm714, %v6047, 0
      %v6112 = vsel %vm714, %v6048, 0
      %6114 = vmatpush.msra.mxu0 0.0
      %6115 = vmatpush.msra.mxu0 0.0
      %6116 = vmatpush.msra.mxu0 0.0
      %6117 = vmatpush.msra.mxu0 0.0
      %6118 = vmatpush.msra.mxu0 0.0
      %6119 = vmatpush.msra.mxu0 0.0
      %6120 = vmatpush.msra.mxu0 0.0
      %6121 = vmatpush.msra.mxu0 0.0
      %6122 = vmatpush.msra.mxu0 0.0
      %6123 = vmatpush.msra.mxu0 0.0
      %6124 = vmatpush.msra.mxu0 0.0
      %6125 = vmatpush.msra.mxu0 0.0
      %6126 = vmatpush.msra.mxu0 0.0
      %6127 = vmatpush.msra.mxu0 0.0
      %6128 = vmatpush.msra.mxu0 0.0
      %6129 = vmatpush.msra.mxu0 %v6065
      %6130 = vmatmul.f32.gmra.mxu0 %v6067
      %v6131 = vpop.f32.mrf.mxu0
      %v6132 = vadd.f32 0.0, %v6131
      %6133 = vmatmul.f32.gmra.mxu0 %v6070
      %v6134 = vpop.f32.mrf.mxu0
      %v6135 = vadd.f32 0.0, %v6134
      %6136 = vmatmul.f32.gmra.mxu0 %v6073
      %v6137 = vpop.f32.mrf.mxu0
      %v6138 = vadd.f32 0.0, %v6137
      %6139 = vmatmul.f32.gmra.mxu0 %v6076
      %v6140 = vpop.f32.mrf.mxu0
      %v6141 = vadd.f32 0.0, %v6140
      %6142 = vmatmul.f32.gmra.mxu0 %v6079
      %v6143 = vpop.f32.mrf.mxu0
      %v6144 = vadd.f32 0.0, %v6143
      %6145 = vmatmul.f32.gmra.mxu0 %v6082
      %v6146 = vpop.f32.mrf.mxu0
      %v6147 = vadd.f32 0.0, %v6146
      %6148 = vmatmul.f32.gmra.mxu0 %v6085
      %v6149 = vpop.f32.mrf.mxu0
      %v6150 = vadd.f32 0.0, %v6149
      %6151 = vmatmul.f32.gmra.mxu0 %v6088
      %v6152 = vpop.f32.mrf.mxu0
      %v6153 = vadd.f32 0.0, %v6152
      %6154 = vmatmul.f32.gmra.mxu0 %v6091
      %v6155 = vpop.f32.mrf.mxu0
      %v6156 = vadd.f32 0.0, %v6155
      %6157 = vmatmul.f32.gmra.mxu0 %v6094
      %v6158 = vpop.f32.mrf.mxu0
      %v6159 = vadd.f32 0.0, %v6158
      %6160 = vmatmul.f32.gmra.mxu0 %v6097
      %v6161 = vpop.f32.mrf.mxu0
      %v6162 = vadd.f32 0.0, %v6161
      %6163 = vmatmul.f32.gmra.mxu0 %v6100
      %v6164 = vpop.f32.mrf.mxu0
      %v6165 = vadd.f32 0.0, %v6164
      %6166 = vmatmul.f32.gmra.mxu0 %v6103
      %v6167 = vpop.f32.mrf.mxu0
      %v6168 = vadd.f32 0.0, %v6167
      %6169 = vmatmul.f32.gmra.mxu0 %v6106
      %v6170 = vpop.f32.mrf.mxu0
      %v6171 = vadd.f32 0.0, %v6170
      %6172 = vmatmul.f32.gmra.mxu0 %v6109
      %v6173 = vpop.f32.mrf.mxu0
      %v6174 = vadd.f32 0.0, %v6173
      %6175 = vmatmul.f32.gmra.mxu0 %v6112
      %v6176 = vpop.f32.mrf.mxu0
      %v6177 = vadd.f32 0.0, %v6176
      %6178 = vdwg.mxu0
      %v6179 = vadd.f32 %v6049, %v6132
      %v6180 = vadd.f32 %v6050, %v6135
      %v6181 = vadd.f32 %v6051, %v6138
      %v6182 = vadd.f32 %v6052, %v6141
      %v6183 = vadd.f32 %v6053, %v6144
      %v6184 = vadd.f32 %v6054, %v6147
      %v6185 = vadd.f32 %v6055, %v6150
      %v6186 = vadd.f32 %v6056, %v6153
      %v6187 = vadd.f32 %v6057, %v6156
      %v6188 = vadd.f32 %v6058, %v6159
      %v6189 = vadd.f32 %v6059, %v6162
      %v6190 = vadd.f32 %v6060, %v6165
      %v6191 = vadd.f32 %v6061, %v6168
      %v6192 = vadd.f32 %v6062, %v6171
      %v6193 = vadd.f32 %v6063, %v6174
      %v6194 = vadd.f32 %v6064, %v6177
      %6195 = vst.msk [vmem:[#allocation6] sm:$0xff] %vm318, %v6179
      %6196 = vst.msk [vmem:[#allocation6 + $0x8] sm:$0xff] %vm318, %v6180
      %6197 = vst.msk [vmem:[#allocation6 + $0x10] sm:$0xff] %vm318, %v6181
      %6198 = vst.msk [vmem:[#allocation6 + $0x18] sm:$0xff] %vm318, %v6182
      %6199 = vst.msk [vmem:[#allocation6 + $0x20] sm:$0xff] %vm318, %v6183
      %6200 = vst.msk [vmem:[#allocation6 + $0x28] sm:$0xff] %vm318, %v6184
      %6201 = vst.msk [vmem:[#allocation6 + $0x30] sm:$0xff] %vm318, %v6185
      %6202 = vst.msk [vmem:[#allocation6 + $0x38] sm:$0xff] %vm318, %v6186
      %6203 = vst.msk [vmem:[#allocation6 + $0x40] sm:$0xff] %vm318, %v6187
      %6204 = vst.msk [vmem:[#allocation6 + $0x48] sm:$0xff] %vm318, %v6188
      %6205 = vst.msk [vmem:[#allocation6 + $0x50] sm:$0xff] %vm318, %v6189
      %6206 = vst.msk [vmem:[#allocation6 + $0x58] sm:$0xff] %vm318, %v6190
      %6207 = vst.msk [vmem:[#allocation6 + $0x60] sm:$0xff] %vm318, %v6191
      %6208 = vst.msk [vmem:[#allocation6 + $0x68] sm:$0xff] %vm318, %v6192
      %6209 = vst.msk [vmem:[#allocation6 + $0x70] sm:$0xff] %vm318, %v6193
      %6210 = vst.msk [vmem:[#allocation6 + $0x78] sm:$0xff] %vm318, %v6194
      %v6211 = vld [vmem:[#allocation6] sm:$0xff]
      %v6212 = vld [vmem:[#allocation6 + $0x8] sm:$0xff]
      %v6213 = vld [vmem:[#allocation6 + $0x10] sm:$0xff]
      %v6214 = vld [vmem:[#allocation6 + $0x18] sm:$0xff]
      %v6215 = vld [vmem:[#allocation6 + $0x20] sm:$0xff]
      %v6216 = vld [vmem:[#allocation6 + $0x28] sm:$0xff]
      %v6217 = vld [vmem:[#allocation6 + $0x30] sm:$0xff]
      %v6218 = vld [vmem:[#allocation6 + $0x38] sm:$0xff]
      %v6219 = vld [vmem:[#allocation6 + $0x40] sm:$0xff]
      %v6220 = vld [vmem:[#allocation6 + $0x48] sm:$0xff]
      %v6221 = vld [vmem:[#allocation6 + $0x50] sm:$0xff]
      %v6222 = vld [vmem:[#allocation6 + $0x58] sm:$0xff]
      %v6223 = vld [vmem:[#allocation6 + $0x60] sm:$0xff]
      %v6224 = vld [vmem:[#allocation6 + $0x68] sm:$0xff]
      %v6225 = vld [vmem:[#allocation6 + $0x70] sm:$0xff]
      %v6226 = vld [vmem:[#allocation6 + $0x78] sm:$0xff]
      %v6227 = vld [vmem:[%s4] sm:$0x1]
      %v6229 = vperm.slane %v6227, 0
      %v6231 = vadd.f32 %v6211, %v6229
      %v6232 = vadd.f32 %v6212, %v6229
      %v6233 = vadd.f32 %v6213, %v6229
      %v6234 = vadd.f32 %v6214, %v6229
      %v6235 = vadd.f32 %v6215, %v6229
      %v6236 = vadd.f32 %v6216, %v6229
      %v6237 = vadd.f32 %v6217, %v6229
      %v6238 = vadd.f32 %v6218, %v6229
      %v6239 = vadd.f32 %v6219, %v6229
      %v6240 = vadd.f32 %v6220, %v6229
      %v6241 = vadd.f32 %v6221, %v6229
      %v6242 = vadd.f32 %v6222, %v6229
      %v6243 = vadd.f32 %v6223, %v6229
      %v6244 = vadd.f32 %v6224, %v6229
      %v6245 = vadd.f32 %v6225, %v6229
      %v6246 = vadd.f32 %v6226, %v6229
      %6247 = vst.msk [vmem:[%s224] sm:$0xff] %vm318, %v6231
      %6248 = vst.msk [vmem:[%s224 + $0x8] sm:$0xff] %vm318, %v6232
      %6249 = vst.msk [vmem:[%s224 + $0x10] sm:$0xff] %vm318, %v6233
      %6250 = vst.msk [vmem:[%s224 + $0x18] sm:$0xff] %vm318, %v6234
      %6251 = vst.msk [vmem:[%s224 + $0x20] sm:$0xff] %vm318, %v6235
      %6252 = vst.msk [vmem:[%s224 + $0x28] sm:$0xff] %vm318, %v6236
      %6253 = vst.msk [vmem:[%s224 + $0x30] sm:$0xff] %vm318, %v6237
      %6254 = vst.msk [vmem:[%s224 + $0x38] sm:$0xff] %vm318, %v6238
      %6255 = vst.msk [vmem:[%s224 + $0x40] sm:$0xff] %vm318, %v6239
      %6256 = vst.msk [vmem:[%s224 + $0x48] sm:$0xff] %vm318, %v6240
      %6257 = vst.msk [vmem:[%s224 + $0x50] sm:$0xff] %vm318, %v6241
      %6258 = vst.msk [vmem:[%s224 + $0x58] sm:$0xff] %vm318, %v6242
      %6259 = vst.msk [vmem:[%s224 + $0x60] sm:$0xff] %vm318, %v6243
      %6260 = vst.msk [vmem:[%s224 + $0x68] sm:$0xff] %vm318, %v6244
      %6261 = vst.msk [vmem:[%s224 + $0x70] sm:$0xff] %vm318, %v6245
      %6262 = vst.msk [vmem:[%s224 + $0x78] sm:$0xff] %vm318, %v6246
      %p6263 = scmp.lt.s32.totalorder %s16, 1
      %s6264 = scalar_select %p6263, %s16, 1
      %s6265 = smul.addr %s6264, 16
      %s6266 = smul.addr %s6265, 8
      %s6267 = scalar_lea.vmem %s5, %s6266
      // Predicated region
      $region41: #{tpu_custom_call.1} parent=39 // pred_check
        %p6268 = pneg %p144
      $region42: #{tpu_custom_call.1} parent=39 // pred_check_branch
        %6270 = sbr.rel (%p6268) target = $region44
      $region43: #{tpu_custom_call.1} parent=39 // pred_region
        _
      $region44: #{tpu_custom_call.1} parent=39 // pred_fallthru
        _
    $region40: #{tpu_custom_call.1} parent=5 // pred_fallthru
      _
    %p6271 = scmp.le.s32.totalorder 2, %s11
    // Predicated region
    $region45: #{tpu_custom_call.1} parent=5 // pred_check
      %p6272 = pneg %p6271
    $region46: #{tpu_custom_call.1} parent=5 // pred_check_branch
      %6274 = sbr.rel (%p6272) target = $region48
    $region47: #{tpu_custom_call.1} parent=5 // pred_region
      %s6275 = ssub.s32 %s11, 2
      // Predicated region
      $region49: #{tpu_custom_call.1} parent=47 // pred_check
        %p6276 = pneg %p150
      $region50: #{tpu_custom_call.1} parent=47 // pred_check_branch
        %6278 = sbr.rel (%p6276) target = $region52
      $region51: #{tpu_custom_call.1} parent=47 // pred_region
        %p6279 = scmp.lt.s32.totalorder %s17, 1
        %s6280 = scalar_select %p6279, %s17, 1
        %s6281 = smul.addr %s6280, 16
        %s6282 = smul.addr %s6281, 8
        %s6283 = scalar_lea.vmem %s5, %s6282
      $region52: #{tpu_custom_call.1} parent=47 // pred_fallthru
        _
    $region48: #{tpu_custom_call.1} parent=5 // pred_fallthru
      _
  $region6: #{tpu_custom_call.1} parent=0 // loop_footer
    %s15 = sadd.s32 1, %s11
  $region7: #{tpu_custom_call.1} parent=0 // loop_footer_branch
    %10 = sbr.rel target = $region3
  $region8: #{tpu_custom_call.1} parent=0 // loop_exit
    _

</llo_original>
